<compile_context>
chip_gen: v7x
topology: tpu7x:2x2x1
jax: 0.10.0
libtpu: 0.0.40
codegen_flags: <defaults>
</compile_context>

<pallas_src>
import math
import jax
import jax.numpy as jnp
from jax.experimental import pallas as pl
from jax.experimental.pallas import tpu as pltpu

# ----- configuration (small shapes consistent with the module) -----
DIMS = {"h": 16, "w": 16}     # SirenWrapper dims -> grid of 16x16 coordinates
DIM_IN = len(DIMS)            # 2 coordinate channels (net.dim_in)
DIM_HIDDEN = 32
DIM_OUT = 3
NUM_LAYERS = 3
LATENT_DIM = 8
BATCH = 2
W0 = 1.0
W0_INITIAL = 30.0
C = 6.0
N_POINTS = 1
for _d in DIMS.values():
    N_POINTS *= _d            # 256 points

H_FUSED = BATCH * DIM_HIDDEN                      # 64: batch-fused hidden width
OUT_PAD = ((BATCH * DIM_OUT + 7) // 8) * 8        # 8: dense output sublane tile


# ---------------------------------------------------------------------------
# Pallas kernel: batch-fused SirenNet forward (all B batches, all N points).
# Everything batch/modulation/w0 dependent is pre-folded into the packed weights.
# ---------------------------------------------------------------------------
def siren_fused_kernel(pre0_ref, w_ref, b_ref, out_ref):
    # pre0_ref: (B*H, N)               first-layer pre-activation (w0_initial folded), batch-stacked
    # w_ref   : (NUM_LAYERS, B*H, B*H) block-diag weights (w0 + modulation folded);
    #                                  slot NUM_LAYERS-1 holds the last layer in its top B*DIM_OUT rows
    # b_ref   : (NUM_LAYERS, B*H, 1)   matching biases
    # out_ref : (OUT_PAD, N)           dense tile; batch b lives in rows [b*DIM_OUT, (b+1)*DIM_OUT)
    h = jnp.sin(pre0_ref[...])                                        # (B*H, N)
    for i in range(NUM_LAYERS - 1):                                   # statically unrolled
        h = jnp.sin(jnp.dot(w_ref[i], h, preferred_element_type=jnp.float32)
                    + b_ref[i])                                       # (B*H, N)
    # last Siren layer with Identity activation (final_activation=None)
    wl = w_ref[NUM_LAYERS - 1][:OUT_PAD, :]                           # (OUT_PAD, B*H)
    bl = b_ref[NUM_LAYERS - 1][:OUT_PAD, :]                           # (OUT_PAD, 1)
    out = jnp.dot(wl, h, preferred_element_type=jnp.float32) + bl     # (OUT_PAD, N)
    out_ref[...] = out.astype(out_ref.dtype)


def siren_forward_pallas(pre0_stacked, w_all, b_all):
    H2, N = pre0_stacked.shape
    flops = 2 * (NUM_LAYERS - 1) * H2 * H2 * N + 2 * OUT_PAD * H2 * N
    transcendentals = NUM_LAYERS * H2 * N
    bytes_accessed = 4 * (pre0_stacked.size + w_all.size + b_all.size + OUT_PAD * N)
    return pl.pallas_call(
        siren_fused_kernel,
        out_shape=jax.ShapeDtypeStruct((OUT_PAD, N), jnp.float32),
        grid_spec=pltpu.PrefetchScalarGridSpec(
            num_scalar_prefetch=0,
            grid=(1,),                                   # single fused step (batch block-diag)
            in_specs=[
                pl.BlockSpec((H2, N), lambda i: (0, 0)),
                pl.BlockSpec((NUM_LAYERS, H2, H2), lambda i: (0, 0, 0)),
                pl.BlockSpec((NUM_LAYERS, H2, 1), lambda i: (0, 0, 0)),
            ],
            out_specs=pl.BlockSpec((OUT_PAD, N), lambda i: (0, 0)),
        ),
        compiler_params=pltpu.CompilerParams(dimension_semantics=("arbitrary",)),
        cost_estimate=pl.CostEstimate(flops=flops,
                                      transcendentals=transcendentals,
                                      bytes_accessed=bytes_accessed),
    )(pre0_stacked, w_all, b_all)


# ---------------------------------------------------------------------------
# Plain-JAX glue: Modulator, coordinate grid, parameter init/folding, reference.
# ---------------------------------------------------------------------------
def modulator_forward(z, mod_ws, mod_bs):
    # z: (B, LATENT_DIM) -> stacked hiddens (B, NUM_LAYERS, DIM_HIDDEN)
    x = z
    hiddens = []
    for w, b in zip(mod_ws, mod_bs):
        x = jax.nn.relu(x @ w.T + b)
        hiddens.append(x)
        x = jnp.concatenate([x, z], axis=1)
    return jnp.stack(hiddens, axis=1)


def make_grid(dims):
    axes = [jnp.linspace(-1.0, 1.0, d, dtype=jnp.float32) for d in dims.values()]
    mg = jnp.stack(jnp.meshgrid(*axes, indexing="ij"), axis=-1)
    return mg.reshape(-1, len(dims))                    # (N, DIM_IN)


def init_params(key):
    keys = jax.random.split(key, 16)
    ki = iter(keys)

    def unif(k, shape, std):
        return jax.random.uniform(k, shape, jnp.float32, -std, std)

    # SirenNet parameters (PyTorch Linear convention: W is (out, in))
    w_std_first = 1.0 / DIM_IN
    w_std_hid = math.sqrt(C / DIM_HIDDEN) / W0
    w_first = unif(next(ki), (DIM_HIDDEN, DIM_IN), w_std_first)
    b_first = unif(next(ki), (1, DIM_HIDDEN), w_std_first)
    w_hid = jnp.stack([unif(next(ki), (DIM_HIDDEN, DIM_HIDDEN), w_std_hid)
                       for _ in range(NUM_LAYERS - 1)], axis=0)
    b_hid = jnp.stack([unif(next(ki), (DIM_HIDDEN,), w_std_hid)
                       for _ in range(NUM_LAYERS - 1)], axis=0)
    w_last = unif(next(ki), (DIM_OUT, DIM_HIDDEN), w_std_hid)
    b_last = unif(next(ki), (1, DIM_OUT), w_std_hid)

    # Modulator parameters
    mod_ws, mod_bs = [], []
    for ind in range(NUM_LAYERS):
        d_in = LATENT_DIM if ind == 0 else DIM_HIDDEN + LATENT_DIM
        std = 1.0 / math.sqrt(d_in)
        mod_ws.append(unif(next(ki), (DIM_HIDDEN, d_in), std))
        mod_bs.append(unif(next(ki), (DIM_HIDDEN,), std))

    return (w_first, b_first, w_hid, b_hid, w_last, b_last), (mod_ws, mod_bs)


def fold_params_fused(w_first, b_first, w_hid, b_hid, w_last, b_last, mods, coords):
    """One-time fold of w0/w0_initial + modulations into block-diagonal fused weights,
    and hoist of the batch-invariant first layer into a pre-activation slab."""
    B = mods.shape[0]
    H = DIM_HIDDEN
    H2 = B * H

    # batch-invariant first layer hoisted to glue (degenerate K=DIM_IN contraction)
    pre0 = (W0_INITIAL * (coords @ w_first.T + b_first)).T          # (H, N), points-last
    pre0_stacked = jnp.concatenate([pre0] * B, axis=0)              # (B*H, N)

    # hidden layer i absorbs mods[:, i] (applied to its input) and w0:
    #   sin(w0*(W @ (m*h) + b)) == sin((w0*W*diag(m)) @ h + w0*b)
    w_hid_mod = W0 * w_hid[None, :, :, :] * mods[:, :NUM_LAYERS - 1, None, :]   # (B, L-1, H, H)
    b_hid_s = W0 * b_hid                                                        # (L-1, H)
    # last layer absorbs the final modulation
    w_last_mod = w_last[None, :, :] * mods[:, NUM_LAYERS - 1, None, :]          # (B, DIM_OUT, H)

    # pack into one block-diagonal weight blob + one bias blob (3 kernel inputs total)
    w_all = jnp.zeros((NUM_LAYERS, H2, H2), jnp.float32)
    b_all = jnp.zeros((NUM_LAYERS, H2, 1), jnp.float32)
    for i in range(NUM_LAYERS - 1):
        for b in range(B):
            w_all = w_all.at[i, b * H:(b + 1) * H, b * H:(b + 1) * H].set(w_hid_mod[b, i])
        b_all = b_all.at[i, :, 0].set(jnp.tile(b_hid_s[i], B))
    for b in range(B):
        w_all = w_all.at[NUM_LAYERS - 1,
                         b * DIM_OUT:(b + 1) * DIM_OUT,
                         b * H:(b + 1) * H].set(w_last_mod[b])
        b_all = b_all.at[NUM_LAYERS - 1,
                         b * DIM_OUT:(b + 1) * DIM_OUT, 0].set(b_last.reshape(-1))
    return pre0_stacked, w_all, b_all


def siren_forward_ref(coords, w_first, b_first, w_hid, b_hid, w_last, b_last, mods):
    # pure-JAX reference of SirenNet.forward with mods (unfolded params), for checking
    h = jnp.sin(W0_INITIAL * (coords @ w_first.T + b_first))
    h = h * mods[:, 0][:, None, :]
    for i in range(NUM_LAYERS - 1):
        h = jnp.sin(W0 * (h @ w_hid[i].T + b_hid[i]))
        h = h * mods[:, i + 1][:, None, :]
    return h @ w_last.T + b_last


# ---------------------------------------------------------------------------
if __name__ == "__main__":
    key = jax.random.PRNGKey(0)
    k_params, k_latent = jax.random.split(key)

    (w_first, b_first, w_hid, b_hid, w_last, b_last), (mod_ws, mod_bs) = init_params(k_params)
    latent = jax.random.normal(k_latent, (BATCH, LATENT_DIM), jnp.float32)

    # Modulator (tiny; plain JAX)
    mods = modulator_forward(latent, mod_ws, mod_bs)            # (B, NUM_LAYERS, DIM_HIDDEN)

    # shared coordinate grid (same for every batch element)
    grid_pts = make_grid(DIMS)                                  # (N, DIM_IN)

    # fold w0 / modulations into block-diagonal fused weights + hoist first layer
    pre0_stacked, w_all, b_all = fold_params_fused(
        w_first, b_first, w_hid, b_hid, w_last, b_last, mods, grid_pts)

    out_pad = siren_forward_pallas(pre0_stacked, w_all, b_all)  # (OUT_PAD, N)
    # unfuse: batch b output lives in rows [b*DIM_OUT, (b+1)*DIM_OUT)
    out_bnc = jnp.stack(
        [out_pad[b * DIM_OUT:(b + 1) * DIM_OUT, :].T for b in range(BATCH)], axis=0)  # (B, N, C)
    out = out_bnc.reshape(BATCH, DIMS["h"], DIMS["w"], DIM_OUT)  # b (h w) c -> b h w c
    jax.block_until_ready(out)

    # correctness check against pure-JAX reference (original unfolded params + mods)
    coords_b = jnp.broadcast_to(grid_pts[None], (BATCH,) + grid_pts.shape)
    ref = siren_forward_ref(coords_b, w_first, b_first, w_hid, b_hid, w_last, b_last, mods)
    assert out.shape == (BATCH, DIMS["h"], DIMS["w"], DIM_OUT)
    assert jnp.allclose(out_bnc, ref, atol=1e-3, rtol=1e-3), "mismatch vs reference"

    # TODO(synk): optional img argument (F.mse_loss(img, out)) not exercised; the no-img path is returned.
    print("KERNEL_OK")
</pallas_src>

<mosaic_0001>
module attributes {stable_mosaic.version = 11 : i64} {
  func.func @siren_fused_kernel(%arg0: i32, %arg1: memref<64x256xf32, #tpu.memory_space<vmem>>, %arg2: memref<3x64x64xf32, #tpu.memory_space<vmem>>, %arg3: memref<3x64x1xf32, #tpu.memory_space<vmem>>, %arg4: memref<8x256xf32, #tpu.memory_space<vmem>>) attributes {dimension_semantics = [#tpu.dimension_semantics<arbitrary>], iteration_bounds = array<i64: 1>, scalar_prefetch = 0 : i64, scratch_operands = 0 : i64, tpu.core_type = #tpu.core_type<tc>, window_params = [{pipeline_mode = #tpu.pipeline_mode<synchronous>, transform_indices = @transform_0, window_bounds = array<i64: 64, 256>}, {pipeline_mode = #tpu.pipeline_mode<synchronous>, transform_indices = @transform_1, window_bounds = array<i64: 3, 64, 64>}, {pipeline_mode = #tpu.pipeline_mode<synchronous>, transform_indices = @transform_2, window_bounds = array<i64: 3, 64, 1>}, {pipeline_mode = #tpu.pipeline_mode<synchronous>, transform_indices = @transform_3, window_bounds = array<i64: 8, 256>}]} {
    %c0 = arith.constant 0 : index
    %c0_0 = arith.constant 0 : index
    %0 = vector.load %arg1[%c0, %c0_0] : memref<64x256xf32, #tpu.memory_space<vmem>>, vector<64x256xf32>
    %1 = math.sin %0 : vector<64x256xf32>
    %c0_1 = arith.constant 0 : index
    %c0_2 = arith.constant 0 : index
    %c0_3 = arith.constant 0 : index
    %2 = vector.load %arg2[%c0_1, %c0_2, %c0_3] : memref<3x64x64xf32, #tpu.memory_space<vmem>>, vector<1x64x64xf32>
    %3 = vector.shape_cast %2 : vector<1x64x64xf32> to vector<64x64xf32>
    %cst = arith.constant dense<0.000000e+00> : vector<64x256xf32>
    %4 = tpu.matmul %3, %1, %cst {dimension_numbers = #tpu.dot_dimension_numbers<[1], [0], [0], [1], [0, 0, 1, 1], [], []>} : vector<64x64xf32>, vector<64x256xf32>, vector<64x256xf32> -> vector<64x256xf32>
    %c0_4 = arith.constant 0 : index
    %c0_5 = arith.constant 0 : index
    %c0_6 = arith.constant 0 : index
    %5 = vector.load %arg3[%c0_4, %c0_5, %c0_6] : memref<3x64x1xf32, #tpu.memory_space<vmem>>, vector<1x64x1xf32>
    %6 = vector.shape_cast %5 : vector<1x64x1xf32> to vector<64x1xf32>
    %7 = vector.broadcast %6 : vector<64x1xf32> to vector<64x256xf32>
    %8 = arith.addf %4, %7 : vector<64x256xf32>
    %9 = math.sin %8 : vector<64x256xf32>
    %c1 = arith.constant 1 : index
    %c0_7 = arith.constant 0 : index
    %c0_8 = arith.constant 0 : index
    %10 = vector.load %arg2[%c1, %c0_7, %c0_8] : memref<3x64x64xf32, #tpu.memory_space<vmem>>, vector<1x64x64xf32>
    %11 = vector.shape_cast %10 : vector<1x64x64xf32> to vector<64x64xf32>
    %cst_9 = arith.constant dense<0.000000e+00> : vector<64x256xf32>
    %12 = tpu.matmul %11, %9, %cst_9 {dimension_numbers = #tpu.dot_dimension_numbers<[1], [0], [0], [1], [0, 0, 1, 1], [], []>} : vector<64x64xf32>, vector<64x256xf32>, vector<64x256xf32> -> vector<64x256xf32>
    %c1_10 = arith.constant 1 : index
    %c0_11 = arith.constant 0 : index
    %c0_12 = arith.constant 0 : index
    %13 = vector.load %arg3[%c1_10, %c0_11, %c0_12] : memref<3x64x1xf32, #tpu.memory_space<vmem>>, vector<1x64x1xf32>
    %14 = vector.shape_cast %13 : vector<1x64x1xf32> to vector<64x1xf32>
    %15 = vector.broadcast %14 : vector<64x1xf32> to vector<64x256xf32>
    %16 = arith.addf %12, %15 : vector<64x256xf32>
    %17 = math.sin %16 : vector<64x256xf32>
    %c2 = arith.constant 2 : index
    %c0_13 = arith.constant 0 : index
    %c0_14 = arith.constant 0 : index
    %18 = vector.load %arg2[%c2, %c0_13, %c0_14] : memref<3x64x64xf32, #tpu.memory_space<vmem>>, vector<1x64x64xf32>
    %19 = vector.shape_cast %18 : vector<1x64x64xf32> to vector<64x64xf32>
    %20 = vector.extract_strided_slice %19 {offsets = [0, 0], sizes = [8, 64], strides = [1, 1]} : vector<64x64xf32> to vector<8x64xf32>
    %c2_15 = arith.constant 2 : index
    %c0_16 = arith.constant 0 : index
    %c0_17 = arith.constant 0 : index
    %21 = vector.load %arg3[%c2_15, %c0_16, %c0_17] : memref<3x64x1xf32, #tpu.memory_space<vmem>>, vector<1x64x1xf32>
    %22 = vector.shape_cast %21 : vector<1x64x1xf32> to vector<64x1xf32>
    %23 = vector.extract_strided_slice %22 {offsets = [0, 0], sizes = [8, 1], strides = [1, 1]} : vector<64x1xf32> to vector<8x1xf32>
    %cst_18 = arith.constant dense<0.000000e+00> : vector<8x256xf32>
    %24 = tpu.matmul %20, %17, %cst_18 {dimension_numbers = #tpu.dot_dimension_numbers<[1], [0], [0], [1], [0, 0, 1, 1], [], []>} : vector<8x64xf32>, vector<64x256xf32>, vector<8x256xf32> -> vector<8x256xf32>
    %25 = vector.broadcast %23 : vector<8x1xf32> to vector<8x256xf32>
    %26 = arith.addf %24, %25 : vector<8x256xf32>
    %c0_19 = arith.constant 0 : index
    %c0_20 = arith.constant 0 : index
    %27 = vector.load %arg4[%c0_19, %c0_20] : memref<8x256xf32, #tpu.memory_space<vmem>>, vector<8x256xf32>
    tpu.vector_store %arg4[%c0_19, %c0_20], %26 {strides = array<i32>} : memref<8x256xf32, #tpu.memory_space<vmem>>, vector<8x256xf32>,
    return
  }
  func.func @transform_0(%arg0: i32) -> (i32, i32) {
    %c0_i32 = arith.constant 0 : i32
    %c0_i32_0 = arith.constant 0 : i32
    %c0_i32_1 = arith.constant 0 : i32
    return %c0_i32, %c0_i32_0 : i32, i32
  }
  func.func @transform_1(%arg0: i32) -> (i32, i32, i32) {
    %c0_i32 = arith.constant 0 : i32
    %c0_i32_0 = arith.constant 0 : i32
    %c0_i32_1 = arith.constant 0 : i32
    %c0_i32_2 = arith.constant 0 : i32
    return %c0_i32, %c0_i32_0, %c0_i32_1 : i32, i32, i32
  }
  func.func @transform_2(%arg0: i32) -> (i32, i32, i32) {
    %c0_i32 = arith.constant 0 : i32
    %c0_i32_0 = arith.constant 0 : i32
    %c0_i32_1 = arith.constant 0 : i32
    %c0_i32_2 = arith.constant 0 : i32
    return %c0_i32, %c0_i32_0, %c0_i32_1 : i32, i32, i32
  }
  func.func @transform_3(%arg0: i32) -> (i32, i32) {
    %c0_i32 = arith.constant 0 : i32
    %c0_i32_0 = arith.constant 0 : i32
    %c0_i32_1 = arith.constant 0 : i32
    return %c0_i32, %c0_i32_0 : i32, i32
  }
}

</mosaic_0001>

<llo_original>
// kernel: tpu_custom_call.1
$region0: #{tpu_custom_call.1}
  #allocation0 [shape = 'u32[]', space=smem, size = 0x4, offset = 0x4, fixed_abs, tag = 'smem constant byte address 0x4 - core index']
  #allocation1 [shape = 'u32[144,128]{1,0:T(1,128)}', space=vmem, size = 0x12000, scoped, tag = 'internal scratch']
  %s0 = inlined_call_operand.hbm [shape: f32[64,256], index: 0, kind: input, shape index: {}]
  %s1 = inlined_call_operand.vmem [shape: f32[3,64,64], index: 1, kind: input, shape index: {}]
  %s2 = inlined_call_operand.vmem [shape: f32[3,64,1], index: 2, kind: input, shape index: {}]
  %s3 = inlined_call_operand.hbm [shape: f32[8,256], index: 3, kind: output, shape index: {}]
  %s4 = sld [smem:[#allocation0]]
  $region26: #{tpu_custom_call.1} parent=0
    _
  %s6 = ssub.s32 1, %s4
  %s7 = scalar_select 0, %s6, %s4
  $region1: #{tpu_custom_call.1} parent=0
    #allocation2 [shape = 'u8[65536]{0}', space=vmem, size = 0x10000, scoped, tag = 'input window, operand 0, single buffered']
    #allocation3 [shape = 's32[1]{0}', space=sflag, size = 0x4, scoped, tag = 'scoped memory for tpu_custom_call.1']
    #allocation4 [shape = 's32[1]{0}', space=sflag, size = 0x4, scoped, tag = 'scoped memory for tpu_custom_call.1']
    #allocation5 [shape = 'u8[8192]{0}', space=vmem, size = 0x2000, scoped, tag = 'output window, operand 0, single buffered']
    %8 = vsyncpa [#allocation3], 0
    %9 = vsyncpa [#allocation4], 0
    // Predicated region
    $region2: #{tpu_custom_call.1} parent=1 // pred_check
      _
    $region3: #{tpu_custom_call.1} parent=1 // pred_check_branch
      %11 = sbr.rel (0) target = $region5
    $region4: #{tpu_custom_call.1} parent=1 // pred_region
      %s13 = ssub.s32 2048, 2048
      %14 = vsyncadd [#allocation3], %s13
      %s15 = sshll.u32 [#allocation2], 4
      %s16 = int_to_ptr.vmem [resolvable:$true] %s15
      %21 = dma.hbm_to_vmem [thread:$0]  %s0, 2048, %s16, [#allocation3], 256, 256, 16
    $region5: #{tpu_custom_call.1} parent=1 // pred_fallthru
      _
    // Predicated region
    $region6: #{tpu_custom_call.1} parent=1 // pred_check
      _
    $region7: #{tpu_custom_call.1} parent=1 // pred_check_branch
      %23 = sbr.rel (0) target = $region9
    $region8: #{tpu_custom_call.1} parent=1 // pred_region
      _
    $region9: #{tpu_custom_call.1} parent=1 // pred_fallthru
      _
    // Predicated region
    $region10: #{tpu_custom_call.1} parent=1 // pred_check
      _
    $region11: #{tpu_custom_call.1} parent=1 // pred_check_branch
      %25 = sbr.rel (0) target = $region13
    $region12: #{tpu_custom_call.1} parent=1 // pred_region
      _
    $region13: #{tpu_custom_call.1} parent=1 // pred_fallthru
      _
    // Predicated region
    $region14: #{tpu_custom_call.1} parent=1 // pred_check
      _
    $region15: #{tpu_custom_call.1} parent=1 // pred_check_branch
      %27 = sbr.rel (0) target = $region17
    $region16: #{tpu_custom_call.1} parent=1 // pred_region
      %28 = dma.done [#allocation3], 2048
    $region17: #{tpu_custom_call.1} parent=1 // pred_fallthru
      _
    %v29 = vld [vmem:[#allocation2] sm:$0xff]
    %v30 = vld [vmem:[#allocation2 + $0x8] sm:$0xff]
    %v31 = vld [vmem:[#allocation2 + $0x10] sm:$0xff]
    %v32 = vld [vmem:[#allocation2 + $0x18] sm:$0xff]
    %v33 = vld [vmem:[#allocation2 + $0x20] sm:$0xff]
    %v34 = vld [vmem:[#allocation2 + $0x28] sm:$0xff]
    %v35 = vld [vmem:[#allocation2 + $0x30] sm:$0xff]
    %v36 = vld [vmem:[#allocation2 + $0x38] sm:$0xff]
    %v37 = vld [vmem:[#allocation2 + $0x40] sm:$0xff]
    %v38 = vld [vmem:[#allocation2 + $0x48] sm:$0xff]
    %v39 = vld [vmem:[#allocation2 + $0x50] sm:$0xff]
    %v40 = vld [vmem:[#allocation2 + $0x58] sm:$0xff]
    %v41 = vld [vmem:[#allocation2 + $0x60] sm:$0xff]
    %v42 = vld [vmem:[#allocation2 + $0x68] sm:$0xff]
    %v43 = vld [vmem:[#allocation2 + $0x70] sm:$0xff]
    %v44 = vld [vmem:[#allocation2 + $0x78] sm:$0xff]
    %v45 = vand.u32 2147483647, %v29
    %vm46 = vcmp.le.f32.partialorder %v45, 0.7853982
    %vm47 = vcmp.lt.s32.totalorder %v29, 0
    %v48 = vand.u32 %v29, 2139095040
    %v49 = vshrl.u32 %v48, 23
    %v50 = vsub.s32 %v49, 127
    %v51 = vand.u32 2147483647, %v29
    %v52 = vand.u32 %v51, 8388607
    %v53 = vor.u32 %v52, 8388608
    %v54 = vsub.s32 0, %v53
    %v55 = vadd.s32 %v50, 1
    %vm56 = vcmp.gt.s32.totalorder %v55, 0
    %v57 = vsel %vm56, %v55, 0
    %v58 = vshrl.u32 %v57, 5
    %v59 = vand.u32 %v57, 31
    %v60 = vsub.s32 32, %v59
    %v61 = vshrl.u32 683565275, %v60
    %v62 = vshll.u32 683565275, %v59
    %v63 = vshrl.u32 2475754826, %v60
    %v64 = vor.u32 %v62, %v63
    %v65 = vshll.u32 2475754826, %v59
    %v66 = vshrl.u32 2131351028, %v60
    %v67 = vor.u32 %v65, %v66
    %v68 = vshll.u32 2131351028, %v59
    %v69 = vshrl.u32 2102212464, %v60
    %v70 = vor.u32 %v68, %v69
    %v71 = vshll.u32 2102212464, %v59
    %v72 = vshrl.u32 920167782, %v60
    %v73 = vor.u32 %v71, %v72
    %v74 = vshll.u32 920167782, %v59
    %v75 = vshrl.u32 1326507024, %v60
    %v76 = vor.u32 %v74, %v75
    %vm77 = vcmp.lt.s32.totalorder %v58, 1
    %vm78 = vcmp.lt.s32.totalorder %v58, 2
    %vm79 = vcmp.lt.s32.totalorder %v58, 3
    %vm80 = vcmp.lt.s32.totalorder %v58, 4
    %v81 = vsel %vm77, %v61, %v64
    %v82 = vsel %vm80, %v70, 2102212464
    %v83 = vsel %vm79, %v67, %v82
    %v84 = vsel %vm78, %v81, %v83
    %v85 = vsel %vm77, %v64, %v67
    %v86 = vsel %vm80, %v73, 920167782
    %v87 = vsel %vm79, %v70, %v86
    %v88 = vsel %vm78, %v85, %v87
    %v89 = vsel %vm77, %v67, %v70
    %v90 = vsel %vm80, %v76, 1326507024
    %v91 = vsel %vm79, %v73, %v90
    %v92 = vsel %vm78, %v89, %v91
    %v93 = vshll.u32 %v53, 8
    %v94 = vmul.u32.u64.compose %v93, %v92
    %v95 = vextract.low.u32 %v94
    %v96 = vextract.high.u32 %v94
    %v97 = vmul.u32.u64.compose %v93, %v88
    %v98 = vextract.low.u32 %v97
    %v99 = vextract.high.u32 %v97
    %v100 = vmul.u32 %v93, %v84
    %v101 = vadd.s32 %v96, %v98
    %vm102 = vc.u32 %v96, %v98
    %v103 = vadd.s32 %v99, 1
    %v104 = vsel %vm102, %v103, %v99
    %v105 = vadd.s32 %v100, %v104
    %v106 = vadd.s32 %v105, 536870912
    %v107 = vshrl.u32 %v106, 30
    %v108 = vshll.u32 %v107, 30
    %v109 = vsub.s32 %v105, %v108
    %vm110 = vcmp.lt.s32.totalorder %v109, 0
    %v111 = vsub.s32 0, %v109
    %v112 = vsel %vm110, %v111, %v109
    %v113 = vclz %v112
    %v114 = vsub.s32 %v113, 2
    %vm115 = vcmp.gt.s32.totalorder 0, %v114
    %v116 = vsel %vm115, 0, %v114
    %v117 = vsub.s32 32, %v116
    %v118 = vshll.u32 %v109, %v116
    %v119 = vshrl.u32 %v101, %v117
    %v120 = vor.u32 %v118, %v119
    %v121 = vsub.s32 4294967266, %v116
    %v122 = vadd.s32 %v121, 127
    %v123 = vshll.u32 %v122, 23
    %v124 = vor.u32 4788187, %v123
    %v125 = vand.u32 2147483647, %v124
    %v127 = vcvt.s32.f32 %v120
    %v128 = vmul.f32 %v127, %v125
    %v129 = vxor.u32 %v128, 2147483648
    %v130 = vsel %vm47, %v129, %v128
    %v131 = vsub.s32 4, %v107
    %v132 = vsel %vm47, %v131, %v107
    %v133 = vsel %vm46, %v29, %v130
    %v134 = vsel %vm46, 0, %v132
    %v135 = vcosq.f32.pop %v133
    %v136 = vsinq.f32.pop %v133
    %vm137 = vweird.f32 %v29
    %v138 = vadd.s32 %v134, 3
    %v139 = vand.u32 %v138, 3
    %vm140 = vcmp.lt.s32.totalorder %v139, 2
    %vm141 = vcmp.eq.s32.totalorder %v139, 0
    %v142 = vxor.u32 %v136, 2147483648
    %v143 = vsel %vm141, %v135, %v142
    %vm144 = vcmp.eq.s32.totalorder %v139, 2
    %v145 = vxor.u32 %v135, 2147483648
    %v146 = vsel %vm144, %v145, %v136
    %v147 = vsel %vm140, %v143, %v146
    %v148 = vsel %vm137, nan, %v147
    %v149 = vand.u32 2147483647, %v30
    %vm150 = vcmp.le.f32.partialorder %v149, 0.7853982
    %vm151 = vcmp.lt.s32.totalorder %v30, 0
    %v152 = vand.u32 %v30, 2139095040
    %v153 = vshrl.u32 %v152, 23
    %v154 = vsub.s32 %v153, 127
    %v155 = vand.u32 2147483647, %v30
    %v156 = vand.u32 %v155, 8388607
    %v157 = vor.u32 %v156, 8388608
    %v158 = vsub.s32 0, %v157
    %v159 = vadd.s32 %v154, 1
    %vm160 = vcmp.gt.s32.totalorder %v159, 0
    %v161 = vsel %vm160, %v159, 0
    %v162 = vshrl.u32 %v161, 5
    %v163 = vand.u32 %v161, 31
    %v164 = vsub.s32 32, %v163
    %v165 = vshrl.u32 683565275, %v164
    %v166 = vshll.u32 683565275, %v163
    %v167 = vshrl.u32 2475754826, %v164
    %v168 = vor.u32 %v166, %v167
    %v169 = vshll.u32 2475754826, %v163
    %v170 = vshrl.u32 2131351028, %v164
    %v171 = vor.u32 %v169, %v170
    %v172 = vshll.u32 2131351028, %v163
    %v173 = vshrl.u32 2102212464, %v164
    %v174 = vor.u32 %v172, %v173
    %v175 = vshll.u32 2102212464, %v163
    %v176 = vshrl.u32 920167782, %v164
    %v177 = vor.u32 %v175, %v176
    %v178 = vshll.u32 920167782, %v163
    %v179 = vshrl.u32 1326507024, %v164
    %v180 = vor.u32 %v178, %v179
    %vm181 = vcmp.lt.s32.totalorder %v162, 1
    %vm182 = vcmp.lt.s32.totalorder %v162, 2
    %vm183 = vcmp.lt.s32.totalorder %v162, 3
    %vm184 = vcmp.lt.s32.totalorder %v162, 4
    %v185 = vsel %vm181, %v165, %v168
    %v186 = vsel %vm184, %v174, 2102212464
    %v187 = vsel %vm183, %v171, %v186
    %v188 = vsel %vm182, %v185, %v187
    %v189 = vsel %vm181, %v168, %v171
    %v190 = vsel %vm184, %v177, 920167782
    %v191 = vsel %vm183, %v174, %v190
    %v192 = vsel %vm182, %v189, %v191
    %v193 = vsel %vm181, %v171, %v174
    %v194 = vsel %vm184, %v180, 1326507024
    %v195 = vsel %vm183, %v177, %v194
    %v196 = vsel %vm182, %v193, %v195
    %v197 = vshll.u32 %v157, 8
    %v198 = vmul.u32.u64.compose %v197, %v196
    %v199 = vextract.low.u32 %v198
    %v200 = vextract.high.u32 %v198
    %v201 = vmul.u32.u64.compose %v197, %v192
    %v202 = vextract.low.u32 %v201
    %v203 = vextract.high.u32 %v201
    %v204 = vmul.u32 %v197, %v188
    %v205 = vadd.s32 %v200, %v202
    %vm206 = vc.u32 %v200, %v202
    %v207 = vadd.s32 %v203, 1
    %v208 = vsel %vm206, %v207, %v203
    %v209 = vadd.s32 %v204, %v208
    %v210 = vadd.s32 %v209, 536870912
    %v211 = vshrl.u32 %v210, 30
    %v212 = vshll.u32 %v211, 30
    %v213 = vsub.s32 %v209, %v212
    %vm214 = vcmp.lt.s32.totalorder %v213, 0
    %v215 = vsub.s32 0, %v213
    %v216 = vsel %vm214, %v215, %v213
    %v217 = vclz %v216
    %v218 = vsub.s32 %v217, 2
    %vm219 = vcmp.gt.s32.totalorder 0, %v218
    %v220 = vsel %vm219, 0, %v218
    %v221 = vsub.s32 32, %v220
    %v222 = vshll.u32 %v213, %v220
    %v223 = vshrl.u32 %v205, %v221
    %v224 = vor.u32 %v222, %v223
    %v225 = vsub.s32 4294967266, %v220
    %v226 = vadd.s32 %v225, 127
    %v227 = vshll.u32 %v226, 23
    %v228 = vor.u32 4788187, %v227
    %v229 = vand.u32 2147483647, %v228
    %v231 = vcvt.s32.f32 %v224
    %v232 = vmul.f32 %v231, %v229
    %v233 = vxor.u32 %v232, 2147483648
    %v234 = vsel %vm151, %v233, %v232
    %v235 = vsub.s32 4, %v211
    %v236 = vsel %vm151, %v235, %v211
    %v237 = vsel %vm150, %v30, %v234
    %v238 = vsel %vm150, 0, %v236
    %v239 = vcosq.f32.pop %v237
    %v240 = vsinq.f32.pop %v237
    %vm241 = vweird.f32 %v30
    %v242 = vadd.s32 %v238, 3
    %v243 = vand.u32 %v242, 3
    %vm244 = vcmp.lt.s32.totalorder %v243, 2
    %vm245 = vcmp.eq.s32.totalorder %v243, 0
    %v246 = vxor.u32 %v240, 2147483648
    %v247 = vsel %vm245, %v239, %v246
    %vm248 = vcmp.eq.s32.totalorder %v243, 2
    %v249 = vxor.u32 %v239, 2147483648
    %v250 = vsel %vm248, %v249, %v240
    %v251 = vsel %vm244, %v247, %v250
    %v252 = vsel %vm241, nan, %v251
    %v253 = vand.u32 2147483647, %v31
    %vm254 = vcmp.le.f32.partialorder %v253, 0.7853982
    %vm255 = vcmp.lt.s32.totalorder %v31, 0
    %v256 = vand.u32 %v31, 2139095040
    %v257 = vshrl.u32 %v256, 23
    %v258 = vsub.s32 %v257, 127
    %v259 = vand.u32 2147483647, %v31
    %v260 = vand.u32 %v259, 8388607
    %v261 = vor.u32 %v260, 8388608
    %v262 = vsub.s32 0, %v261
    %v263 = vadd.s32 %v258, 1
    %vm264 = vcmp.gt.s32.totalorder %v263, 0
    %v265 = vsel %vm264, %v263, 0
    %v266 = vshrl.u32 %v265, 5
    %v267 = vand.u32 %v265, 31
    %v268 = vsub.s32 32, %v267
    %v269 = vshrl.u32 683565275, %v268
    %v270 = vshll.u32 683565275, %v267
    %v271 = vshrl.u32 2475754826, %v268
    %v272 = vor.u32 %v270, %v271
    %v273 = vshll.u32 2475754826, %v267
    %v274 = vshrl.u32 2131351028, %v268
    %v275 = vor.u32 %v273, %v274
    %v276 = vshll.u32 2131351028, %v267
    %v277 = vshrl.u32 2102212464, %v268
    %v278 = vor.u32 %v276, %v277
    %v279 = vshll.u32 2102212464, %v267
    %v280 = vshrl.u32 920167782, %v268
    %v281 = vor.u32 %v279, %v280
    %v282 = vshll.u32 920167782, %v267
    %v283 = vshrl.u32 1326507024, %v268
    %v284 = vor.u32 %v282, %v283
    %vm285 = vcmp.lt.s32.totalorder %v266, 1
    %vm286 = vcmp.lt.s32.totalorder %v266, 2
    %vm287 = vcmp.lt.s32.totalorder %v266, 3
    %vm288 = vcmp.lt.s32.totalorder %v266, 4
    %v289 = vsel %vm285, %v269, %v272
    %v290 = vsel %vm288, %v278, 2102212464
    %v291 = vsel %vm287, %v275, %v290
    %v292 = vsel %vm286, %v289, %v291
    %v293 = vsel %vm285, %v272, %v275
    %v294 = vsel %vm288, %v281, 920167782
    %v295 = vsel %vm287, %v278, %v294
    %v296 = vsel %vm286, %v293, %v295
    %v297 = vsel %vm285, %v275, %v278
    %v298 = vsel %vm288, %v284, 1326507024
    %v299 = vsel %vm287, %v281, %v298
    %v300 = vsel %vm286, %v297, %v299
    %v301 = vshll.u32 %v261, 8
    %v302 = vmul.u32.u64.compose %v301, %v300
    %v303 = vextract.low.u32 %v302
    %v304 = vextract.high.u32 %v302
    %v305 = vmul.u32.u64.compose %v301, %v296
    %v306 = vextract.low.u32 %v305
    %v307 = vextract.high.u32 %v305
    %v308 = vmul.u32 %v301, %v292
    %v309 = vadd.s32 %v304, %v306
    %vm310 = vc.u32 %v304, %v306
    %v311 = vadd.s32 %v307, 1
    %v312 = vsel %vm310, %v311, %v307
    %v313 = vadd.s32 %v308, %v312
    %v314 = vadd.s32 %v313, 536870912
    %v315 = vshrl.u32 %v314, 30
    %v316 = vshll.u32 %v315, 30
    %v317 = vsub.s32 %v313, %v316
    %vm318 = vcmp.lt.s32.totalorder %v317, 0
    %v319 = vsub.s32 0, %v317
    %v320 = vsel %vm318, %v319, %v317
    %v321 = vclz %v320
    %v322 = vsub.s32 %v321, 2
    %vm323 = vcmp.gt.s32.totalorder 0, %v322
    %v324 = vsel %vm323, 0, %v322
    %v325 = vsub.s32 32, %v324
    %v326 = vshll.u32 %v317, %v324
    %v327 = vshrl.u32 %v309, %v325
    %v328 = vor.u32 %v326, %v327
    %v329 = vsub.s32 4294967266, %v324
    %v330 = vadd.s32 %v329, 127
    %v331 = vshll.u32 %v330, 23
    %v332 = vor.u32 4788187, %v331
    %v333 = vand.u32 2147483647, %v332
    %v335 = vcvt.s32.f32 %v328
    %v336 = vmul.f32 %v335, %v333
    %v337 = vxor.u32 %v336, 2147483648
    %v338 = vsel %vm255, %v337, %v336
    %v339 = vsub.s32 4, %v315
    %v340 = vsel %vm255, %v339, %v315
    %v341 = vsel %vm254, %v31, %v338
    %v342 = vsel %vm254, 0, %v340
    %v343 = vcosq.f32.pop %v341
    %v344 = vsinq.f32.pop %v341
    %vm345 = vweird.f32 %v31
    %v346 = vadd.s32 %v342, 3
    %v347 = vand.u32 %v346, 3
    %vm348 = vcmp.lt.s32.totalorder %v347, 2
    %vm349 = vcmp.eq.s32.totalorder %v347, 0
    %v350 = vxor.u32 %v344, 2147483648
    %v351 = vsel %vm349, %v343, %v350
    %vm352 = vcmp.eq.s32.totalorder %v347, 2
    %v353 = vxor.u32 %v343, 2147483648
    %v354 = vsel %vm352, %v353, %v344
    %v355 = vsel %vm348, %v351, %v354
    %v356 = vsel %vm345, nan, %v355
    %v357 = vand.u32 2147483647, %v32
    %vm358 = vcmp.le.f32.partialorder %v357, 0.7853982
    %vm359 = vcmp.lt.s32.totalorder %v32, 0
    %v360 = vand.u32 %v32, 2139095040
    %v361 = vshrl.u32 %v360, 23
    %v362 = vsub.s32 %v361, 127
    %v363 = vand.u32 2147483647, %v32
    %v364 = vand.u32 %v363, 8388607
    %v365 = vor.u32 %v364, 8388608
    %v366 = vsub.s32 0, %v365
    %v367 = vadd.s32 %v362, 1
    %vm368 = vcmp.gt.s32.totalorder %v367, 0
    %v369 = vsel %vm368, %v367, 0
    %v370 = vshrl.u32 %v369, 5
    %v371 = vand.u32 %v369, 31
    %v372 = vsub.s32 32, %v371
    %v373 = vshrl.u32 683565275, %v372
    %v374 = vshll.u32 683565275, %v371
    %v375 = vshrl.u32 2475754826, %v372
    %v376 = vor.u32 %v374, %v375
    %v377 = vshll.u32 2475754826, %v371
    %v378 = vshrl.u32 2131351028, %v372
    %v379 = vor.u32 %v377, %v378
    %v380 = vshll.u32 2131351028, %v371
    %v381 = vshrl.u32 2102212464, %v372
    %v382 = vor.u32 %v380, %v381
    %v383 = vshll.u32 2102212464, %v371
    %v384 = vshrl.u32 920167782, %v372
    %v385 = vor.u32 %v383, %v384
    %v386 = vshll.u32 920167782, %v371
    %v387 = vshrl.u32 1326507024, %v372
    %v388 = vor.u32 %v386, %v387
    %vm389 = vcmp.lt.s32.totalorder %v370, 1
    %vm390 = vcmp.lt.s32.totalorder %v370, 2
    %vm391 = vcmp.lt.s32.totalorder %v370, 3
    %vm392 = vcmp.lt.s32.totalorder %v370, 4
    %v393 = vsel %vm389, %v373, %v376
    %v394 = vsel %vm392, %v382, 2102212464
    %v395 = vsel %vm391, %v379, %v394
    %v396 = vsel %vm390, %v393, %v395
    %v397 = vsel %vm389, %v376, %v379
    %v398 = vsel %vm392, %v385, 920167782
    %v399 = vsel %vm391, %v382, %v398
    %v400 = vsel %vm390, %v397, %v399
    %v401 = vsel %vm389, %v379, %v382
    %v402 = vsel %vm392, %v388, 1326507024
    %v403 = vsel %vm391, %v385, %v402
    %v404 = vsel %vm390, %v401, %v403
    %v405 = vshll.u32 %v365, 8
    %v406 = vmul.u32.u64.compose %v405, %v404
    %v407 = vextract.low.u32 %v406
    %v408 = vextract.high.u32 %v406
    %v409 = vmul.u32.u64.compose %v405, %v400
    %v410 = vextract.low.u32 %v409
    %v411 = vextract.high.u32 %v409
    %v412 = vmul.u32 %v405, %v396
    %v413 = vadd.s32 %v408, %v410
    %vm414 = vc.u32 %v408, %v410
    %v415 = vadd.s32 %v411, 1
    %v416 = vsel %vm414, %v415, %v411
    %v417 = vadd.s32 %v412, %v416
    %v418 = vadd.s32 %v417, 536870912
    %v419 = vshrl.u32 %v418, 30
    %v420 = vshll.u32 %v419, 30
    %v421 = vsub.s32 %v417, %v420
    %vm422 = vcmp.lt.s32.totalorder %v421, 0
    %v423 = vsub.s32 0, %v421
    %v424 = vsel %vm422, %v423, %v421
    %v425 = vclz %v424
    %v426 = vsub.s32 %v425, 2
    %vm427 = vcmp.gt.s32.totalorder 0, %v426
    %v428 = vsel %vm427, 0, %v426
    %v429 = vsub.s32 32, %v428
    %v430 = vshll.u32 %v421, %v428
    %v431 = vshrl.u32 %v413, %v429
    %v432 = vor.u32 %v430, %v431
    %v433 = vsub.s32 4294967266, %v428
    %v434 = vadd.s32 %v433, 127
    %v435 = vshll.u32 %v434, 23
    %v436 = vor.u32 4788187, %v435
    %v437 = vand.u32 2147483647, %v436
    %v439 = vcvt.s32.f32 %v432
    %v440 = vmul.f32 %v439, %v437
    %v441 = vxor.u32 %v440, 2147483648
    %v442 = vsel %vm359, %v441, %v440
    %v443 = vsub.s32 4, %v419
    %v444 = vsel %vm359, %v443, %v419
    %v445 = vsel %vm358, %v32, %v442
    %v446 = vsel %vm358, 0, %v444
    %v447 = vcosq.f32.pop %v445
    %v448 = vsinq.f32.pop %v445
    %vm449 = vweird.f32 %v32
    %v450 = vadd.s32 %v446, 3
    %v451 = vand.u32 %v450, 3
    %vm452 = vcmp.lt.s32.totalorder %v451, 2
    %vm453 = vcmp.eq.s32.totalorder %v451, 0
    %v454 = vxor.u32 %v448, 2147483648
    %v455 = vsel %vm453, %v447, %v454
    %vm456 = vcmp.eq.s32.totalorder %v451, 2
    %v457 = vxor.u32 %v447, 2147483648
    %v458 = vsel %vm456, %v457, %v448
    %v459 = vsel %vm452, %v455, %v458
    %v460 = vsel %vm449, nan, %v459
    %v461 = vand.u32 2147483647, %v33
    %vm462 = vcmp.le.f32.partialorder %v461, 0.7853982
    %vm463 = vcmp.lt.s32.totalorder %v33, 0
    %v464 = vand.u32 %v33, 2139095040
    %v465 = vshrl.u32 %v464, 23
    %v466 = vsub.s32 %v465, 127
    %v467 = vand.u32 2147483647, %v33
    %v468 = vand.u32 %v467, 8388607
    %v469 = vor.u32 %v468, 8388608
    %v470 = vsub.s32 0, %v469
    %v471 = vadd.s32 %v466, 1
    %vm472 = vcmp.gt.s32.totalorder %v471, 0
    %v473 = vsel %vm472, %v471, 0
    %v474 = vshrl.u32 %v473, 5
    %v475 = vand.u32 %v473, 31
    %v476 = vsub.s32 32, %v475
    %v477 = vshrl.u32 683565275, %v476
    %v478 = vshll.u32 683565275, %v475
    %v479 = vshrl.u32 2475754826, %v476
    %v480 = vor.u32 %v478, %v479
    %v481 = vshll.u32 2475754826, %v475
    %v482 = vshrl.u32 2131351028, %v476
    %v483 = vor.u32 %v481, %v482
    %v484 = vshll.u32 2131351028, %v475
    %v485 = vshrl.u32 2102212464, %v476
    %v486 = vor.u32 %v484, %v485
    %v487 = vshll.u32 2102212464, %v475
    %v488 = vshrl.u32 920167782, %v476
    %v489 = vor.u32 %v487, %v488
    %v490 = vshll.u32 920167782, %v475
    %v491 = vshrl.u32 1326507024, %v476
    %v492 = vor.u32 %v490, %v491
    %vm493 = vcmp.lt.s32.totalorder %v474, 1
    %vm494 = vcmp.lt.s32.totalorder %v474, 2
    %vm495 = vcmp.lt.s32.totalorder %v474, 3
    %vm496 = vcmp.lt.s32.totalorder %v474, 4
    %v497 = vsel %vm493, %v477, %v480
    %v498 = vsel %vm496, %v486, 2102212464
    %v499 = vsel %vm495, %v483, %v498
    %v500 = vsel %vm494, %v497, %v499
    %v501 = vsel %vm493, %v480, %v483
    %v502 = vsel %vm496, %v489, 920167782
    %v503 = vsel %vm495, %v486, %v502
    %v504 = vsel %vm494, %v501, %v503
    %v505 = vsel %vm493, %v483, %v486
    %v506 = vsel %vm496, %v492, 1326507024
    %v507 = vsel %vm495, %v489, %v506
    %v508 = vsel %vm494, %v505, %v507
    %v509 = vshll.u32 %v469, 8
    %v510 = vmul.u32.u64.compose %v509, %v508
    %v511 = vextract.low.u32 %v510
    %v512 = vextract.high.u32 %v510
    %v513 = vmul.u32.u64.compose %v509, %v504
    %v514 = vextract.low.u32 %v513
    %v515 = vextract.high.u32 %v513
    %v516 = vmul.u32 %v509, %v500
    %v517 = vadd.s32 %v512, %v514
    %vm518 = vc.u32 %v512, %v514
    %v519 = vadd.s32 %v515, 1
    %v520 = vsel %vm518, %v519, %v515
    %v521 = vadd.s32 %v516, %v520
    %v522 = vadd.s32 %v521, 536870912
    %v523 = vshrl.u32 %v522, 30
    %v524 = vshll.u32 %v523, 30
    %v525 = vsub.s32 %v521, %v524
    %vm526 = vcmp.lt.s32.totalorder %v525, 0
    %v527 = vsub.s32 0, %v525
    %v528 = vsel %vm526, %v527, %v525
    %v529 = vclz %v528
    %v530 = vsub.s32 %v529, 2
    %vm531 = vcmp.gt.s32.totalorder 0, %v530
    %v532 = vsel %vm531, 0, %v530
    %v533 = vsub.s32 32, %v532
    %v534 = vshll.u32 %v525, %v532
    %v535 = vshrl.u32 %v517, %v533
    %v536 = vor.u32 %v534, %v535
    %v537 = vsub.s32 4294967266, %v532
    %v538 = vadd.s32 %v537, 127
    %v539 = vshll.u32 %v538, 23
    %v540 = vor.u32 4788187, %v539
    %v541 = vand.u32 2147483647, %v540
    %v543 = vcvt.s32.f32 %v536
    %v544 = vmul.f32 %v543, %v541
    %v545 = vxor.u32 %v544, 2147483648
    %v546 = vsel %vm463, %v545, %v544
    %v547 = vsub.s32 4, %v523
    %v548 = vsel %vm463, %v547, %v523
    %v549 = vsel %vm462, %v33, %v546
    %v550 = vsel %vm462, 0, %v548
    %v551 = vcosq.f32.pop %v549
    %v552 = vsinq.f32.pop %v549
    %vm553 = vweird.f32 %v33
    %v554 = vadd.s32 %v550, 3
    %v555 = vand.u32 %v554, 3
    %vm556 = vcmp.lt.s32.totalorder %v555, 2
    %vm557 = vcmp.eq.s32.totalorder %v555, 0
    %v558 = vxor.u32 %v552, 2147483648
    %v559 = vsel %vm557, %v551, %v558
    %vm560 = vcmp.eq.s32.totalorder %v555, 2
    %v561 = vxor.u32 %v551, 2147483648
    %v562 = vsel %vm560, %v561, %v552
    %v563 = vsel %vm556, %v559, %v562
    %v564 = vsel %vm553, nan, %v563
    %v565 = vand.u32 2147483647, %v34
    %vm566 = vcmp.le.f32.partialorder %v565, 0.7853982
    %vm567 = vcmp.lt.s32.totalorder %v34, 0
    %v568 = vand.u32 %v34, 2139095040
    %v569 = vshrl.u32 %v568, 23
    %v570 = vsub.s32 %v569, 127
    %v571 = vand.u32 2147483647, %v34
    %v572 = vand.u32 %v571, 8388607
    %v573 = vor.u32 %v572, 8388608
    %v574 = vsub.s32 0, %v573
    %v575 = vadd.s32 %v570, 1
    %vm576 = vcmp.gt.s32.totalorder %v575, 0
    %v577 = vsel %vm576, %v575, 0
    %v578 = vshrl.u32 %v577, 5
    %v579 = vand.u32 %v577, 31
    %v580 = vsub.s32 32, %v579
    %v581 = vshrl.u32 683565275, %v580
    %v582 = vshll.u32 683565275, %v579
    %v583 = vshrl.u32 2475754826, %v580
    %v584 = vor.u32 %v582, %v583
    %v585 = vshll.u32 2475754826, %v579
    %v586 = vshrl.u32 2131351028, %v580
    %v587 = vor.u32 %v585, %v586
    %v588 = vshll.u32 2131351028, %v579
    %v589 = vshrl.u32 2102212464, %v580
    %v590 = vor.u32 %v588, %v589
    %v591 = vshll.u32 2102212464, %v579
    %v592 = vshrl.u32 920167782, %v580
    %v593 = vor.u32 %v591, %v592
    %v594 = vshll.u32 920167782, %v579
    %v595 = vshrl.u32 1326507024, %v580
    %v596 = vor.u32 %v594, %v595
    %vm597 = vcmp.lt.s32.totalorder %v578, 1
    %vm598 = vcmp.lt.s32.totalorder %v578, 2
    %vm599 = vcmp.lt.s32.totalorder %v578, 3
    %vm600 = vcmp.lt.s32.totalorder %v578, 4
    %v601 = vsel %vm597, %v581, %v584
    %v602 = vsel %vm600, %v590, 2102212464
    %v603 = vsel %vm599, %v587, %v602
    %v604 = vsel %vm598, %v601, %v603
    %v605 = vsel %vm597, %v584, %v587
    %v606 = vsel %vm600, %v593, 920167782
    %v607 = vsel %vm599, %v590, %v606
    %v608 = vsel %vm598, %v605, %v607
    %v609 = vsel %vm597, %v587, %v590
    %v610 = vsel %vm600, %v596, 1326507024
    %v611 = vsel %vm599, %v593, %v610
    %v612 = vsel %vm598, %v609, %v611
    %v613 = vshll.u32 %v573, 8
    %v614 = vmul.u32.u64.compose %v613, %v612
    %v615 = vextract.low.u32 %v614
    %v616 = vextract.high.u32 %v614
    %v617 = vmul.u32.u64.compose %v613, %v608
    %v618 = vextract.low.u32 %v617
    %v619 = vextract.high.u32 %v617
    %v620 = vmul.u32 %v613, %v604
    %v621 = vadd.s32 %v616, %v618
    %vm622 = vc.u32 %v616, %v618
    %v623 = vadd.s32 %v619, 1
    %v624 = vsel %vm622, %v623, %v619
    %v625 = vadd.s32 %v620, %v624
    %v626 = vadd.s32 %v625, 536870912
    %v627 = vshrl.u32 %v626, 30
    %v628 = vshll.u32 %v627, 30
    %v629 = vsub.s32 %v625, %v628
    %vm630 = vcmp.lt.s32.totalorder %v629, 0
    %v631 = vsub.s32 0, %v629
    %v632 = vsel %vm630, %v631, %v629
    %v633 = vclz %v632
    %v634 = vsub.s32 %v633, 2
    %vm635 = vcmp.gt.s32.totalorder 0, %v634
    %v636 = vsel %vm635, 0, %v634
    %v637 = vsub.s32 32, %v636
    %v638 = vshll.u32 %v629, %v636
    %v639 = vshrl.u32 %v621, %v637
    %v640 = vor.u32 %v638, %v639
    %v641 = vsub.s32 4294967266, %v636
    %v642 = vadd.s32 %v641, 127
    %v643 = vshll.u32 %v642, 23
    %v644 = vor.u32 4788187, %v643
    %v645 = vand.u32 2147483647, %v644
    %v647 = vcvt.s32.f32 %v640
    %v648 = vmul.f32 %v647, %v645
    %v649 = vxor.u32 %v648, 2147483648
    %v650 = vsel %vm567, %v649, %v648
    %v651 = vsub.s32 4, %v627
    %v652 = vsel %vm567, %v651, %v627
    %v653 = vsel %vm566, %v34, %v650
    %v654 = vsel %vm566, 0, %v652
    %v655 = vcosq.f32.pop %v653
    %v656 = vsinq.f32.pop %v653
    %vm657 = vweird.f32 %v34
    %v658 = vadd.s32 %v654, 3
    %v659 = vand.u32 %v658, 3
    %vm660 = vcmp.lt.s32.totalorder %v659, 2
    %vm661 = vcmp.eq.s32.totalorder %v659, 0
    %v662 = vxor.u32 %v656, 2147483648
    %v663 = vsel %vm661, %v655, %v662
    %vm664 = vcmp.eq.s32.totalorder %v659, 2
    %v665 = vxor.u32 %v655, 2147483648
    %v666 = vsel %vm664, %v665, %v656
    %v667 = vsel %vm660, %v663, %v666
    %v668 = vsel %vm657, nan, %v667
    %v669 = vand.u32 2147483647, %v35
    %vm670 = vcmp.le.f32.partialorder %v669, 0.7853982
    %vm671 = vcmp.lt.s32.totalorder %v35, 0
    %v672 = vand.u32 %v35, 2139095040
    %v673 = vshrl.u32 %v672, 23
    %v674 = vsub.s32 %v673, 127
    %v675 = vand.u32 2147483647, %v35
    %v676 = vand.u32 %v675, 8388607
    %v677 = vor.u32 %v676, 8388608
    %v678 = vsub.s32 0, %v677
    %v679 = vadd.s32 %v674, 1
    %vm680 = vcmp.gt.s32.totalorder %v679, 0
    %v681 = vsel %vm680, %v679, 0
    %v682 = vshrl.u32 %v681, 5
    %v683 = vand.u32 %v681, 31
    %v684 = vsub.s32 32, %v683
    %v685 = vshrl.u32 683565275, %v684
    %v686 = vshll.u32 683565275, %v683
    %v687 = vshrl.u32 2475754826, %v684
    %v688 = vor.u32 %v686, %v687
    %v689 = vshll.u32 2475754826, %v683
    %v690 = vshrl.u32 2131351028, %v684
    %v691 = vor.u32 %v689, %v690
    %v692 = vshll.u32 2131351028, %v683
    %v693 = vshrl.u32 2102212464, %v684
    %v694 = vor.u32 %v692, %v693
    %v695 = vshll.u32 2102212464, %v683
    %v696 = vshrl.u32 920167782, %v684
    %v697 = vor.u32 %v695, %v696
    %v698 = vshll.u32 920167782, %v683
    %v699 = vshrl.u32 1326507024, %v684
    %v700 = vor.u32 %v698, %v699
    %vm701 = vcmp.lt.s32.totalorder %v682, 1
    %vm702 = vcmp.lt.s32.totalorder %v682, 2
    %vm703 = vcmp.lt.s32.totalorder %v682, 3
    %vm704 = vcmp.lt.s32.totalorder %v682, 4
    %v705 = vsel %vm701, %v685, %v688
    %v706 = vsel %vm704, %v694, 2102212464
    %v707 = vsel %vm703, %v691, %v706
    %v708 = vsel %vm702, %v705, %v707
    %v709 = vsel %vm701, %v688, %v691
    %v710 = vsel %vm704, %v697, 920167782
    %v711 = vsel %vm703, %v694, %v710
    %v712 = vsel %vm702, %v709, %v711
    %v713 = vsel %vm701, %v691, %v694
    %v714 = vsel %vm704, %v700, 1326507024
    %v715 = vsel %vm703, %v697, %v714
    %v716 = vsel %vm702, %v713, %v715
    %v717 = vshll.u32 %v677, 8
    %v718 = vmul.u32.u64.compose %v717, %v716
    %v719 = vextract.low.u32 %v718
    %v720 = vextract.high.u32 %v718
    %v721 = vmul.u32.u64.compose %v717, %v712
    %v722 = vextract.low.u32 %v721
    %v723 = vextract.high.u32 %v721
    %v724 = vmul.u32 %v717, %v708
    %v725 = vadd.s32 %v720, %v722
    %vm726 = vc.u32 %v720, %v722
    %v727 = vadd.s32 %v723, 1
    %v728 = vsel %vm726, %v727, %v723
    %v729 = vadd.s32 %v724, %v728
    %v730 = vadd.s32 %v729, 536870912
    %v731 = vshrl.u32 %v730, 30
    %v732 = vshll.u32 %v731, 30
    %v733 = vsub.s32 %v729, %v732
    %vm734 = vcmp.lt.s32.totalorder %v733, 0
    %v735 = vsub.s32 0, %v733
    %v736 = vsel %vm734, %v735, %v733
    %v737 = vclz %v736
    %v738 = vsub.s32 %v737, 2
    %vm739 = vcmp.gt.s32.totalorder 0, %v738
    %v740 = vsel %vm739, 0, %v738
    %v741 = vsub.s32 32, %v740
    %v742 = vshll.u32 %v733, %v740
    %v743 = vshrl.u32 %v725, %v741
    %v744 = vor.u32 %v742, %v743
    %v745 = vsub.s32 4294967266, %v740
    %v746 = vadd.s32 %v745, 127
    %v747 = vshll.u32 %v746, 23
    %v748 = vor.u32 4788187, %v747
    %v749 = vand.u32 2147483647, %v748
    %v751 = vcvt.s32.f32 %v744
    %v752 = vmul.f32 %v751, %v749
    %v753 = vxor.u32 %v752, 2147483648
    %v754 = vsel %vm671, %v753, %v752
    %v755 = vsub.s32 4, %v731
    %v756 = vsel %vm671, %v755, %v731
    %v757 = vsel %vm670, %v35, %v754
    %v758 = vsel %vm670, 0, %v756
    %v759 = vcosq.f32.pop %v757
    %v760 = vsinq.f32.pop %v757
    %vm761 = vweird.f32 %v35
    %v762 = vadd.s32 %v758, 3
    %v763 = vand.u32 %v762, 3
    %vm764 = vcmp.lt.s32.totalorder %v763, 2
    %vm765 = vcmp.eq.s32.totalorder %v763, 0
    %v766 = vxor.u32 %v760, 2147483648
    %v767 = vsel %vm765, %v759, %v766
    %vm768 = vcmp.eq.s32.totalorder %v763, 2
    %v769 = vxor.u32 %v759, 2147483648
    %v770 = vsel %vm768, %v769, %v760
    %v771 = vsel %vm764, %v767, %v770
    %v772 = vsel %vm761, nan, %v771
    %v773 = vand.u32 2147483647, %v36
    %vm774 = vcmp.le.f32.partialorder %v773, 0.7853982
    %vm775 = vcmp.lt.s32.totalorder %v36, 0
    %v776 = vand.u32 %v36, 2139095040
    %v777 = vshrl.u32 %v776, 23
    %v778 = vsub.s32 %v777, 127
    %v779 = vand.u32 2147483647, %v36
    %v780 = vand.u32 %v779, 8388607
    %v781 = vor.u32 %v780, 8388608
    %v782 = vsub.s32 0, %v781
    %v783 = vadd.s32 %v778, 1
    %vm784 = vcmp.gt.s32.totalorder %v783, 0
    %v785 = vsel %vm784, %v783, 0
    %v786 = vshrl.u32 %v785, 5
    %v787 = vand.u32 %v785, 31
    %v788 = vsub.s32 32, %v787
    %v789 = vshrl.u32 683565275, %v788
    %v790 = vshll.u32 683565275, %v787
    %v791 = vshrl.u32 2475754826, %v788
    %v792 = vor.u32 %v790, %v791
    %v793 = vshll.u32 2475754826, %v787
    %v794 = vshrl.u32 2131351028, %v788
    %v795 = vor.u32 %v793, %v794
    %v796 = vshll.u32 2131351028, %v787
    %v797 = vshrl.u32 2102212464, %v788
    %v798 = vor.u32 %v796, %v797
    %v799 = vshll.u32 2102212464, %v787
    %v800 = vshrl.u32 920167782, %v788
    %v801 = vor.u32 %v799, %v800
    %v802 = vshll.u32 920167782, %v787
    %v803 = vshrl.u32 1326507024, %v788
    %v804 = vor.u32 %v802, %v803
    %vm805 = vcmp.lt.s32.totalorder %v786, 1
    %vm806 = vcmp.lt.s32.totalorder %v786, 2
    %vm807 = vcmp.lt.s32.totalorder %v786, 3
    %vm808 = vcmp.lt.s32.totalorder %v786, 4
    %v809 = vsel %vm805, %v789, %v792
    %v810 = vsel %vm808, %v798, 2102212464
    %v811 = vsel %vm807, %v795, %v810
    %v812 = vsel %vm806, %v809, %v811
    %v813 = vsel %vm805, %v792, %v795
    %v814 = vsel %vm808, %v801, 920167782
    %v815 = vsel %vm807, %v798, %v814
    %v816 = vsel %vm806, %v813, %v815
    %v817 = vsel %vm805, %v795, %v798
    %v818 = vsel %vm808, %v804, 1326507024
    %v819 = vsel %vm807, %v801, %v818
    %v820 = vsel %vm806, %v817, %v819
    %v821 = vshll.u32 %v781, 8
    %v822 = vmul.u32.u64.compose %v821, %v820
    %v823 = vextract.low.u32 %v822
    %v824 = vextract.high.u32 %v822
    %v825 = vmul.u32.u64.compose %v821, %v816
    %v826 = vextract.low.u32 %v825
    %v827 = vextract.high.u32 %v825
    %v828 = vmul.u32 %v821, %v812
    %v829 = vadd.s32 %v824, %v826
    %vm830 = vc.u32 %v824, %v826
    %v831 = vadd.s32 %v827, 1
    %v832 = vsel %vm830, %v831, %v827
    %v833 = vadd.s32 %v828, %v832
    %v834 = vadd.s32 %v833, 536870912
    %v835 = vshrl.u32 %v834, 30
    %v836 = vshll.u32 %v835, 30
    %v837 = vsub.s32 %v833, %v836
    %vm838 = vcmp.lt.s32.totalorder %v837, 0
    %v839 = vsub.s32 0, %v837
    %v840 = vsel %vm838, %v839, %v837
    %v841 = vclz %v840
    %v842 = vsub.s32 %v841, 2
    %vm843 = vcmp.gt.s32.totalorder 0, %v842
    %v844 = vsel %vm843, 0, %v842
    %v845 = vsub.s32 32, %v844
    %v846 = vshll.u32 %v837, %v844
    %v847 = vshrl.u32 %v829, %v845
    %v848 = vor.u32 %v846, %v847
    %v849 = vsub.s32 4294967266, %v844
    %v850 = vadd.s32 %v849, 127
    %v851 = vshll.u32 %v850, 23
    %v852 = vor.u32 4788187, %v851
    %v853 = vand.u32 2147483647, %v852
    %v855 = vcvt.s32.f32 %v848
    %v856 = vmul.f32 %v855, %v853
    %v857 = vxor.u32 %v856, 2147483648
    %v858 = vsel %vm775, %v857, %v856
    %v859 = vsub.s32 4, %v835
    %v860 = vsel %vm775, %v859, %v835
    %v861 = vsel %vm774, %v36, %v858
    %v862 = vsel %vm774, 0, %v860
    %v863 = vcosq.f32.pop %v861
    %v864 = vsinq.f32.pop %v861
    %vm865 = vweird.f32 %v36
    %v866 = vadd.s32 %v862, 3
    %v867 = vand.u32 %v866, 3
    %vm868 = vcmp.lt.s32.totalorder %v867, 2
    %vm869 = vcmp.eq.s32.totalorder %v867, 0
    %v870 = vxor.u32 %v864, 2147483648
    %v871 = vsel %vm869, %v863, %v870
    %vm872 = vcmp.eq.s32.totalorder %v867, 2
    %v873 = vxor.u32 %v863, 2147483648
    %v874 = vsel %vm872, %v873, %v864
    %v875 = vsel %vm868, %v871, %v874
    %v876 = vsel %vm865, nan, %v875
    %v877 = vand.u32 2147483647, %v37
    %vm878 = vcmp.le.f32.partialorder %v877, 0.7853982
    %vm879 = vcmp.lt.s32.totalorder %v37, 0
    %v880 = vand.u32 %v37, 2139095040
    %v881 = vshrl.u32 %v880, 23
    %v882 = vsub.s32 %v881, 127
    %v883 = vand.u32 2147483647, %v37
    %v884 = vand.u32 %v883, 8388607
    %v885 = vor.u32 %v884, 8388608
    %v886 = vsub.s32 0, %v885
    %v887 = vadd.s32 %v882, 1
    %vm888 = vcmp.gt.s32.totalorder %v887, 0
    %v889 = vsel %vm888, %v887, 0
    %v890 = vshrl.u32 %v889, 5
    %v891 = vand.u32 %v889, 31
    %v892 = vsub.s32 32, %v891
    %v893 = vshrl.u32 683565275, %v892
    %v894 = vshll.u32 683565275, %v891
    %v895 = vshrl.u32 2475754826, %v892
    %v896 = vor.u32 %v894, %v895
    %v897 = vshll.u32 2475754826, %v891
    %v898 = vshrl.u32 2131351028, %v892
    %v899 = vor.u32 %v897, %v898
    %v900 = vshll.u32 2131351028, %v891
    %v901 = vshrl.u32 2102212464, %v892
    %v902 = vor.u32 %v900, %v901
    %v903 = vshll.u32 2102212464, %v891
    %v904 = vshrl.u32 920167782, %v892
    %v905 = vor.u32 %v903, %v904
    %v906 = vshll.u32 920167782, %v891
    %v907 = vshrl.u32 1326507024, %v892
    %v908 = vor.u32 %v906, %v907
    %vm909 = vcmp.lt.s32.totalorder %v890, 1
    %vm910 = vcmp.lt.s32.totalorder %v890, 2
    %vm911 = vcmp.lt.s32.totalorder %v890, 3
    %vm912 = vcmp.lt.s32.totalorder %v890, 4
    %v913 = vsel %vm909, %v893, %v896
    %v914 = vsel %vm912, %v902, 2102212464
    %v915 = vsel %vm911, %v899, %v914
    %v916 = vsel %vm910, %v913, %v915
    %v917 = vsel %vm909, %v896, %v899
    %v918 = vsel %vm912, %v905, 920167782
    %v919 = vsel %vm911, %v902, %v918
    %v920 = vsel %vm910, %v917, %v919
    %v921 = vsel %vm909, %v899, %v902
    %v922 = vsel %vm912, %v908, 1326507024
    %v923 = vsel %vm911, %v905, %v922
    %v924 = vsel %vm910, %v921, %v923
    %v925 = vshll.u32 %v885, 8
    %v926 = vmul.u32.u64.compose %v925, %v924
    %v927 = vextract.low.u32 %v926
    %v928 = vextract.high.u32 %v926
    %v929 = vmul.u32.u64.compose %v925, %v920
    %v930 = vextract.low.u32 %v929
    %v931 = vextract.high.u32 %v929
    %v932 = vmul.u32 %v925, %v916
    %v933 = vadd.s32 %v928, %v930
    %vm934 = vc.u32 %v928, %v930
    %v935 = vadd.s32 %v931, 1
    %v936 = vsel %vm934, %v935, %v931
    %v937 = vadd.s32 %v932, %v936
    %v938 = vadd.s32 %v937, 536870912
    %v939 = vshrl.u32 %v938, 30
    %v940 = vshll.u32 %v939, 30
    %v941 = vsub.s32 %v937, %v940
    %vm942 = vcmp.lt.s32.totalorder %v941, 0
    %v943 = vsub.s32 0, %v941
    %v944 = vsel %vm942, %v943, %v941
    %v945 = vclz %v944
    %v946 = vsub.s32 %v945, 2
    %vm947 = vcmp.gt.s32.totalorder 0, %v946
    %v948 = vsel %vm947, 0, %v946
    %v949 = vsub.s32 32, %v948
    %v950 = vshll.u32 %v941, %v948
    %v951 = vshrl.u32 %v933, %v949
    %v952 = vor.u32 %v950, %v951
    %v953 = vsub.s32 4294967266, %v948
    %v954 = vadd.s32 %v953, 127
    %v955 = vshll.u32 %v954, 23
    %v956 = vor.u32 4788187, %v955
    %v957 = vand.u32 2147483647, %v956
    %v959 = vcvt.s32.f32 %v952
    %v960 = vmul.f32 %v959, %v957
    %v961 = vxor.u32 %v960, 2147483648
    %v962 = vsel %vm879, %v961, %v960
    %v963 = vsub.s32 4, %v939
    %v964 = vsel %vm879, %v963, %v939
    %v965 = vsel %vm878, %v37, %v962
    %v966 = vsel %vm878, 0, %v964
    %v967 = vcosq.f32.pop %v965
    %v968 = vsinq.f32.pop %v965
    %vm969 = vweird.f32 %v37
    %v970 = vadd.s32 %v966, 3
    %v971 = vand.u32 %v970, 3
    %vm972 = vcmp.lt.s32.totalorder %v971, 2
    %vm973 = vcmp.eq.s32.totalorder %v971, 0
    %v974 = vxor.u32 %v968, 2147483648
    %v975 = vsel %vm973, %v967, %v974
    %vm976 = vcmp.eq.s32.totalorder %v971, 2
    %v977 = vxor.u32 %v967, 2147483648
    %v978 = vsel %vm976, %v977, %v968
    %v979 = vsel %vm972, %v975, %v978
    %v980 = vsel %vm969, nan, %v979
    %v981 = vand.u32 2147483647, %v38
    %vm982 = vcmp.le.f32.partialorder %v981, 0.7853982
    %vm983 = vcmp.lt.s32.totalorder %v38, 0
    %v984 = vand.u32 %v38, 2139095040
    %v985 = vshrl.u32 %v984, 23
    %v986 = vsub.s32 %v985, 127
    %v987 = vand.u32 2147483647, %v38
    %v988 = vand.u32 %v987, 8388607
    %v989 = vor.u32 %v988, 8388608
    %v990 = vsub.s32 0, %v989
    %v991 = vadd.s32 %v986, 1
    %vm992 = vcmp.gt.s32.totalorder %v991, 0
    %v993 = vsel %vm992, %v991, 0
    %v994 = vshrl.u32 %v993, 5
    %v995 = vand.u32 %v993, 31
    %v996 = vsub.s32 32, %v995
    %v997 = vshrl.u32 683565275, %v996
    %v998 = vshll.u32 683565275, %v995
    %v999 = vshrl.u32 2475754826, %v996
    %v1000 = vor.u32 %v998, %v999
    %v1001 = vshll.u32 2475754826, %v995
    %v1002 = vshrl.u32 2131351028, %v996
    %v1003 = vor.u32 %v1001, %v1002
    %v1004 = vshll.u32 2131351028, %v995
    %v1005 = vshrl.u32 2102212464, %v996
    %v1006 = vor.u32 %v1004, %v1005
    %v1007 = vshll.u32 2102212464, %v995
    %v1008 = vshrl.u32 920167782, %v996
    %v1009 = vor.u32 %v1007, %v1008
    %v1010 = vshll.u32 920167782, %v995
    %v1011 = vshrl.u32 1326507024, %v996
    %v1012 = vor.u32 %v1010, %v1011
    %vm1013 = vcmp.lt.s32.totalorder %v994, 1
    %vm1014 = vcmp.lt.s32.totalorder %v994, 2
    %vm1015 = vcmp.lt.s32.totalorder %v994, 3
    %vm1016 = vcmp.lt.s32.totalorder %v994, 4
    %v1017 = vsel %vm1013, %v997, %v1000
    %v1018 = vsel %vm1016, %v1006, 2102212464
    %v1019 = vsel %vm1015, %v1003, %v1018
    %v1020 = vsel %vm1014, %v1017, %v1019
    %v1021 = vsel %vm1013, %v1000, %v1003
    %v1022 = vsel %vm1016, %v1009, 920167782
    %v1023 = vsel %vm1015, %v1006, %v1022
    %v1024 = vsel %vm1014, %v1021, %v1023
    %v1025 = vsel %vm1013, %v1003, %v1006
    %v1026 = vsel %vm1016, %v1012, 1326507024
    %v1027 = vsel %vm1015, %v1009, %v1026
    %v1028 = vsel %vm1014, %v1025, %v1027
    %v1029 = vshll.u32 %v989, 8
    %v1030 = vmul.u32.u64.compose %v1029, %v1028
    %v1031 = vextract.low.u32 %v1030
    %v1032 = vextract.high.u32 %v1030
    %v1033 = vmul.u32.u64.compose %v1029, %v1024
    %v1034 = vextract.low.u32 %v1033
    %v1035 = vextract.high.u32 %v1033
    %v1036 = vmul.u32 %v1029, %v1020
    %v1037 = vadd.s32 %v1032, %v1034
    %vm1038 = vc.u32 %v1032, %v1034
    %v1039 = vadd.s32 %v1035, 1
    %v1040 = vsel %vm1038, %v1039, %v1035
    %v1041 = vadd.s32 %v1036, %v1040
    %v1042 = vadd.s32 %v1041, 536870912
    %v1043 = vshrl.u32 %v1042, 30
    %v1044 = vshll.u32 %v1043, 30
    %v1045 = vsub.s32 %v1041, %v1044
    %vm1046 = vcmp.lt.s32.totalorder %v1045, 0
    %v1047 = vsub.s32 0, %v1045
    %v1048 = vsel %vm1046, %v1047, %v1045
    %v1049 = vclz %v1048
    %v1050 = vsub.s32 %v1049, 2
    %vm1051 = vcmp.gt.s32.totalorder 0, %v1050
    %v1052 = vsel %vm1051, 0, %v1050
    %v1053 = vsub.s32 32, %v1052
    %v1054 = vshll.u32 %v1045, %v1052
    %v1055 = vshrl.u32 %v1037, %v1053
    %v1056 = vor.u32 %v1054, %v1055
    %v1057 = vsub.s32 4294967266, %v1052
    %v1058 = vadd.s32 %v1057, 127
    %v1059 = vshll.u32 %v1058, 23
    %v1060 = vor.u32 4788187, %v1059
    %v1061 = vand.u32 2147483647, %v1060
    %v1063 = vcvt.s32.f32 %v1056
    %v1064 = vmul.f32 %v1063, %v1061
    %v1065 = vxor.u32 %v1064, 2147483648
    %v1066 = vsel %vm983, %v1065, %v1064
    %v1067 = vsub.s32 4, %v1043
    %v1068 = vsel %vm983, %v1067, %v1043
    %v1069 = vsel %vm982, %v38, %v1066
    %v1070 = vsel %vm982, 0, %v1068
    %v1071 = vcosq.f32.pop %v1069
    %v1072 = vsinq.f32.pop %v1069
    %vm1073 = vweird.f32 %v38
    %v1074 = vadd.s32 %v1070, 3
    %v1075 = vand.u32 %v1074, 3
    %vm1076 = vcmp.lt.s32.totalorder %v1075, 2
    %vm1077 = vcmp.eq.s32.totalorder %v1075, 0
    %v1078 = vxor.u32 %v1072, 2147483648
    %v1079 = vsel %vm1077, %v1071, %v1078
    %vm1080 = vcmp.eq.s32.totalorder %v1075, 2
    %v1081 = vxor.u32 %v1071, 2147483648
    %v1082 = vsel %vm1080, %v1081, %v1072
    %v1083 = vsel %vm1076, %v1079, %v1082
    %v1084 = vsel %vm1073, nan, %v1083
    %v1085 = vand.u32 2147483647, %v39
    %vm1086 = vcmp.le.f32.partialorder %v1085, 0.7853982
    %vm1087 = vcmp.lt.s32.totalorder %v39, 0
    %v1088 = vand.u32 %v39, 2139095040
    %v1089 = vshrl.u32 %v1088, 23
    %v1090 = vsub.s32 %v1089, 127
    %v1091 = vand.u32 2147483647, %v39
    %v1092 = vand.u32 %v1091, 8388607
    %v1093 = vor.u32 %v1092, 8388608
    %v1094 = vsub.s32 0, %v1093
    %v1095 = vadd.s32 %v1090, 1
    %vm1096 = vcmp.gt.s32.totalorder %v1095, 0
    %v1097 = vsel %vm1096, %v1095, 0
    %v1098 = vshrl.u32 %v1097, 5
    %v1099 = vand.u32 %v1097, 31
    %v1100 = vsub.s32 32, %v1099
    %v1101 = vshrl.u32 683565275, %v1100
    %v1102 = vshll.u32 683565275, %v1099
    %v1103 = vshrl.u32 2475754826, %v1100
    %v1104 = vor.u32 %v1102, %v1103
    %v1105 = vshll.u32 2475754826, %v1099
    %v1106 = vshrl.u32 2131351028, %v1100
    %v1107 = vor.u32 %v1105, %v1106
    %v1108 = vshll.u32 2131351028, %v1099
    %v1109 = vshrl.u32 2102212464, %v1100
    %v1110 = vor.u32 %v1108, %v1109
    %v1111 = vshll.u32 2102212464, %v1099
    %v1112 = vshrl.u32 920167782, %v1100
    %v1113 = vor.u32 %v1111, %v1112
    %v1114 = vshll.u32 920167782, %v1099
    %v1115 = vshrl.u32 1326507024, %v1100
    %v1116 = vor.u32 %v1114, %v1115
    %vm1117 = vcmp.lt.s32.totalorder %v1098, 1
    %vm1118 = vcmp.lt.s32.totalorder %v1098, 2
    %vm1119 = vcmp.lt.s32.totalorder %v1098, 3
    %vm1120 = vcmp.lt.s32.totalorder %v1098, 4
    %v1121 = vsel %vm1117, %v1101, %v1104
    %v1122 = vsel %vm1120, %v1110, 2102212464
    %v1123 = vsel %vm1119, %v1107, %v1122
    %v1124 = vsel %vm1118, %v1121, %v1123
    %v1125 = vsel %vm1117, %v1104, %v1107
    %v1126 = vsel %vm1120, %v1113, 920167782
    %v1127 = vsel %vm1119, %v1110, %v1126
    %v1128 = vsel %vm1118, %v1125, %v1127
    %v1129 = vsel %vm1117, %v1107, %v1110
    %v1130 = vsel %vm1120, %v1116, 1326507024
    %v1131 = vsel %vm1119, %v1113, %v1130
    %v1132 = vsel %vm1118, %v1129, %v1131
    %v1133 = vshll.u32 %v1093, 8
    %v1134 = vmul.u32.u64.compose %v1133, %v1132
    %v1135 = vextract.low.u32 %v1134
    %v1136 = vextract.high.u32 %v1134
    %v1137 = vmul.u32.u64.compose %v1133, %v1128
    %v1138 = vextract.low.u32 %v1137
    %v1139 = vextract.high.u32 %v1137
    %v1140 = vmul.u32 %v1133, %v1124
    %v1141 = vadd.s32 %v1136, %v1138
    %vm1142 = vc.u32 %v1136, %v1138
    %v1143 = vadd.s32 %v1139, 1
    %v1144 = vsel %vm1142, %v1143, %v1139
    %v1145 = vadd.s32 %v1140, %v1144
    %v1146 = vadd.s32 %v1145, 536870912
    %v1147 = vshrl.u32 %v1146, 30
    %v1148 = vshll.u32 %v1147, 30
    %v1149 = vsub.s32 %v1145, %v1148
    %vm1150 = vcmp.lt.s32.totalorder %v1149, 0
    %v1151 = vsub.s32 0, %v1149
    %v1152 = vsel %vm1150, %v1151, %v1149
    %v1153 = vclz %v1152
    %v1154 = vsub.s32 %v1153, 2
    %vm1155 = vcmp.gt.s32.totalorder 0, %v1154
    %v1156 = vsel %vm1155, 0, %v1154
    %v1157 = vsub.s32 32, %v1156
    %v1158 = vshll.u32 %v1149, %v1156
    %v1159 = vshrl.u32 %v1141, %v1157
    %v1160 = vor.u32 %v1158, %v1159
    %v1161 = vsub.s32 4294967266, %v1156
    %v1162 = vadd.s32 %v1161, 127
    %v1163 = vshll.u32 %v1162, 23
    %v1164 = vor.u32 4788187, %v1163
    %v1165 = vand.u32 2147483647, %v1164
    %v1167 = vcvt.s32.f32 %v1160
    %v1168 = vmul.f32 %v1167, %v1165
    %v1169 = vxor.u32 %v1168, 2147483648
    %v1170 = vsel %vm1087, %v1169, %v1168
    %v1171 = vsub.s32 4, %v1147
    %v1172 = vsel %vm1087, %v1171, %v1147
    %v1173 = vsel %vm1086, %v39, %v1170
    %v1174 = vsel %vm1086, 0, %v1172
    %v1175 = vcosq.f32.pop %v1173
    %v1176 = vsinq.f32.pop %v1173
    %vm1177 = vweird.f32 %v39
    %v1178 = vadd.s32 %v1174, 3
    %v1179 = vand.u32 %v1178, 3
    %vm1180 = vcmp.lt.s32.totalorder %v1179, 2
    %vm1181 = vcmp.eq.s32.totalorder %v1179, 0
    %v1182 = vxor.u32 %v1176, 2147483648
    %v1183 = vsel %vm1181, %v1175, %v1182
    %vm1184 = vcmp.eq.s32.totalorder %v1179, 2
    %v1185 = vxor.u32 %v1175, 2147483648
    %v1186 = vsel %vm1184, %v1185, %v1176
    %v1187 = vsel %vm1180, %v1183, %v1186
    %v1188 = vsel %vm1177, nan, %v1187
    %v1189 = vand.u32 2147483647, %v40
    %vm1190 = vcmp.le.f32.partialorder %v1189, 0.7853982
    %vm1191 = vcmp.lt.s32.totalorder %v40, 0
    %v1192 = vand.u32 %v40, 2139095040
    %v1193 = vshrl.u32 %v1192, 23
    %v1194 = vsub.s32 %v1193, 127
    %v1195 = vand.u32 2147483647, %v40
    %v1196 = vand.u32 %v1195, 8388607
    %v1197 = vor.u32 %v1196, 8388608
    %v1198 = vsub.s32 0, %v1197
    %v1199 = vadd.s32 %v1194, 1
    %vm1200 = vcmp.gt.s32.totalorder %v1199, 0
    %v1201 = vsel %vm1200, %v1199, 0
    %v1202 = vshrl.u32 %v1201, 5
    %v1203 = vand.u32 %v1201, 31
    %v1204 = vsub.s32 32, %v1203
    %v1205 = vshrl.u32 683565275, %v1204
    %v1206 = vshll.u32 683565275, %v1203
    %v1207 = vshrl.u32 2475754826, %v1204
    %v1208 = vor.u32 %v1206, %v1207
    %v1209 = vshll.u32 2475754826, %v1203
    %v1210 = vshrl.u32 2131351028, %v1204
    %v1211 = vor.u32 %v1209, %v1210
    %v1212 = vshll.u32 2131351028, %v1203
    %v1213 = vshrl.u32 2102212464, %v1204
    %v1214 = vor.u32 %v1212, %v1213
    %v1215 = vshll.u32 2102212464, %v1203
    %v1216 = vshrl.u32 920167782, %v1204
    %v1217 = vor.u32 %v1215, %v1216
    %v1218 = vshll.u32 920167782, %v1203
    %v1219 = vshrl.u32 1326507024, %v1204
    %v1220 = vor.u32 %v1218, %v1219
    %vm1221 = vcmp.lt.s32.totalorder %v1202, 1
    %vm1222 = vcmp.lt.s32.totalorder %v1202, 2
    %vm1223 = vcmp.lt.s32.totalorder %v1202, 3
    %vm1224 = vcmp.lt.s32.totalorder %v1202, 4
    %v1225 = vsel %vm1221, %v1205, %v1208
    %v1226 = vsel %vm1224, %v1214, 2102212464
    %v1227 = vsel %vm1223, %v1211, %v1226
    %v1228 = vsel %vm1222, %v1225, %v1227
    %v1229 = vsel %vm1221, %v1208, %v1211
    %v1230 = vsel %vm1224, %v1217, 920167782
    %v1231 = vsel %vm1223, %v1214, %v1230
    %v1232 = vsel %vm1222, %v1229, %v1231
    %v1233 = vsel %vm1221, %v1211, %v1214
    %v1234 = vsel %vm1224, %v1220, 1326507024
    %v1235 = vsel %vm1223, %v1217, %v1234
    %v1236 = vsel %vm1222, %v1233, %v1235
    %v1237 = vshll.u32 %v1197, 8
    %v1238 = vmul.u32.u64.compose %v1237, %v1236
    %v1239 = vextract.low.u32 %v1238
    %v1240 = vextract.high.u32 %v1238
    %v1241 = vmul.u32.u64.compose %v1237, %v1232
    %v1242 = vextract.low.u32 %v1241
    %v1243 = vextract.high.u32 %v1241
    %v1244 = vmul.u32 %v1237, %v1228
    %v1245 = vadd.s32 %v1240, %v1242
    %vm1246 = vc.u32 %v1240, %v1242
    %v1247 = vadd.s32 %v1243, 1
    %v1248 = vsel %vm1246, %v1247, %v1243
    %v1249 = vadd.s32 %v1244, %v1248
    %v1250 = vadd.s32 %v1249, 536870912
    %v1251 = vshrl.u32 %v1250, 30
    %v1252 = vshll.u32 %v1251, 30
    %v1253 = vsub.s32 %v1249, %v1252
    %vm1254 = vcmp.lt.s32.totalorder %v1253, 0
    %v1255 = vsub.s32 0, %v1253
    %v1256 = vsel %vm1254, %v1255, %v1253
    %v1257 = vclz %v1256
    %v1258 = vsub.s32 %v1257, 2
    %vm1259 = vcmp.gt.s32.totalorder 0, %v1258
    %v1260 = vsel %vm1259, 0, %v1258
    %v1261 = vsub.s32 32, %v1260
    %v1262 = vshll.u32 %v1253, %v1260
    %v1263 = vshrl.u32 %v1245, %v1261
    %v1264 = vor.u32 %v1262, %v1263
    %v1265 = vsub.s32 4294967266, %v1260
    %v1266 = vadd.s32 %v1265, 127
    %v1267 = vshll.u32 %v1266, 23
    %v1268 = vor.u32 4788187, %v1267
    %v1269 = vand.u32 2147483647, %v1268
    %v1271 = vcvt.s32.f32 %v1264
    %v1272 = vmul.f32 %v1271, %v1269
    %v1273 = vxor.u32 %v1272, 2147483648
    %v1274 = vsel %vm1191, %v1273, %v1272
    %v1275 = vsub.s32 4, %v1251
    %v1276 = vsel %vm1191, %v1275, %v1251
    %v1277 = vsel %vm1190, %v40, %v1274
    %v1278 = vsel %vm1190, 0, %v1276
    %v1279 = vcosq.f32.pop %v1277
    %v1280 = vsinq.f32.pop %v1277
    %vm1281 = vweird.f32 %v40
    %v1282 = vadd.s32 %v1278, 3
    %v1283 = vand.u32 %v1282, 3
    %vm1284 = vcmp.lt.s32.totalorder %v1283, 2
    %vm1285 = vcmp.eq.s32.totalorder %v1283, 0
    %v1286 = vxor.u32 %v1280, 2147483648
    %v1287 = vsel %vm1285, %v1279, %v1286
    %vm1288 = vcmp.eq.s32.totalorder %v1283, 2
    %v1289 = vxor.u32 %v1279, 2147483648
    %v1290 = vsel %vm1288, %v1289, %v1280
    %v1291 = vsel %vm1284, %v1287, %v1290
    %v1292 = vsel %vm1281, nan, %v1291
    %v1293 = vand.u32 2147483647, %v41
    %vm1294 = vcmp.le.f32.partialorder %v1293, 0.7853982
    %vm1295 = vcmp.lt.s32.totalorder %v41, 0
    %v1296 = vand.u32 %v41, 2139095040
    %v1297 = vshrl.u32 %v1296, 23
    %v1298 = vsub.s32 %v1297, 127
    %v1299 = vand.u32 2147483647, %v41
    %v1300 = vand.u32 %v1299, 8388607
    %v1301 = vor.u32 %v1300, 8388608
    %v1302 = vsub.s32 0, %v1301
    %v1303 = vadd.s32 %v1298, 1
    %vm1304 = vcmp.gt.s32.totalorder %v1303, 0
    %v1305 = vsel %vm1304, %v1303, 0
    %v1306 = vshrl.u32 %v1305, 5
    %v1307 = vand.u32 %v1305, 31
    %v1308 = vsub.s32 32, %v1307
    %v1309 = vshrl.u32 683565275, %v1308
    %v1310 = vshll.u32 683565275, %v1307
    %v1311 = vshrl.u32 2475754826, %v1308
    %v1312 = vor.u32 %v1310, %v1311
    %v1313 = vshll.u32 2475754826, %v1307
    %v1314 = vshrl.u32 2131351028, %v1308
    %v1315 = vor.u32 %v1313, %v1314
    %v1316 = vshll.u32 2131351028, %v1307
    %v1317 = vshrl.u32 2102212464, %v1308
    %v1318 = vor.u32 %v1316, %v1317
    %v1319 = vshll.u32 2102212464, %v1307
    %v1320 = vshrl.u32 920167782, %v1308
    %v1321 = vor.u32 %v1319, %v1320
    %v1322 = vshll.u32 920167782, %v1307
    %v1323 = vshrl.u32 1326507024, %v1308
    %v1324 = vor.u32 %v1322, %v1323
    %vm1325 = vcmp.lt.s32.totalorder %v1306, 1
    %vm1326 = vcmp.lt.s32.totalorder %v1306, 2
    %vm1327 = vcmp.lt.s32.totalorder %v1306, 3
    %vm1328 = vcmp.lt.s32.totalorder %v1306, 4
    %v1329 = vsel %vm1325, %v1309, %v1312
    %v1330 = vsel %vm1328, %v1318, 2102212464
    %v1331 = vsel %vm1327, %v1315, %v1330
    %v1332 = vsel %vm1326, %v1329, %v1331
    %v1333 = vsel %vm1325, %v1312, %v1315
    %v1334 = vsel %vm1328, %v1321, 920167782
    %v1335 = vsel %vm1327, %v1318, %v1334
    %v1336 = vsel %vm1326, %v1333, %v1335
    %v1337 = vsel %vm1325, %v1315, %v1318
    %v1338 = vsel %vm1328, %v1324, 1326507024
    %v1339 = vsel %vm1327, %v1321, %v1338
    %v1340 = vsel %vm1326, %v1337, %v1339
    %v1341 = vshll.u32 %v1301, 8
    %v1342 = vmul.u32.u64.compose %v1341, %v1340
    %v1343 = vextract.low.u32 %v1342
    %v1344 = vextract.high.u32 %v1342
    %v1345 = vmul.u32.u64.compose %v1341, %v1336
    %v1346 = vextract.low.u32 %v1345
    %v1347 = vextract.high.u32 %v1345
    %v1348 = vmul.u32 %v1341, %v1332
    %v1349 = vadd.s32 %v1344, %v1346
    %vm1350 = vc.u32 %v1344, %v1346
    %v1351 = vadd.s32 %v1347, 1
    %v1352 = vsel %vm1350, %v1351, %v1347
    %v1353 = vadd.s32 %v1348, %v1352
    %v1354 = vadd.s32 %v1353, 536870912
    %v1355 = vshrl.u32 %v1354, 30
    %v1356 = vshll.u32 %v1355, 30
    %v1357 = vsub.s32 %v1353, %v1356
    %vm1358 = vcmp.lt.s32.totalorder %v1357, 0
    %v1359 = vsub.s32 0, %v1357
    %v1360 = vsel %vm1358, %v1359, %v1357
    %v1361 = vclz %v1360
    %v1362 = vsub.s32 %v1361, 2
    %vm1363 = vcmp.gt.s32.totalorder 0, %v1362
    %v1364 = vsel %vm1363, 0, %v1362
    %v1365 = vsub.s32 32, %v1364
    %v1366 = vshll.u32 %v1357, %v1364
    %v1367 = vshrl.u32 %v1349, %v1365
    %v1368 = vor.u32 %v1366, %v1367
    %v1369 = vsub.s32 4294967266, %v1364
    %v1370 = vadd.s32 %v1369, 127
    %v1371 = vshll.u32 %v1370, 23
    %v1372 = vor.u32 4788187, %v1371
    %v1373 = vand.u32 2147483647, %v1372
    %v1375 = vcvt.s32.f32 %v1368
    %v1376 = vmul.f32 %v1375, %v1373
    %v1377 = vxor.u32 %v1376, 2147483648
    %v1378 = vsel %vm1295, %v1377, %v1376
    %v1379 = vsub.s32 4, %v1355
    %v1380 = vsel %vm1295, %v1379, %v1355
    %v1381 = vsel %vm1294, %v41, %v1378
    %v1382 = vsel %vm1294, 0, %v1380
    %v1383 = vcosq.f32.pop %v1381
    %v1384 = vsinq.f32.pop %v1381
    %vm1385 = vweird.f32 %v41
    %v1386 = vadd.s32 %v1382, 3
    %v1387 = vand.u32 %v1386, 3
    %vm1388 = vcmp.lt.s32.totalorder %v1387, 2
    %vm1389 = vcmp.eq.s32.totalorder %v1387, 0
    %v1390 = vxor.u32 %v1384, 2147483648
    %v1391 = vsel %vm1389, %v1383, %v1390
    %vm1392 = vcmp.eq.s32.totalorder %v1387, 2
    %v1393 = vxor.u32 %v1383, 2147483648
    %v1394 = vsel %vm1392, %v1393, %v1384
    %v1395 = vsel %vm1388, %v1391, %v1394
    %v1396 = vsel %vm1385, nan, %v1395
    %v1397 = vand.u32 2147483647, %v42
    %vm1398 = vcmp.le.f32.partialorder %v1397, 0.7853982
    %vm1399 = vcmp.lt.s32.totalorder %v42, 0
    %v1400 = vand.u32 %v42, 2139095040
    %v1401 = vshrl.u32 %v1400, 23
    %v1402 = vsub.s32 %v1401, 127
    %v1403 = vand.u32 2147483647, %v42
    %v1404 = vand.u32 %v1403, 8388607
    %v1405 = vor.u32 %v1404, 8388608
    %v1406 = vsub.s32 0, %v1405
    %v1407 = vadd.s32 %v1402, 1
    %vm1408 = vcmp.gt.s32.totalorder %v1407, 0
    %v1409 = vsel %vm1408, %v1407, 0
    %v1410 = vshrl.u32 %v1409, 5
    %v1411 = vand.u32 %v1409, 31
    %v1412 = vsub.s32 32, %v1411
    %v1413 = vshrl.u32 683565275, %v1412
    %v1414 = vshll.u32 683565275, %v1411
    %v1415 = vshrl.u32 2475754826, %v1412
    %v1416 = vor.u32 %v1414, %v1415
    %v1417 = vshll.u32 2475754826, %v1411
    %v1418 = vshrl.u32 2131351028, %v1412
    %v1419 = vor.u32 %v1417, %v1418
    %v1420 = vshll.u32 2131351028, %v1411
    %v1421 = vshrl.u32 2102212464, %v1412
    %v1422 = vor.u32 %v1420, %v1421
    %v1423 = vshll.u32 2102212464, %v1411
    %v1424 = vshrl.u32 920167782, %v1412
    %v1425 = vor.u32 %v1423, %v1424
    %v1426 = vshll.u32 920167782, %v1411
    %v1427 = vshrl.u32 1326507024, %v1412
    %v1428 = vor.u32 %v1426, %v1427
    %vm1429 = vcmp.lt.s32.totalorder %v1410, 1
    %vm1430 = vcmp.lt.s32.totalorder %v1410, 2
    %vm1431 = vcmp.lt.s32.totalorder %v1410, 3
    %vm1432 = vcmp.lt.s32.totalorder %v1410, 4
    %v1433 = vsel %vm1429, %v1413, %v1416
    %v1434 = vsel %vm1432, %v1422, 2102212464
    %v1435 = vsel %vm1431, %v1419, %v1434
    %v1436 = vsel %vm1430, %v1433, %v1435
    %v1437 = vsel %vm1429, %v1416, %v1419
    %v1438 = vsel %vm1432, %v1425, 920167782
    %v1439 = vsel %vm1431, %v1422, %v1438
    %v1440 = vsel %vm1430, %v1437, %v1439
    %v1441 = vsel %vm1429, %v1419, %v1422
    %v1442 = vsel %vm1432, %v1428, 1326507024
    %v1443 = vsel %vm1431, %v1425, %v1442
    %v1444 = vsel %vm1430, %v1441, %v1443
    %v1445 = vshll.u32 %v1405, 8
    %v1446 = vmul.u32.u64.compose %v1445, %v1444
    %v1447 = vextract.low.u32 %v1446
    %v1448 = vextract.high.u32 %v1446
    %v1449 = vmul.u32.u64.compose %v1445, %v1440
    %v1450 = vextract.low.u32 %v1449
    %v1451 = vextract.high.u32 %v1449
    %v1452 = vmul.u32 %v1445, %v1436
    %v1453 = vadd.s32 %v1448, %v1450
    %vm1454 = vc.u32 %v1448, %v1450
    %v1455 = vadd.s32 %v1451, 1
    %v1456 = vsel %vm1454, %v1455, %v1451
    %v1457 = vadd.s32 %v1452, %v1456
    %v1458 = vadd.s32 %v1457, 536870912
    %v1459 = vshrl.u32 %v1458, 30
    %v1460 = vshll.u32 %v1459, 30
    %v1461 = vsub.s32 %v1457, %v1460
    %vm1462 = vcmp.lt.s32.totalorder %v1461, 0
    %v1463 = vsub.s32 0, %v1461
    %v1464 = vsel %vm1462, %v1463, %v1461
    %v1465 = vclz %v1464
    %v1466 = vsub.s32 %v1465, 2
    %vm1467 = vcmp.gt.s32.totalorder 0, %v1466
    %v1468 = vsel %vm1467, 0, %v1466
    %v1469 = vsub.s32 32, %v1468
    %v1470 = vshll.u32 %v1461, %v1468
    %v1471 = vshrl.u32 %v1453, %v1469
    %v1472 = vor.u32 %v1470, %v1471
    %v1473 = vsub.s32 4294967266, %v1468
    %v1474 = vadd.s32 %v1473, 127
    %v1475 = vshll.u32 %v1474, 23
    %v1476 = vor.u32 4788187, %v1475
    %v1477 = vand.u32 2147483647, %v1476
    %v1479 = vcvt.s32.f32 %v1472
    %v1480 = vmul.f32 %v1479, %v1477
    %v1481 = vxor.u32 %v1480, 2147483648
    %v1482 = vsel %vm1399, %v1481, %v1480
    %v1483 = vsub.s32 4, %v1459
    %v1484 = vsel %vm1399, %v1483, %v1459
    %v1485 = vsel %vm1398, %v42, %v1482
    %v1486 = vsel %vm1398, 0, %v1484
    %v1487 = vcosq.f32.pop %v1485
    %v1488 = vsinq.f32.pop %v1485
    %vm1489 = vweird.f32 %v42
    %v1490 = vadd.s32 %v1486, 3
    %v1491 = vand.u32 %v1490, 3
    %vm1492 = vcmp.lt.s32.totalorder %v1491, 2
    %vm1493 = vcmp.eq.s32.totalorder %v1491, 0
    %v1494 = vxor.u32 %v1488, 2147483648
    %v1495 = vsel %vm1493, %v1487, %v1494
    %vm1496 = vcmp.eq.s32.totalorder %v1491, 2
    %v1497 = vxor.u32 %v1487, 2147483648
    %v1498 = vsel %vm1496, %v1497, %v1488
    %v1499 = vsel %vm1492, %v1495, %v1498
    %v1500 = vsel %vm1489, nan, %v1499
    %v1501 = vand.u32 2147483647, %v43
    %vm1502 = vcmp.le.f32.partialorder %v1501, 0.7853982
    %vm1503 = vcmp.lt.s32.totalorder %v43, 0
    %v1504 = vand.u32 %v43, 2139095040
    %v1505 = vshrl.u32 %v1504, 23
    %v1506 = vsub.s32 %v1505, 127
    %v1507 = vand.u32 2147483647, %v43
    %v1508 = vand.u32 %v1507, 8388607
    %v1509 = vor.u32 %v1508, 8388608
    %v1510 = vsub.s32 0, %v1509
    %v1511 = vadd.s32 %v1506, 1
    %vm1512 = vcmp.gt.s32.totalorder %v1511, 0
    %v1513 = vsel %vm1512, %v1511, 0
    %v1514 = vshrl.u32 %v1513, 5
    %v1515 = vand.u32 %v1513, 31
    %v1516 = vsub.s32 32, %v1515
    %v1517 = vshrl.u32 683565275, %v1516
    %v1518 = vshll.u32 683565275, %v1515
    %v1519 = vshrl.u32 2475754826, %v1516
    %v1520 = vor.u32 %v1518, %v1519
    %v1521 = vshll.u32 2475754826, %v1515
    %v1522 = vshrl.u32 2131351028, %v1516
    %v1523 = vor.u32 %v1521, %v1522
    %v1524 = vshll.u32 2131351028, %v1515
    %v1525 = vshrl.u32 2102212464, %v1516
    %v1526 = vor.u32 %v1524, %v1525
    %v1527 = vshll.u32 2102212464, %v1515
    %v1528 = vshrl.u32 920167782, %v1516
    %v1529 = vor.u32 %v1527, %v1528
    %v1530 = vshll.u32 920167782, %v1515
    %v1531 = vshrl.u32 1326507024, %v1516
    %v1532 = vor.u32 %v1530, %v1531
    %vm1533 = vcmp.lt.s32.totalorder %v1514, 1
    %vm1534 = vcmp.lt.s32.totalorder %v1514, 2
    %vm1535 = vcmp.lt.s32.totalorder %v1514, 3
    %vm1536 = vcmp.lt.s32.totalorder %v1514, 4
    %v1537 = vsel %vm1533, %v1517, %v1520
    %v1538 = vsel %vm1536, %v1526, 2102212464
    %v1539 = vsel %vm1535, %v1523, %v1538
    %v1540 = vsel %vm1534, %v1537, %v1539
    %v1541 = vsel %vm1533, %v1520, %v1523
    %v1542 = vsel %vm1536, %v1529, 920167782
    %v1543 = vsel %vm1535, %v1526, %v1542
    %v1544 = vsel %vm1534, %v1541, %v1543
    %v1545 = vsel %vm1533, %v1523, %v1526
    %v1546 = vsel %vm1536, %v1532, 1326507024
    %v1547 = vsel %vm1535, %v1529, %v1546
    %v1548 = vsel %vm1534, %v1545, %v1547
    %v1549 = vshll.u32 %v1509, 8
    %v1550 = vmul.u32.u64.compose %v1549, %v1548
    %v1551 = vextract.low.u32 %v1550
    %v1552 = vextract.high.u32 %v1550
    %v1553 = vmul.u32.u64.compose %v1549, %v1544
    %v1554 = vextract.low.u32 %v1553
    %v1555 = vextract.high.u32 %v1553
    %v1556 = vmul.u32 %v1549, %v1540
    %v1557 = vadd.s32 %v1552, %v1554
    %vm1558 = vc.u32 %v1552, %v1554
    %v1559 = vadd.s32 %v1555, 1
    %v1560 = vsel %vm1558, %v1559, %v1555
    %v1561 = vadd.s32 %v1556, %v1560
    %v1562 = vadd.s32 %v1561, 536870912
    %v1563 = vshrl.u32 %v1562, 30
    %v1564 = vshll.u32 %v1563, 30
    %v1565 = vsub.s32 %v1561, %v1564
    %vm1566 = vcmp.lt.s32.totalorder %v1565, 0
    %v1567 = vsub.s32 0, %v1565
    %v1568 = vsel %vm1566, %v1567, %v1565
    %v1569 = vclz %v1568
    %v1570 = vsub.s32 %v1569, 2
    %vm1571 = vcmp.gt.s32.totalorder 0, %v1570
    %v1572 = vsel %vm1571, 0, %v1570
    %v1573 = vsub.s32 32, %v1572
    %v1574 = vshll.u32 %v1565, %v1572
    %v1575 = vshrl.u32 %v1557, %v1573
    %v1576 = vor.u32 %v1574, %v1575
    %v1577 = vsub.s32 4294967266, %v1572
    %v1578 = vadd.s32 %v1577, 127
    %v1579 = vshll.u32 %v1578, 23
    %v1580 = vor.u32 4788187, %v1579
    %v1581 = vand.u32 2147483647, %v1580
    %v1583 = vcvt.s32.f32 %v1576
    %v1584 = vmul.f32 %v1583, %v1581
    %v1585 = vxor.u32 %v1584, 2147483648
    %v1586 = vsel %vm1503, %v1585, %v1584
    %v1587 = vsub.s32 4, %v1563
    %v1588 = vsel %vm1503, %v1587, %v1563
    %v1589 = vsel %vm1502, %v43, %v1586
    %v1590 = vsel %vm1502, 0, %v1588
    %v1591 = vcosq.f32.pop %v1589
    %v1592 = vsinq.f32.pop %v1589
    %vm1593 = vweird.f32 %v43
    %v1594 = vadd.s32 %v1590, 3
    %v1595 = vand.u32 %v1594, 3
    %vm1596 = vcmp.lt.s32.totalorder %v1595, 2
    %vm1597 = vcmp.eq.s32.totalorder %v1595, 0
    %v1598 = vxor.u32 %v1592, 2147483648
    %v1599 = vsel %vm1597, %v1591, %v1598
    %vm1600 = vcmp.eq.s32.totalorder %v1595, 2
    %v1601 = vxor.u32 %v1591, 2147483648
    %v1602 = vsel %vm1600, %v1601, %v1592
    %v1603 = vsel %vm1596, %v1599, %v1602
    %v1604 = vsel %vm1593, nan, %v1603
    %v1605 = vand.u32 2147483647, %v44
    %vm1606 = vcmp.le.f32.partialorder %v1605, 0.7853982
    %vm1607 = vcmp.lt.s32.totalorder %v44, 0
    %v1608 = vand.u32 %v44, 2139095040
    %v1609 = vshrl.u32 %v1608, 23
    %v1610 = vsub.s32 %v1609, 127
    %v1611 = vand.u32 2147483647, %v44
    %v1612 = vand.u32 %v1611, 8388607
    %v1613 = vor.u32 %v1612, 8388608
    %v1614 = vsub.s32 0, %v1613
    %v1615 = vadd.s32 %v1610, 1
    %vm1616 = vcmp.gt.s32.totalorder %v1615, 0
    %v1617 = vsel %vm1616, %v1615, 0
    %v1618 = vshrl.u32 %v1617, 5
    %v1619 = vand.u32 %v1617, 31
    %v1620 = vsub.s32 32, %v1619
    %v1621 = vshrl.u32 683565275, %v1620
    %v1622 = vshll.u32 683565275, %v1619
    %v1623 = vshrl.u32 2475754826, %v1620
    %v1624 = vor.u32 %v1622, %v1623
    %v1625 = vshll.u32 2475754826, %v1619
    %v1626 = vshrl.u32 2131351028, %v1620
    %v1627 = vor.u32 %v1625, %v1626
    %v1628 = vshll.u32 2131351028, %v1619
    %v1629 = vshrl.u32 2102212464, %v1620
    %v1630 = vor.u32 %v1628, %v1629
    %v1631 = vshll.u32 2102212464, %v1619
    %v1632 = vshrl.u32 920167782, %v1620
    %v1633 = vor.u32 %v1631, %v1632
    %v1634 = vshll.u32 920167782, %v1619
    %v1635 = vshrl.u32 1326507024, %v1620
    %v1636 = vor.u32 %v1634, %v1635
    %vm1637 = vcmp.lt.s32.totalorder %v1618, 1
    %vm1638 = vcmp.lt.s32.totalorder %v1618, 2
    %vm1639 = vcmp.lt.s32.totalorder %v1618, 3
    %vm1640 = vcmp.lt.s32.totalorder %v1618, 4
    %v1641 = vsel %vm1637, %v1621, %v1624
    %v1642 = vsel %vm1640, %v1630, 2102212464
    %v1643 = vsel %vm1639, %v1627, %v1642
    %v1644 = vsel %vm1638, %v1641, %v1643
    %v1645 = vsel %vm1637, %v1624, %v1627
    %v1646 = vsel %vm1640, %v1633, 920167782
    %v1647 = vsel %vm1639, %v1630, %v1646
    %v1648 = vsel %vm1638, %v1645, %v1647
    %v1649 = vsel %vm1637, %v1627, %v1630
    %v1650 = vsel %vm1640, %v1636, 1326507024
    %v1651 = vsel %vm1639, %v1633, %v1650
    %v1652 = vsel %vm1638, %v1649, %v1651
    %v1653 = vshll.u32 %v1613, 8
    %v1654 = vmul.u32.u64.compose %v1653, %v1652
    %v1655 = vextract.low.u32 %v1654
    %v1656 = vextract.high.u32 %v1654
    %v1657 = vmul.u32.u64.compose %v1653, %v1648
    %v1658 = vextract.low.u32 %v1657
    %v1659 = vextract.high.u32 %v1657
    %v1660 = vmul.u32 %v1653, %v1644
    %v1661 = vadd.s32 %v1656, %v1658
    %vm1662 = vc.u32 %v1656, %v1658
    %v1663 = vadd.s32 %v1659, 1
    %v1664 = vsel %vm1662, %v1663, %v1659
    %v1665 = vadd.s32 %v1660, %v1664
    %v1666 = vadd.s32 %v1665, 536870912
    %v1667 = vshrl.u32 %v1666, 30
    %v1668 = vshll.u32 %v1667, 30
    %v1669 = vsub.s32 %v1665, %v1668
    %vm1670 = vcmp.lt.s32.totalorder %v1669, 0
    %v1671 = vsub.s32 0, %v1669
    %v1672 = vsel %vm1670, %v1671, %v1669
    %v1673 = vclz %v1672
    %v1674 = vsub.s32 %v1673, 2
    %vm1675 = vcmp.gt.s32.totalorder 0, %v1674
    %v1676 = vsel %vm1675, 0, %v1674
    %v1677 = vsub.s32 32, %v1676
    %v1678 = vshll.u32 %v1669, %v1676
    %v1679 = vshrl.u32 %v1661, %v1677
    %v1680 = vor.u32 %v1678, %v1679
    %v1681 = vsub.s32 4294967266, %v1676
    %v1682 = vadd.s32 %v1681, 127
    %v1683 = vshll.u32 %v1682, 23
    %v1684 = vor.u32 4788187, %v1683
    %v1685 = vand.u32 2147483647, %v1684
    %v1687 = vcvt.s32.f32 %v1680
    %v1688 = vmul.f32 %v1687, %v1685
    %v1689 = vxor.u32 %v1688, 2147483648
    %v1690 = vsel %vm1607, %v1689, %v1688
    %v1691 = vsub.s32 4, %v1667
    %v1692 = vsel %vm1607, %v1691, %v1667
    %v1693 = vsel %vm1606, %v44, %v1690
    %v1694 = vsel %vm1606, 0, %v1692
    %v1695 = vcosq.f32.pop %v1693
    %v1696 = vsinq.f32.pop %v1693
    %vm1697 = vweird.f32 %v44
    %v1698 = vadd.s32 %v1694, 3
    %v1699 = vand.u32 %v1698, 3
    %vm1700 = vcmp.lt.s32.totalorder %v1699, 2
    %vm1701 = vcmp.eq.s32.totalorder %v1699, 0
    %v1702 = vxor.u32 %v1696, 2147483648
    %v1703 = vsel %vm1701, %v1695, %v1702
    %vm1704 = vcmp.eq.s32.totalorder %v1699, 2
    %v1705 = vxor.u32 %v1695, 2147483648
    %v1706 = vsel %vm1704, %v1705, %v1696
    %v1707 = vsel %vm1700, %v1703, %v1706
    %v1708 = vsel %vm1697, nan, %v1707
    %v1709 = vld [vmem:[%s1] sm:$0xff]
    %v1710 = vld [vmem:[%s1 + $0x8] sm:$0xff]
    %v1711 = vld [vmem:[%s1 + $0x10] sm:$0xff]
    %v1712 = vld [vmem:[%s1 + $0x18] sm:$0xff]
    %v1713 = vld [vmem:[%s1 + $0x20] sm:$0xff]
    %v1714 = vld [vmem:[%s1 + $0x28] sm:$0xff]
    %v1715 = vld [vmem:[%s1 + $0x30] sm:$0xff]
    %v1716 = vld [vmem:[%s1 + $0x38] sm:$0xff]
    %v1717 = vld [vmem:[%s2] sm:$0xff]
    %v1718 = vld [vmem:[%s2 + $0x8] sm:$0xff]
    %v1719 = vld [vmem:[%s2 + $0x10] sm:$0xff]
    %v1720 = vld [vmem:[%s2 + $0x18] sm:$0xff]
    %v1721 = vld [vmem:[%s2 + $0x20] sm:$0xff]
    %v1722 = vld [vmem:[%s2 + $0x28] sm:$0xff]
    %v1723 = vld [vmem:[%s2 + $0x30] sm:$0xff]
    %v1724 = vld [vmem:[%s2 + $0x38] sm:$0xff]
    %1726 = vset.pattern.permute.xlu0 0
    %1727 = vperm.xlu0 %1726, %v1717
    %v1728 = vpop.permute.xlu0 %1727
    %1731 = vset.pattern.permute.xlu0 0
    %1732 = vperm.xlu0 %1731, %v1718
    %v1733 = vpop.permute.xlu0 %1732
    %1736 = vset.pattern.permute.xlu0 0
    %1737 = vperm.xlu0 %1736, %v1719
    %v1738 = vpop.permute.xlu0 %1737
    %1741 = vset.pattern.permute.xlu0 0
    %1742 = vperm.xlu0 %1741, %v1720
    %v1743 = vpop.permute.xlu0 %1742
    %1746 = vset.pattern.permute.xlu0 0
    %1747 = vperm.xlu0 %1746, %v1721
    %v1748 = vpop.permute.xlu0 %1747
    %1751 = vset.pattern.permute.xlu0 0
    %1752 = vperm.xlu0 %1751, %v1722
    %v1753 = vpop.permute.xlu0 %1752
    %1756 = vset.pattern.permute.xlu0 0
    %1757 = vperm.xlu0 %1756, %v1723
    %v1758 = vpop.permute.xlu0 %1757
    %1761 = vset.pattern.permute.xlu0 0
    %1762 = vperm.xlu0 %1761, %v1724
    %v1763 = vpop.permute.xlu0 %1762
    %vm1765 = vcmask 523264
    %v1767 = vsel %vm1765, %v1709, 0
    %v1770 = vsel %vm1765, %v1710, 0
    %v1773 = vsel %vm1765, %v1711, 0
    %v1776 = vsel %vm1765, %v1712, 0
    %v1779 = vsel %vm1765, %v1713, 0
    %v1782 = vsel %vm1765, %v1714, 0
    %v1785 = vsel %vm1765, %v1715, 0
    %v1788 = vsel %vm1765, %v1716, 0
    %1790 = vmatprep.subr.mxu0 %v252
    %1791 = vmatpush1.msra.mxu0 %v148
    %1792 = vmatprep.subr.mxu0 %v460
    %1793 = vmatpush1.msra.mxu0 %v356
    %1794 = vmatprep.subr.mxu0 %v668
    %1795 = vmatpush1.msra.mxu0 %v564
    %1796 = vmatprep.subr.mxu0 %v876
    %1797 = vmatpush1.msra.mxu0 %v772
    %1798 = vmatprep.subr.mxu0 %v1084
    %1799 = vmatpush1.msra.mxu0 %v980
    %1800 = vmatprep.subr.mxu0 %v1292
    %1801 = vmatpush1.msra.mxu0 %v1188
    %1802 = vmatprep.subr.mxu0 %v1500
    %1803 = vmatpush1.msra.mxu0 %v1396
    %1804 = vmatprep.subr.mxu0 %v1708
    %1805 = vmatpush1.msra.mxu0 %v1604
    %1806 = vmatprep.subr.mxu0 0.0
    %1807 = vmatpush1.msra.mxu0 0.0
    %1808 = vmatprep.subr.mxu0 0.0
    %1809 = vmatpush1.msra.mxu0 0.0
    %1810 = vmatprep.subr.mxu0 0.0
    %1811 = vmatpush1.msra.mxu0 0.0
    %1812 = vmatprep.subr.mxu0 0.0
    %1813 = vmatpush1.msra.mxu0 0.0
    %1814 = vmatprep.subr.mxu0 0.0
    %1815 = vmatpush1.msra.mxu0 0.0
    %1816 = vmatprep.subr.mxu0 0.0
    %1817 = vmatpush1.msra.mxu0 0.0
    %1818 = vmatprep.subr.mxu0 0.0
    %1819 = vmatpush1.msra.mxu0 0.0
    %1820 = vmatprep.subr.mxu0 0.0
    %1821 = vmatpush1.msra.mxu0 0.0
    %1822 = vmatprep.subr.mxu0 0.0
    %1823 = vmatpush1.msra.mxu0 0.0
    %1824 = vmatprep.subr.mxu0 0.0
    %1825 = vmatpush1.msra.mxu0 0.0
    %1826 = vmatprep.subr.mxu0 0.0
    %1827 = vmatpush1.msra.mxu0 0.0
    %1828 = vmatprep.subr.mxu0 0.0
    %1829 = vmatpush1.msra.mxu0 0.0
    %1830 = vmatprep.subr.mxu0 0.0
    %1831 = vmatpush1.msra.mxu0 0.0
    %1832 = vmatprep.subr.mxu0 0.0
    %1833 = vmatpush1.msra.mxu0 0.0
    %1834 = vmatprep.subr.mxu0 0.0
    %1835 = vmatpush1.msra.mxu0 0.0
    %1836 = vmatprep.subr.mxu0 0.0
    %1837 = vmatpush1.msra.mxu0 0.0
    %1838 = vmatprep.subr.mxu0 0.0
    %1839 = vmatpush1.msra.mxu0 0.0
    %1840 = vmatprep.subr.mxu0 0.0
    %1841 = vmatpush1.msra.mxu0 0.0
    %1842 = vmatprep.subr.mxu0 0.0
    %1843 = vmatpush1.msra.mxu0 0.0
    %1844 = vmatprep.subr.mxu0 0.0
    %1845 = vmatpush1.msra.mxu0 0.0
    %1846 = vmatprep.subr.mxu0 0.0
    %1847 = vmatpush1.msra.mxu0 0.0
    %1848 = vmatprep.subr.mxu0 0.0
    %1849 = vmatpush1.msra.mxu0 0.0
    %1850 = vmatprep.subr.mxu0 0.0
    %1851 = vmatpush1.msra.mxu0 0.0
    %1852 = vmatprep.subr.mxu0 0.0
    %1853 = vmatpush1.msra.mxu0 0.0
    %1854 = vmatprep.mubr.f32.mxu0 0.0
    %1855 = vmatmul.mubr.f32.gmra.mrb[0].mxu0 %v1767
    %v1856 = vpop.f32.mrb[0].mxu0
    %v1857 = vadd.f32 %v1728, %v1856
    %v1858 = vpop.f32.mrb[0].mxu0
    %v1859 = vadd.f32 %v1728, %v1858
    %1860 = vmatprep.mubr.f32.mxu0 0.0
    %1861 = vmatmul.mubr.f32.gmra.mrb[0].mxu0 %v1770
    %v1862 = vpop.f32.mrb[0].mxu0
    %v1863 = vadd.f32 %v1733, %v1862
    %v1864 = vpop.f32.mrb[0].mxu0
    %v1865 = vadd.f32 %v1733, %v1864
    %1866 = vmatprep.mubr.f32.mxu0 0.0
    %1867 = vmatmul.mubr.f32.gmra.mrb[0].mxu0 %v1773
    %v1868 = vpop.f32.mrb[0].mxu0
    %v1869 = vadd.f32 %v1738, %v1868
    %v1870 = vpop.f32.mrb[0].mxu0
    %v1871 = vadd.f32 %v1738, %v1870
    %1872 = vmatprep.mubr.f32.mxu0 0.0
    %1873 = vmatmul.mubr.f32.gmra.mrb[0].mxu0 %v1776
    %v1874 = vpop.f32.mrb[0].mxu0
    %v1875 = vadd.f32 %v1743, %v1874
    %v1876 = vpop.f32.mrb[0].mxu0
    %v1877 = vadd.f32 %v1743, %v1876
    %1878 = vmatprep.mubr.f32.mxu0 0.0
    %1879 = vmatmul.mubr.f32.gmra.mrb[0].mxu0 %v1779
    %v1880 = vpop.f32.mrb[0].mxu0
    %v1881 = vadd.f32 %v1748, %v1880
    %v1882 = vpop.f32.mrb[0].mxu0
    %v1883 = vadd.f32 %v1748, %v1882
    %1884 = vmatprep.mubr.f32.mxu0 0.0
    %1885 = vmatmul.mubr.f32.gmra.mrb[0].mxu0 %v1782
    %v1886 = vpop.f32.mrb[0].mxu0
    %v1887 = vadd.f32 %v1753, %v1886
    %v1888 = vpop.f32.mrb[0].mxu0
    %v1889 = vadd.f32 %v1753, %v1888
    %1890 = vmatprep.mubr.f32.mxu0 0.0
    %1891 = vmatmul.mubr.f32.gmra.mrb[0].mxu0 %v1785
    %v1892 = vpop.f32.mrb[0].mxu0
    %v1893 = vadd.f32 %v1758, %v1892
    %v1894 = vpop.f32.mrb[0].mxu0
    %v1895 = vadd.f32 %v1758, %v1894
    %1896 = vmatprep.mubr.f32.mxu0 0.0
    %1897 = vmatmul.mubr.f32.gmra.mrb[0].mxu0 %v1788
    %v1898 = vpop.f32.mrb[0].mxu0
    %v1899 = vadd.f32 %v1763, %v1898
    %v1900 = vpop.f32.mrb[0].mxu0
    %v1901 = vadd.f32 %v1763, %v1900
    %1902 = vdwg.mxu0
    %v1903 = vand.u32 2147483647, %v1857
    %vm1904 = vcmp.le.f32.partialorder %v1903, 0.7853982
    %vm1905 = vcmp.lt.s32.totalorder %v1857, 0
    %v1906 = vand.u32 %v1857, 2139095040
    %v1907 = vshrl.u32 %v1906, 23
    %v1908 = vsub.s32 %v1907, 127
    %v1909 = vand.u32 2147483647, %v1857
    %v1910 = vand.u32 %v1909, 8388607
    %v1911 = vor.u32 %v1910, 8388608
    %v1912 = vsub.s32 0, %v1911
    %v1913 = vadd.s32 %v1908, 1
    %vm1914 = vcmp.gt.s32.totalorder %v1913, 0
    %v1915 = vsel %vm1914, %v1913, 0
    %v1916 = vshrl.u32 %v1915, 5
    %v1917 = vand.u32 %v1915, 31
    %v1918 = vsub.s32 32, %v1917
    %v1919 = vshrl.u32 683565275, %v1918
    %v1920 = vshll.u32 683565275, %v1917
    %v1921 = vshrl.u32 2475754826, %v1918
    %v1922 = vor.u32 %v1920, %v1921
    %v1923 = vshll.u32 2475754826, %v1917
    %v1924 = vshrl.u32 2131351028, %v1918
    %v1925 = vor.u32 %v1923, %v1924
    %v1926 = vshll.u32 2131351028, %v1917
    %v1927 = vshrl.u32 2102212464, %v1918
    %v1928 = vor.u32 %v1926, %v1927
    %v1929 = vshll.u32 2102212464, %v1917
    %v1930 = vshrl.u32 920167782, %v1918
    %v1931 = vor.u32 %v1929, %v1930
    %v1932 = vshll.u32 920167782, %v1917
    %v1933 = vshrl.u32 1326507024, %v1918
    %v1934 = vor.u32 %v1932, %v1933
    %vm1935 = vcmp.lt.s32.totalorder %v1916, 1
    %vm1936 = vcmp.lt.s32.totalorder %v1916, 2
    %vm1937 = vcmp.lt.s32.totalorder %v1916, 3
    %vm1938 = vcmp.lt.s32.totalorder %v1916, 4
    %v1939 = vsel %vm1935, %v1919, %v1922
    %v1940 = vsel %vm1938, %v1928, 2102212464
    %v1941 = vsel %vm1937, %v1925, %v1940
    %v1942 = vsel %vm1936, %v1939, %v1941
    %v1943 = vsel %vm1935, %v1922, %v1925
    %v1944 = vsel %vm1938, %v1931, 920167782
    %v1945 = vsel %vm1937, %v1928, %v1944
    %v1946 = vsel %vm1936, %v1943, %v1945
    %v1947 = vsel %vm1935, %v1925, %v1928
    %v1948 = vsel %vm1938, %v1934, 1326507024
    %v1949 = vsel %vm1937, %v1931, %v1948
    %v1950 = vsel %vm1936, %v1947, %v1949
    %v1951 = vshll.u32 %v1911, 8
    %v1952 = vmul.u32.u64.compose %v1951, %v1950
    %v1953 = vextract.low.u32 %v1952
    %v1954 = vextract.high.u32 %v1952
    %v1955 = vmul.u32.u64.compose %v1951, %v1946
    %v1956 = vextract.low.u32 %v1955
    %v1957 = vextract.high.u32 %v1955
    %v1958 = vmul.u32 %v1951, %v1942
    %v1959 = vadd.s32 %v1954, %v1956
    %vm1960 = vc.u32 %v1954, %v1956
    %v1961 = vadd.s32 %v1957, 1
    %v1962 = vsel %vm1960, %v1961, %v1957
    %v1963 = vadd.s32 %v1958, %v1962
    %v1964 = vadd.s32 %v1963, 536870912
    %v1965 = vshrl.u32 %v1964, 30
    %v1966 = vshll.u32 %v1965, 30
    %v1967 = vsub.s32 %v1963, %v1966
    %vm1968 = vcmp.lt.s32.totalorder %v1967, 0
    %v1969 = vsub.s32 0, %v1967
    %v1970 = vsel %vm1968, %v1969, %v1967
    %v1971 = vclz %v1970
    %v1972 = vsub.s32 %v1971, 2
    %vm1973 = vcmp.gt.s32.totalorder 0, %v1972
    %v1974 = vsel %vm1973, 0, %v1972
    %v1975 = vsub.s32 32, %v1974
    %v1976 = vshll.u32 %v1967, %v1974
    %v1977 = vshrl.u32 %v1959, %v1975
    %v1978 = vor.u32 %v1976, %v1977
    %v1979 = vsub.s32 4294967266, %v1974
    %v1980 = vadd.s32 %v1979, 127
    %v1981 = vshll.u32 %v1980, 23
    %v1982 = vor.u32 4788187, %v1981
    %v1983 = vand.u32 2147483647, %v1982
    %v1985 = vcvt.s32.f32 %v1978
    %v1986 = vmul.f32 %v1985, %v1983
    %v1987 = vxor.u32 %v1986, 2147483648
    %v1988 = vsel %vm1905, %v1987, %v1986
    %v1989 = vsub.s32 4, %v1965
    %v1990 = vsel %vm1905, %v1989, %v1965
    %v1991 = vsel %vm1904, %v1857, %v1988
    %v1992 = vsel %vm1904, 0, %v1990
    %v1993 = vcosq.f32.pop %v1991
    %v1994 = vsinq.f32.pop %v1991
    %vm1995 = vweird.f32 %v1857
    %v1996 = vadd.s32 %v1992, 3
    %v1997 = vand.u32 %v1996, 3
    %vm1998 = vcmp.lt.s32.totalorder %v1997, 2
    %vm1999 = vcmp.eq.s32.totalorder %v1997, 0
    %v2000 = vxor.u32 %v1994, 2147483648
    %v2001 = vsel %vm1999, %v1993, %v2000
    %vm2002 = vcmp.eq.s32.totalorder %v1997, 2
    %v2003 = vxor.u32 %v1993, 2147483648
    %v2004 = vsel %vm2002, %v2003, %v1994
    %v2005 = vsel %vm1998, %v2001, %v2004
    %v2006 = vsel %vm1995, nan, %v2005
    %v2007 = vand.u32 2147483647, %v1859
    %vm2008 = vcmp.le.f32.partialorder %v2007, 0.7853982
    %vm2009 = vcmp.lt.s32.totalorder %v1859, 0
    %v2010 = vand.u32 %v1859, 2139095040
    %v2011 = vshrl.u32 %v2010, 23
    %v2012 = vsub.s32 %v2011, 127
    %v2013 = vand.u32 2147483647, %v1859
    %v2014 = vand.u32 %v2013, 8388607
    %v2015 = vor.u32 %v2014, 8388608
    %v2016 = vsub.s32 0, %v2015
    %v2017 = vadd.s32 %v2012, 1
    %vm2018 = vcmp.gt.s32.totalorder %v2017, 0
    %v2019 = vsel %vm2018, %v2017, 0
    %v2020 = vshrl.u32 %v2019, 5
    %v2021 = vand.u32 %v2019, 31
    %v2022 = vsub.s32 32, %v2021
    %v2023 = vshrl.u32 683565275, %v2022
    %v2024 = vshll.u32 683565275, %v2021
    %v2025 = vshrl.u32 2475754826, %v2022
    %v2026 = vor.u32 %v2024, %v2025
    %v2027 = vshll.u32 2475754826, %v2021
    %v2028 = vshrl.u32 2131351028, %v2022
    %v2029 = vor.u32 %v2027, %v2028
    %v2030 = vshll.u32 2131351028, %v2021
    %v2031 = vshrl.u32 2102212464, %v2022
    %v2032 = vor.u32 %v2030, %v2031
    %v2033 = vshll.u32 2102212464, %v2021
    %v2034 = vshrl.u32 920167782, %v2022
    %v2035 = vor.u32 %v2033, %v2034
    %v2036 = vshll.u32 920167782, %v2021
    %v2037 = vshrl.u32 1326507024, %v2022
    %v2038 = vor.u32 %v2036, %v2037
    %vm2039 = vcmp.lt.s32.totalorder %v2020, 1
    %vm2040 = vcmp.lt.s32.totalorder %v2020, 2
    %vm2041 = vcmp.lt.s32.totalorder %v2020, 3
    %vm2042 = vcmp.lt.s32.totalorder %v2020, 4
    %v2043 = vsel %vm2039, %v2023, %v2026
    %v2044 = vsel %vm2042, %v2032, 2102212464
    %v2045 = vsel %vm2041, %v2029, %v2044
    %v2046 = vsel %vm2040, %v2043, %v2045
    %v2047 = vsel %vm2039, %v2026, %v2029
    %v2048 = vsel %vm2042, %v2035, 920167782
    %v2049 = vsel %vm2041, %v2032, %v2048
    %v2050 = vsel %vm2040, %v2047, %v2049
    %v2051 = vsel %vm2039, %v2029, %v2032
    %v2052 = vsel %vm2042, %v2038, 1326507024
    %v2053 = vsel %vm2041, %v2035, %v2052
    %v2054 = vsel %vm2040, %v2051, %v2053
    %v2055 = vshll.u32 %v2015, 8
    %v2056 = vmul.u32.u64.compose %v2055, %v2054
    %v2057 = vextract.low.u32 %v2056
    %v2058 = vextract.high.u32 %v2056
    %v2059 = vmul.u32.u64.compose %v2055, %v2050
    %v2060 = vextract.low.u32 %v2059
    %v2061 = vextract.high.u32 %v2059
    %v2062 = vmul.u32 %v2055, %v2046
    %v2063 = vadd.s32 %v2058, %v2060
    %vm2064 = vc.u32 %v2058, %v2060
    %v2065 = vadd.s32 %v2061, 1
    %v2066 = vsel %vm2064, %v2065, %v2061
    %v2067 = vadd.s32 %v2062, %v2066
    %v2068 = vadd.s32 %v2067, 536870912
    %v2069 = vshrl.u32 %v2068, 30
    %v2070 = vshll.u32 %v2069, 30
    %v2071 = vsub.s32 %v2067, %v2070
    %vm2072 = vcmp.lt.s32.totalorder %v2071, 0
    %v2073 = vsub.s32 0, %v2071
    %v2074 = vsel %vm2072, %v2073, %v2071
    %v2075 = vclz %v2074
    %v2076 = vsub.s32 %v2075, 2
    %vm2077 = vcmp.gt.s32.totalorder 0, %v2076
    %v2078 = vsel %vm2077, 0, %v2076
    %v2079 = vsub.s32 32, %v2078
    %v2080 = vshll.u32 %v2071, %v2078
    %v2081 = vshrl.u32 %v2063, %v2079
    %v2082 = vor.u32 %v2080, %v2081
    %v2083 = vsub.s32 4294967266, %v2078
    %v2084 = vadd.s32 %v2083, 127
    %v2085 = vshll.u32 %v2084, 23
    %v2086 = vor.u32 4788187, %v2085
    %v2087 = vand.u32 2147483647, %v2086
    %v2089 = vcvt.s32.f32 %v2082
    %v2090 = vmul.f32 %v2089, %v2087
    %v2091 = vxor.u32 %v2090, 2147483648
    %v2092 = vsel %vm2009, %v2091, %v2090
    %v2093 = vsub.s32 4, %v2069
    %v2094 = vsel %vm2009, %v2093, %v2069
    %v2095 = vsel %vm2008, %v1859, %v2092
    %v2096 = vsel %vm2008, 0, %v2094
    %v2097 = vcosq.f32.pop %v2095
    %v2098 = vsinq.f32.pop %v2095
    %vm2099 = vweird.f32 %v1859
    %v2100 = vadd.s32 %v2096, 3
    %v2101 = vand.u32 %v2100, 3
    %vm2102 = vcmp.lt.s32.totalorder %v2101, 2
    %vm2103 = vcmp.eq.s32.totalorder %v2101, 0
    %v2104 = vxor.u32 %v2098, 2147483648
    %v2105 = vsel %vm2103, %v2097, %v2104
    %vm2106 = vcmp.eq.s32.totalorder %v2101, 2
    %v2107 = vxor.u32 %v2097, 2147483648
    %v2108 = vsel %vm2106, %v2107, %v2098
    %v2109 = vsel %vm2102, %v2105, %v2108
    %v2110 = vsel %vm2099, nan, %v2109
    %v2111 = vand.u32 2147483647, %v1863
    %vm2112 = vcmp.le.f32.partialorder %v2111, 0.7853982
    %vm2113 = vcmp.lt.s32.totalorder %v1863, 0
    %v2114 = vand.u32 %v1863, 2139095040
    %v2115 = vshrl.u32 %v2114, 23
    %v2116 = vsub.s32 %v2115, 127
    %v2117 = vand.u32 2147483647, %v1863
    %v2118 = vand.u32 %v2117, 8388607
    %v2119 = vor.u32 %v2118, 8388608
    %v2120 = vsub.s32 0, %v2119
    %v2121 = vadd.s32 %v2116, 1
    %vm2122 = vcmp.gt.s32.totalorder %v2121, 0
    %v2123 = vsel %vm2122, %v2121, 0
    %v2124 = vshrl.u32 %v2123, 5
    %v2125 = vand.u32 %v2123, 31
    %v2126 = vsub.s32 32, %v2125
    %v2127 = vshrl.u32 683565275, %v2126
    %v2128 = vshll.u32 683565275, %v2125
    %v2129 = vshrl.u32 2475754826, %v2126
    %v2130 = vor.u32 %v2128, %v2129
    %v2131 = vshll.u32 2475754826, %v2125
    %v2132 = vshrl.u32 2131351028, %v2126
    %v2133 = vor.u32 %v2131, %v2132
    %v2134 = vshll.u32 2131351028, %v2125
    %v2135 = vshrl.u32 2102212464, %v2126
    %v2136 = vor.u32 %v2134, %v2135
    %v2137 = vshll.u32 2102212464, %v2125
    %v2138 = vshrl.u32 920167782, %v2126
    %v2139 = vor.u32 %v2137, %v2138
    %v2140 = vshll.u32 920167782, %v2125
    %v2141 = vshrl.u32 1326507024, %v2126
    %v2142 = vor.u32 %v2140, %v2141
    %vm2143 = vcmp.lt.s32.totalorder %v2124, 1
    %vm2144 = vcmp.lt.s32.totalorder %v2124, 2
    %vm2145 = vcmp.lt.s32.totalorder %v2124, 3
    %vm2146 = vcmp.lt.s32.totalorder %v2124, 4
    %v2147 = vsel %vm2143, %v2127, %v2130
    %v2148 = vsel %vm2146, %v2136, 2102212464
    %v2149 = vsel %vm2145, %v2133, %v2148
    %v2150 = vsel %vm2144, %v2147, %v2149
    %v2151 = vsel %vm2143, %v2130, %v2133
    %v2152 = vsel %vm2146, %v2139, 920167782
    %v2153 = vsel %vm2145, %v2136, %v2152
    %v2154 = vsel %vm2144, %v2151, %v2153
    %v2155 = vsel %vm2143, %v2133, %v2136
    %v2156 = vsel %vm2146, %v2142, 1326507024
    %v2157 = vsel %vm2145, %v2139, %v2156
    %v2158 = vsel %vm2144, %v2155, %v2157
    %v2159 = vshll.u32 %v2119, 8
    %v2160 = vmul.u32.u64.compose %v2159, %v2158
    %v2161 = vextract.low.u32 %v2160
    %v2162 = vextract.high.u32 %v2160
    %v2163 = vmul.u32.u64.compose %v2159, %v2154
    %v2164 = vextract.low.u32 %v2163
    %v2165 = vextract.high.u32 %v2163
    %v2166 = vmul.u32 %v2159, %v2150
    %v2167 = vadd.s32 %v2162, %v2164
    %vm2168 = vc.u32 %v2162, %v2164
    %v2169 = vadd.s32 %v2165, 1
    %v2170 = vsel %vm2168, %v2169, %v2165
    %v2171 = vadd.s32 %v2166, %v2170
    %v2172 = vadd.s32 %v2171, 536870912
    %v2173 = vshrl.u32 %v2172, 30
    %v2174 = vshll.u32 %v2173, 30
    %v2175 = vsub.s32 %v2171, %v2174
    %vm2176 = vcmp.lt.s32.totalorder %v2175, 0
    %v2177 = vsub.s32 0, %v2175
    %v2178 = vsel %vm2176, %v2177, %v2175
    %v2179 = vclz %v2178
    %v2180 = vsub.s32 %v2179, 2
    %vm2181 = vcmp.gt.s32.totalorder 0, %v2180
    %v2182 = vsel %vm2181, 0, %v2180
    %v2183 = vsub.s32 32, %v2182
    %v2184 = vshll.u32 %v2175, %v2182
    %v2185 = vshrl.u32 %v2167, %v2183
    %v2186 = vor.u32 %v2184, %v2185
    %v2187 = vsub.s32 4294967266, %v2182
    %v2188 = vadd.s32 %v2187, 127
    %v2189 = vshll.u32 %v2188, 23
    %v2190 = vor.u32 4788187, %v2189
    %v2191 = vand.u32 2147483647, %v2190
    %v2193 = vcvt.s32.f32 %v2186
    %v2194 = vmul.f32 %v2193, %v2191
    %v2195 = vxor.u32 %v2194, 2147483648
    %v2196 = vsel %vm2113, %v2195, %v2194
    %v2197 = vsub.s32 4, %v2173
    %v2198 = vsel %vm2113, %v2197, %v2173
    %v2199 = vsel %vm2112, %v1863, %v2196
    %v2200 = vsel %vm2112, 0, %v2198
    %v2201 = vcosq.f32.pop %v2199
    %v2202 = vsinq.f32.pop %v2199
    %vm2203 = vweird.f32 %v1863
    %v2204 = vadd.s32 %v2200, 3
    %v2205 = vand.u32 %v2204, 3
    %vm2206 = vcmp.lt.s32.totalorder %v2205, 2
    %vm2207 = vcmp.eq.s32.totalorder %v2205, 0
    %v2208 = vxor.u32 %v2202, 2147483648
    %v2209 = vsel %vm2207, %v2201, %v2208
    %vm2210 = vcmp.eq.s32.totalorder %v2205, 2
    %v2211 = vxor.u32 %v2201, 2147483648
    %v2212 = vsel %vm2210, %v2211, %v2202
    %v2213 = vsel %vm2206, %v2209, %v2212
    %v2214 = vsel %vm2203, nan, %v2213
    %v2215 = vand.u32 2147483647, %v1865
    %vm2216 = vcmp.le.f32.partialorder %v2215, 0.7853982
    %vm2217 = vcmp.lt.s32.totalorder %v1865, 0
    %v2218 = vand.u32 %v1865, 2139095040
    %v2219 = vshrl.u32 %v2218, 23
    %v2220 = vsub.s32 %v2219, 127
    %v2221 = vand.u32 2147483647, %v1865
    %v2222 = vand.u32 %v2221, 8388607
    %v2223 = vor.u32 %v2222, 8388608
    %v2224 = vsub.s32 0, %v2223
    %v2225 = vadd.s32 %v2220, 1
    %vm2226 = vcmp.gt.s32.totalorder %v2225, 0
    %v2227 = vsel %vm2226, %v2225, 0
    %v2228 = vshrl.u32 %v2227, 5
    %v2229 = vand.u32 %v2227, 31
    %v2230 = vsub.s32 32, %v2229
    %v2231 = vshrl.u32 683565275, %v2230
    %v2232 = vshll.u32 683565275, %v2229
    %v2233 = vshrl.u32 2475754826, %v2230
    %v2234 = vor.u32 %v2232, %v2233
    %v2235 = vshll.u32 2475754826, %v2229
    %v2236 = vshrl.u32 2131351028, %v2230
    %v2237 = vor.u32 %v2235, %v2236
    %v2238 = vshll.u32 2131351028, %v2229
    %v2239 = vshrl.u32 2102212464, %v2230
    %v2240 = vor.u32 %v2238, %v2239
    %v2241 = vshll.u32 2102212464, %v2229
    %v2242 = vshrl.u32 920167782, %v2230
    %v2243 = vor.u32 %v2241, %v2242
    %v2244 = vshll.u32 920167782, %v2229
    %v2245 = vshrl.u32 1326507024, %v2230
    %v2246 = vor.u32 %v2244, %v2245
    %vm2247 = vcmp.lt.s32.totalorder %v2228, 1
    %vm2248 = vcmp.lt.s32.totalorder %v2228, 2
    %vm2249 = vcmp.lt.s32.totalorder %v2228, 3
    %vm2250 = vcmp.lt.s32.totalorder %v2228, 4
    %v2251 = vsel %vm2247, %v2231, %v2234
    %v2252 = vsel %vm2250, %v2240, 2102212464
    %v2253 = vsel %vm2249, %v2237, %v2252
    %v2254 = vsel %vm2248, %v2251, %v2253
    %v2255 = vsel %vm2247, %v2234, %v2237
    %v2256 = vsel %vm2250, %v2243, 920167782
    %v2257 = vsel %vm2249, %v2240, %v2256
    %v2258 = vsel %vm2248, %v2255, %v2257
    %v2259 = vsel %vm2247, %v2237, %v2240
    %v2260 = vsel %vm2250, %v2246, 1326507024
    %v2261 = vsel %vm2249, %v2243, %v2260
    %v2262 = vsel %vm2248, %v2259, %v2261
    %v2263 = vshll.u32 %v2223, 8
    %v2264 = vmul.u32.u64.compose %v2263, %v2262
    %v2265 = vextract.low.u32 %v2264
    %v2266 = vextract.high.u32 %v2264
    %v2267 = vmul.u32.u64.compose %v2263, %v2258
    %v2268 = vextract.low.u32 %v2267
    %v2269 = vextract.high.u32 %v2267
    %v2270 = vmul.u32 %v2263, %v2254
    %v2271 = vadd.s32 %v2266, %v2268
    %vm2272 = vc.u32 %v2266, %v2268
    %v2273 = vadd.s32 %v2269, 1
    %v2274 = vsel %vm2272, %v2273, %v2269
    %v2275 = vadd.s32 %v2270, %v2274
    %v2276 = vadd.s32 %v2275, 536870912
    %v2277 = vshrl.u32 %v2276, 30
    %v2278 = vshll.u32 %v2277, 30
    %v2279 = vsub.s32 %v2275, %v2278
    %vm2280 = vcmp.lt.s32.totalorder %v2279, 0
    %v2281 = vsub.s32 0, %v2279
    %v2282 = vsel %vm2280, %v2281, %v2279
    %v2283 = vclz %v2282
    %v2284 = vsub.s32 %v2283, 2
    %vm2285 = vcmp.gt.s32.totalorder 0, %v2284
    %v2286 = vsel %vm2285, 0, %v2284
    %v2287 = vsub.s32 32, %v2286
    %v2288 = vshll.u32 %v2279, %v2286
    %v2289 = vshrl.u32 %v2271, %v2287
    %v2290 = vor.u32 %v2288, %v2289
    %v2291 = vsub.s32 4294967266, %v2286
    %v2292 = vadd.s32 %v2291, 127
    %v2293 = vshll.u32 %v2292, 23
    %v2294 = vor.u32 4788187, %v2293
    %v2295 = vand.u32 2147483647, %v2294
    %v2297 = vcvt.s32.f32 %v2290
    %v2298 = vmul.f32 %v2297, %v2295
    %v2299 = vxor.u32 %v2298, 2147483648
    %v2300 = vsel %vm2217, %v2299, %v2298
    %v2301 = vsub.s32 4, %v2277
    %v2302 = vsel %vm2217, %v2301, %v2277
    %v2303 = vsel %vm2216, %v1865, %v2300
    %v2304 = vsel %vm2216, 0, %v2302
    %v2305 = vcosq.f32.pop %v2303
    %v2306 = vsinq.f32.pop %v2303
    %vm2307 = vweird.f32 %v1865
    %v2308 = vadd.s32 %v2304, 3
    %v2309 = vand.u32 %v2308, 3
    %vm2310 = vcmp.lt.s32.totalorder %v2309, 2
    %vm2311 = vcmp.eq.s32.totalorder %v2309, 0
    %v2312 = vxor.u32 %v2306, 2147483648
    %v2313 = vsel %vm2311, %v2305, %v2312
    %vm2314 = vcmp.eq.s32.totalorder %v2309, 2
    %v2315 = vxor.u32 %v2305, 2147483648
    %v2316 = vsel %vm2314, %v2315, %v2306
    %v2317 = vsel %vm2310, %v2313, %v2316
    %v2318 = vsel %vm2307, nan, %v2317
    %v2319 = vand.u32 2147483647, %v1869
    %vm2320 = vcmp.le.f32.partialorder %v2319, 0.7853982
    %vm2321 = vcmp.lt.s32.totalorder %v1869, 0
    %v2322 = vand.u32 %v1869, 2139095040
    %v2323 = vshrl.u32 %v2322, 23
    %v2324 = vsub.s32 %v2323, 127
    %v2325 = vand.u32 2147483647, %v1869
    %v2326 = vand.u32 %v2325, 8388607
    %v2327 = vor.u32 %v2326, 8388608
    %v2328 = vsub.s32 0, %v2327
    %v2329 = vadd.s32 %v2324, 1
    %vm2330 = vcmp.gt.s32.totalorder %v2329, 0
    %v2331 = vsel %vm2330, %v2329, 0
    %v2332 = vshrl.u32 %v2331, 5
    %v2333 = vand.u32 %v2331, 31
    %v2334 = vsub.s32 32, %v2333
    %v2335 = vshrl.u32 683565275, %v2334
    %v2336 = vshll.u32 683565275, %v2333
    %v2337 = vshrl.u32 2475754826, %v2334
    %v2338 = vor.u32 %v2336, %v2337
    %v2339 = vshll.u32 2475754826, %v2333
    %v2340 = vshrl.u32 2131351028, %v2334
    %v2341 = vor.u32 %v2339, %v2340
    %v2342 = vshll.u32 2131351028, %v2333
    %v2343 = vshrl.u32 2102212464, %v2334
    %v2344 = vor.u32 %v2342, %v2343
    %v2345 = vshll.u32 2102212464, %v2333
    %v2346 = vshrl.u32 920167782, %v2334
    %v2347 = vor.u32 %v2345, %v2346
    %v2348 = vshll.u32 920167782, %v2333
    %v2349 = vshrl.u32 1326507024, %v2334
    %v2350 = vor.u32 %v2348, %v2349
    %vm2351 = vcmp.lt.s32.totalorder %v2332, 1
    %vm2352 = vcmp.lt.s32.totalorder %v2332, 2
    %vm2353 = vcmp.lt.s32.totalorder %v2332, 3
    %vm2354 = vcmp.lt.s32.totalorder %v2332, 4
    %v2355 = vsel %vm2351, %v2335, %v2338
    %v2356 = vsel %vm2354, %v2344, 2102212464
    %v2357 = vsel %vm2353, %v2341, %v2356
    %v2358 = vsel %vm2352, %v2355, %v2357
    %v2359 = vsel %vm2351, %v2338, %v2341
    %v2360 = vsel %vm2354, %v2347, 920167782
    %v2361 = vsel %vm2353, %v2344, %v2360
    %v2362 = vsel %vm2352, %v2359, %v2361
    %v2363 = vsel %vm2351, %v2341, %v2344
    %v2364 = vsel %vm2354, %v2350, 1326507024
    %v2365 = vsel %vm2353, %v2347, %v2364
    %v2366 = vsel %vm2352, %v2363, %v2365
    %v2367 = vshll.u32 %v2327, 8
    %v2368 = vmul.u32.u64.compose %v2367, %v2366
    %v2369 = vextract.low.u32 %v2368
    %v2370 = vextract.high.u32 %v2368
    %v2371 = vmul.u32.u64.compose %v2367, %v2362
    %v2372 = vextract.low.u32 %v2371
    %v2373 = vextract.high.u32 %v2371
    %v2374 = vmul.u32 %v2367, %v2358
    %v2375 = vadd.s32 %v2370, %v2372
    %vm2376 = vc.u32 %v2370, %v2372
    %v2377 = vadd.s32 %v2373, 1
    %v2378 = vsel %vm2376, %v2377, %v2373
    %v2379 = vadd.s32 %v2374, %v2378
    %v2380 = vadd.s32 %v2379, 536870912
    %v2381 = vshrl.u32 %v2380, 30
    %v2382 = vshll.u32 %v2381, 30
    %v2383 = vsub.s32 %v2379, %v2382
    %vm2384 = vcmp.lt.s32.totalorder %v2383, 0
    %v2385 = vsub.s32 0, %v2383
    %v2386 = vsel %vm2384, %v2385, %v2383
    %v2387 = vclz %v2386
    %v2388 = vsub.s32 %v2387, 2
    %vm2389 = vcmp.gt.s32.totalorder 0, %v2388
    %v2390 = vsel %vm2389, 0, %v2388
    %v2391 = vsub.s32 32, %v2390
    %v2392 = vshll.u32 %v2383, %v2390
    %v2393 = vshrl.u32 %v2375, %v2391
    %v2394 = vor.u32 %v2392, %v2393
    %v2395 = vsub.s32 4294967266, %v2390
    %v2396 = vadd.s32 %v2395, 127
    %v2397 = vshll.u32 %v2396, 23
    %v2398 = vor.u32 4788187, %v2397
    %v2399 = vand.u32 2147483647, %v2398
    %v2401 = vcvt.s32.f32 %v2394
    %v2402 = vmul.f32 %v2401, %v2399
    %v2403 = vxor.u32 %v2402, 2147483648
    %v2404 = vsel %vm2321, %v2403, %v2402
    %v2405 = vsub.s32 4, %v2381
    %v2406 = vsel %vm2321, %v2405, %v2381
    %v2407 = vsel %vm2320, %v1869, %v2404
    %v2408 = vsel %vm2320, 0, %v2406
    %v2409 = vcosq.f32.pop %v2407
    %v2410 = vsinq.f32.pop %v2407
    %vm2411 = vweird.f32 %v1869
    %v2412 = vadd.s32 %v2408, 3
    %v2413 = vand.u32 %v2412, 3
    %vm2414 = vcmp.lt.s32.totalorder %v2413, 2
    %vm2415 = vcmp.eq.s32.totalorder %v2413, 0
    %v2416 = vxor.u32 %v2410, 2147483648
    %v2417 = vsel %vm2415, %v2409, %v2416
    %vm2418 = vcmp.eq.s32.totalorder %v2413, 2
    %v2419 = vxor.u32 %v2409, 2147483648
    %v2420 = vsel %vm2418, %v2419, %v2410
    %v2421 = vsel %vm2414, %v2417, %v2420
    %v2422 = vsel %vm2411, nan, %v2421
    %v2423 = vand.u32 2147483647, %v1871
    %vm2424 = vcmp.le.f32.partialorder %v2423, 0.7853982
    %vm2425 = vcmp.lt.s32.totalorder %v1871, 0
    %v2426 = vand.u32 %v1871, 2139095040
    %v2427 = vshrl.u32 %v2426, 23
    %v2428 = vsub.s32 %v2427, 127
    %v2429 = vand.u32 2147483647, %v1871
    %v2430 = vand.u32 %v2429, 8388607
    %v2431 = vor.u32 %v2430, 8388608
    %v2432 = vsub.s32 0, %v2431
    %v2433 = vadd.s32 %v2428, 1
    %vm2434 = vcmp.gt.s32.totalorder %v2433, 0
    %v2435 = vsel %vm2434, %v2433, 0
    %v2436 = vshrl.u32 %v2435, 5
    %v2437 = vand.u32 %v2435, 31
    %v2438 = vsub.s32 32, %v2437
    %v2439 = vshrl.u32 683565275, %v2438
    %v2440 = vshll.u32 683565275, %v2437
    %v2441 = vshrl.u32 2475754826, %v2438
    %v2442 = vor.u32 %v2440, %v2441
    %v2443 = vshll.u32 2475754826, %v2437
    %v2444 = vshrl.u32 2131351028, %v2438
    %v2445 = vor.u32 %v2443, %v2444
    %v2446 = vshll.u32 2131351028, %v2437
    %v2447 = vshrl.u32 2102212464, %v2438
    %v2448 = vor.u32 %v2446, %v2447
    %v2449 = vshll.u32 2102212464, %v2437
    %v2450 = vshrl.u32 920167782, %v2438
    %v2451 = vor.u32 %v2449, %v2450
    %v2452 = vshll.u32 920167782, %v2437
    %v2453 = vshrl.u32 1326507024, %v2438
    %v2454 = vor.u32 %v2452, %v2453
    %vm2455 = vcmp.lt.s32.totalorder %v2436, 1
    %vm2456 = vcmp.lt.s32.totalorder %v2436, 2
    %vm2457 = vcmp.lt.s32.totalorder %v2436, 3
    %vm2458 = vcmp.lt.s32.totalorder %v2436, 4
    %v2459 = vsel %vm2455, %v2439, %v2442
    %v2460 = vsel %vm2458, %v2448, 2102212464
    %v2461 = vsel %vm2457, %v2445, %v2460
    %v2462 = vsel %vm2456, %v2459, %v2461
    %v2463 = vsel %vm2455, %v2442, %v2445
    %v2464 = vsel %vm2458, %v2451, 920167782
    %v2465 = vsel %vm2457, %v2448, %v2464
    %v2466 = vsel %vm2456, %v2463, %v2465
    %v2467 = vsel %vm2455, %v2445, %v2448
    %v2468 = vsel %vm2458, %v2454, 1326507024
    %v2469 = vsel %vm2457, %v2451, %v2468
    %v2470 = vsel %vm2456, %v2467, %v2469
    %v2471 = vshll.u32 %v2431, 8
    %v2472 = vmul.u32.u64.compose %v2471, %v2470
    %v2473 = vextract.low.u32 %v2472
    %v2474 = vextract.high.u32 %v2472
    %v2475 = vmul.u32.u64.compose %v2471, %v2466
    %v2476 = vextract.low.u32 %v2475
    %v2477 = vextract.high.u32 %v2475
    %v2478 = vmul.u32 %v2471, %v2462
    %v2479 = vadd.s32 %v2474, %v2476
    %vm2480 = vc.u32 %v2474, %v2476
    %v2481 = vadd.s32 %v2477, 1
    %v2482 = vsel %vm2480, %v2481, %v2477
    %v2483 = vadd.s32 %v2478, %v2482
    %v2484 = vadd.s32 %v2483, 536870912
    %v2485 = vshrl.u32 %v2484, 30
    %v2486 = vshll.u32 %v2485, 30
    %v2487 = vsub.s32 %v2483, %v2486
    %vm2488 = vcmp.lt.s32.totalorder %v2487, 0
    %v2489 = vsub.s32 0, %v2487
    %v2490 = vsel %vm2488, %v2489, %v2487
    %v2491 = vclz %v2490
    %v2492 = vsub.s32 %v2491, 2
    %vm2493 = vcmp.gt.s32.totalorder 0, %v2492
    %v2494 = vsel %vm2493, 0, %v2492
    %v2495 = vsub.s32 32, %v2494
    %v2496 = vshll.u32 %v2487, %v2494
    %v2497 = vshrl.u32 %v2479, %v2495
    %v2498 = vor.u32 %v2496, %v2497
    %v2499 = vsub.s32 4294967266, %v2494
    %v2500 = vadd.s32 %v2499, 127
    %v2501 = vshll.u32 %v2500, 23
    %v2502 = vor.u32 4788187, %v2501
    %v2503 = vand.u32 2147483647, %v2502
    %v2505 = vcvt.s32.f32 %v2498
    %v2506 = vmul.f32 %v2505, %v2503
    %v2507 = vxor.u32 %v2506, 2147483648
    %v2508 = vsel %vm2425, %v2507, %v2506
    %v2509 = vsub.s32 4, %v2485
    %v2510 = vsel %vm2425, %v2509, %v2485
    %v2511 = vsel %vm2424, %v1871, %v2508
    %v2512 = vsel %vm2424, 0, %v2510
    %v2513 = vcosq.f32.pop %v2511
    %v2514 = vsinq.f32.pop %v2511
    %vm2515 = vweird.f32 %v1871
    %v2516 = vadd.s32 %v2512, 3
    %v2517 = vand.u32 %v2516, 3
    %vm2518 = vcmp.lt.s32.totalorder %v2517, 2
    %vm2519 = vcmp.eq.s32.totalorder %v2517, 0
    %v2520 = vxor.u32 %v2514, 2147483648
    %v2521 = vsel %vm2519, %v2513, %v2520
    %vm2522 = vcmp.eq.s32.totalorder %v2517, 2
    %v2523 = vxor.u32 %v2513, 2147483648
    %v2524 = vsel %vm2522, %v2523, %v2514
    %v2525 = vsel %vm2518, %v2521, %v2524
    %v2526 = vsel %vm2515, nan, %v2525
    %v2527 = vand.u32 2147483647, %v1875
    %vm2528 = vcmp.le.f32.partialorder %v2527, 0.7853982
    %vm2529 = vcmp.lt.s32.totalorder %v1875, 0
    %v2530 = vand.u32 %v1875, 2139095040
    %v2531 = vshrl.u32 %v2530, 23
    %v2532 = vsub.s32 %v2531, 127
    %v2533 = vand.u32 2147483647, %v1875
    %v2534 = vand.u32 %v2533, 8388607
    %v2535 = vor.u32 %v2534, 8388608
    %v2536 = vsub.s32 0, %v2535
    %v2537 = vadd.s32 %v2532, 1
    %vm2538 = vcmp.gt.s32.totalorder %v2537, 0
    %v2539 = vsel %vm2538, %v2537, 0
    %v2540 = vshrl.u32 %v2539, 5
    %v2541 = vand.u32 %v2539, 31
    %v2542 = vsub.s32 32, %v2541
    %v2543 = vshrl.u32 683565275, %v2542
    %v2544 = vshll.u32 683565275, %v2541
    %v2545 = vshrl.u32 2475754826, %v2542
    %v2546 = vor.u32 %v2544, %v2545
    %v2547 = vshll.u32 2475754826, %v2541
    %v2548 = vshrl.u32 2131351028, %v2542
    %v2549 = vor.u32 %v2547, %v2548
    %v2550 = vshll.u32 2131351028, %v2541
    %v2551 = vshrl.u32 2102212464, %v2542
    %v2552 = vor.u32 %v2550, %v2551
    %v2553 = vshll.u32 2102212464, %v2541
    %v2554 = vshrl.u32 920167782, %v2542
    %v2555 = vor.u32 %v2553, %v2554
    %v2556 = vshll.u32 920167782, %v2541
    %v2557 = vshrl.u32 1326507024, %v2542
    %v2558 = vor.u32 %v2556, %v2557
    %vm2559 = vcmp.lt.s32.totalorder %v2540, 1
    %vm2560 = vcmp.lt.s32.totalorder %v2540, 2
    %vm2561 = vcmp.lt.s32.totalorder %v2540, 3
    %vm2562 = vcmp.lt.s32.totalorder %v2540, 4
    %v2563 = vsel %vm2559, %v2543, %v2546
    %v2564 = vsel %vm2562, %v2552, 2102212464
    %v2565 = vsel %vm2561, %v2549, %v2564
    %v2566 = vsel %vm2560, %v2563, %v2565
    %v2567 = vsel %vm2559, %v2546, %v2549
    %v2568 = vsel %vm2562, %v2555, 920167782
    %v2569 = vsel %vm2561, %v2552, %v2568
    %v2570 = vsel %vm2560, %v2567, %v2569
    %v2571 = vsel %vm2559, %v2549, %v2552
    %v2572 = vsel %vm2562, %v2558, 1326507024
    %v2573 = vsel %vm2561, %v2555, %v2572
    %v2574 = vsel %vm2560, %v2571, %v2573
    %v2575 = vshll.u32 %v2535, 8
    %v2576 = vmul.u32.u64.compose %v2575, %v2574
    %v2577 = vextract.low.u32 %v2576
    %v2578 = vextract.high.u32 %v2576
    %v2579 = vmul.u32.u64.compose %v2575, %v2570
    %v2580 = vextract.low.u32 %v2579
    %v2581 = vextract.high.u32 %v2579
    %v2582 = vmul.u32 %v2575, %v2566
    %v2583 = vadd.s32 %v2578, %v2580
    %vm2584 = vc.u32 %v2578, %v2580
    %v2585 = vadd.s32 %v2581, 1
    %v2586 = vsel %vm2584, %v2585, %v2581
    %v2587 = vadd.s32 %v2582, %v2586
    %v2588 = vadd.s32 %v2587, 536870912
    %v2589 = vshrl.u32 %v2588, 30
    %v2590 = vshll.u32 %v2589, 30
    %v2591 = vsub.s32 %v2587, %v2590
    %vm2592 = vcmp.lt.s32.totalorder %v2591, 0
    %v2593 = vsub.s32 0, %v2591
    %v2594 = vsel %vm2592, %v2593, %v2591
    %v2595 = vclz %v2594
    %v2596 = vsub.s32 %v2595, 2
    %vm2597 = vcmp.gt.s32.totalorder 0, %v2596
    %v2598 = vsel %vm2597, 0, %v2596
    %v2599 = vsub.s32 32, %v2598
    %v2600 = vshll.u32 %v2591, %v2598
    %v2601 = vshrl.u32 %v2583, %v2599
    %v2602 = vor.u32 %v2600, %v2601
    %v2603 = vsub.s32 4294967266, %v2598
    %v2604 = vadd.s32 %v2603, 127
    %v2605 = vshll.u32 %v2604, 23
    %v2606 = vor.u32 4788187, %v2605
    %v2607 = vand.u32 2147483647, %v2606
    %v2609 = vcvt.s32.f32 %v2602
    %v2610 = vmul.f32 %v2609, %v2607
    %v2611 = vxor.u32 %v2610, 2147483648
    %v2612 = vsel %vm2529, %v2611, %v2610
    %v2613 = vsub.s32 4, %v2589
    %v2614 = vsel %vm2529, %v2613, %v2589
    %v2615 = vsel %vm2528, %v1875, %v2612
    %v2616 = vsel %vm2528, 0, %v2614
    %v2617 = vcosq.f32.pop %v2615
    %v2618 = vsinq.f32.pop %v2615
    %vm2619 = vweird.f32 %v1875
    %v2620 = vadd.s32 %v2616, 3
    %v2621 = vand.u32 %v2620, 3
    %vm2622 = vcmp.lt.s32.totalorder %v2621, 2
    %vm2623 = vcmp.eq.s32.totalorder %v2621, 0
    %v2624 = vxor.u32 %v2618, 2147483648
    %v2625 = vsel %vm2623, %v2617, %v2624
    %vm2626 = vcmp.eq.s32.totalorder %v2621, 2
    %v2627 = vxor.u32 %v2617, 2147483648
    %v2628 = vsel %vm2626, %v2627, %v2618
    %v2629 = vsel %vm2622, %v2625, %v2628
    %v2630 = vsel %vm2619, nan, %v2629
    %v2631 = vand.u32 2147483647, %v1877
    %vm2632 = vcmp.le.f32.partialorder %v2631, 0.7853982
    %vm2633 = vcmp.lt.s32.totalorder %v1877, 0
    %v2634 = vand.u32 %v1877, 2139095040
    %v2635 = vshrl.u32 %v2634, 23
    %v2636 = vsub.s32 %v2635, 127
    %v2637 = vand.u32 2147483647, %v1877
    %v2638 = vand.u32 %v2637, 8388607
    %v2639 = vor.u32 %v2638, 8388608
    %v2640 = vsub.s32 0, %v2639
    %v2641 = vadd.s32 %v2636, 1
    %vm2642 = vcmp.gt.s32.totalorder %v2641, 0
    %v2643 = vsel %vm2642, %v2641, 0
    %v2644 = vshrl.u32 %v2643, 5
    %v2645 = vand.u32 %v2643, 31
    %v2646 = vsub.s32 32, %v2645
    %v2647 = vshrl.u32 683565275, %v2646
    %v2648 = vshll.u32 683565275, %v2645
    %v2649 = vshrl.u32 2475754826, %v2646
    %v2650 = vor.u32 %v2648, %v2649
    %v2651 = vshll.u32 2475754826, %v2645
    %v2652 = vshrl.u32 2131351028, %v2646
    %v2653 = vor.u32 %v2651, %v2652
    %v2654 = vshll.u32 2131351028, %v2645
    %v2655 = vshrl.u32 2102212464, %v2646
    %v2656 = vor.u32 %v2654, %v2655
    %v2657 = vshll.u32 2102212464, %v2645
    %v2658 = vshrl.u32 920167782, %v2646
    %v2659 = vor.u32 %v2657, %v2658
    %v2660 = vshll.u32 920167782, %v2645
    %v2661 = vshrl.u32 1326507024, %v2646
    %v2662 = vor.u32 %v2660, %v2661
    %vm2663 = vcmp.lt.s32.totalorder %v2644, 1
    %vm2664 = vcmp.lt.s32.totalorder %v2644, 2
    %vm2665 = vcmp.lt.s32.totalorder %v2644, 3
    %vm2666 = vcmp.lt.s32.totalorder %v2644, 4
    %v2667 = vsel %vm2663, %v2647, %v2650
    %v2668 = vsel %vm2666, %v2656, 2102212464
    %v2669 = vsel %vm2665, %v2653, %v2668
    %v2670 = vsel %vm2664, %v2667, %v2669
    %v2671 = vsel %vm2663, %v2650, %v2653
    %v2672 = vsel %vm2666, %v2659, 920167782
    %v2673 = vsel %vm2665, %v2656, %v2672
    %v2674 = vsel %vm2664, %v2671, %v2673
    %v2675 = vsel %vm2663, %v2653, %v2656
    %v2676 = vsel %vm2666, %v2662, 1326507024
    %v2677 = vsel %vm2665, %v2659, %v2676
    %v2678 = vsel %vm2664, %v2675, %v2677
    %v2679 = vshll.u32 %v2639, 8
    %v2680 = vmul.u32.u64.compose %v2679, %v2678
    %v2681 = vextract.low.u32 %v2680
    %v2682 = vextract.high.u32 %v2680
    %v2683 = vmul.u32.u64.compose %v2679, %v2674
    %v2684 = vextract.low.u32 %v2683
    %v2685 = vextract.high.u32 %v2683
    %v2686 = vmul.u32 %v2679, %v2670
    %v2687 = vadd.s32 %v2682, %v2684
    %vm2688 = vc.u32 %v2682, %v2684
    %v2689 = vadd.s32 %v2685, 1
    %v2690 = vsel %vm2688, %v2689, %v2685
    %v2691 = vadd.s32 %v2686, %v2690
    %v2692 = vadd.s32 %v2691, 536870912
    %v2693 = vshrl.u32 %v2692, 30
    %v2694 = vshll.u32 %v2693, 30
    %v2695 = vsub.s32 %v2691, %v2694
    %vm2696 = vcmp.lt.s32.totalorder %v2695, 0
    %v2697 = vsub.s32 0, %v2695
    %v2698 = vsel %vm2696, %v2697, %v2695
    %v2699 = vclz %v2698
    %v2700 = vsub.s32 %v2699, 2
    %vm2701 = vcmp.gt.s32.totalorder 0, %v2700
    %v2702 = vsel %vm2701, 0, %v2700
    %v2703 = vsub.s32 32, %v2702
    %v2704 = vshll.u32 %v2695, %v2702
    %v2705 = vshrl.u32 %v2687, %v2703
    %v2706 = vor.u32 %v2704, %v2705
    %v2707 = vsub.s32 4294967266, %v2702
    %v2708 = vadd.s32 %v2707, 127
    %v2709 = vshll.u32 %v2708, 23
    %v2710 = vor.u32 4788187, %v2709
    %v2711 = vand.u32 2147483647, %v2710
    %v2713 = vcvt.s32.f32 %v2706
    %v2714 = vmul.f32 %v2713, %v2711
    %v2715 = vxor.u32 %v2714, 2147483648
    %v2716 = vsel %vm2633, %v2715, %v2714
    %v2717 = vsub.s32 4, %v2693
    %v2718 = vsel %vm2633, %v2717, %v2693
    %v2719 = vsel %vm2632, %v1877, %v2716
    %v2720 = vsel %vm2632, 0, %v2718
    %v2721 = vcosq.f32.pop %v2719
    %v2722 = vsinq.f32.pop %v2719
    %vm2723 = vweird.f32 %v1877
    %v2724 = vadd.s32 %v2720, 3
    %v2725 = vand.u32 %v2724, 3
    %vm2726 = vcmp.lt.s32.totalorder %v2725, 2
    %vm2727 = vcmp.eq.s32.totalorder %v2725, 0
    %v2728 = vxor.u32 %v2722, 2147483648
    %v2729 = vsel %vm2727, %v2721, %v2728
    %vm2730 = vcmp.eq.s32.totalorder %v2725, 2
    %v2731 = vxor.u32 %v2721, 2147483648
    %v2732 = vsel %vm2730, %v2731, %v2722
    %v2733 = vsel %vm2726, %v2729, %v2732
    %v2734 = vsel %vm2723, nan, %v2733
    %v2735 = vand.u32 2147483647, %v1881
    %vm2736 = vcmp.le.f32.partialorder %v2735, 0.7853982
    %vm2737 = vcmp.lt.s32.totalorder %v1881, 0
    %v2738 = vand.u32 %v1881, 2139095040
    %v2739 = vshrl.u32 %v2738, 23
    %v2740 = vsub.s32 %v2739, 127
    %v2741 = vand.u32 2147483647, %v1881
    %v2742 = vand.u32 %v2741, 8388607
    %v2743 = vor.u32 %v2742, 8388608
    %v2744 = vsub.s32 0, %v2743
    %v2745 = vadd.s32 %v2740, 1
    %vm2746 = vcmp.gt.s32.totalorder %v2745, 0
    %v2747 = vsel %vm2746, %v2745, 0
    %v2748 = vshrl.u32 %v2747, 5
    %v2749 = vand.u32 %v2747, 31
    %v2750 = vsub.s32 32, %v2749
    %v2751 = vshrl.u32 683565275, %v2750
    %v2752 = vshll.u32 683565275, %v2749
    %v2753 = vshrl.u32 2475754826, %v2750
    %v2754 = vor.u32 %v2752, %v2753
    %v2755 = vshll.u32 2475754826, %v2749
    %v2756 = vshrl.u32 2131351028, %v2750
    %v2757 = vor.u32 %v2755, %v2756
    %v2758 = vshll.u32 2131351028, %v2749
    %v2759 = vshrl.u32 2102212464, %v2750
    %v2760 = vor.u32 %v2758, %v2759
    %v2761 = vshll.u32 2102212464, %v2749
    %v2762 = vshrl.u32 920167782, %v2750
    %v2763 = vor.u32 %v2761, %v2762
    %v2764 = vshll.u32 920167782, %v2749
    %v2765 = vshrl.u32 1326507024, %v2750
    %v2766 = vor.u32 %v2764, %v2765
    %vm2767 = vcmp.lt.s32.totalorder %v2748, 1
    %vm2768 = vcmp.lt.s32.totalorder %v2748, 2
    %vm2769 = vcmp.lt.s32.totalorder %v2748, 3
    %vm2770 = vcmp.lt.s32.totalorder %v2748, 4
    %v2771 = vsel %vm2767, %v2751, %v2754
    %v2772 = vsel %vm2770, %v2760, 2102212464
    %v2773 = vsel %vm2769, %v2757, %v2772
    %v2774 = vsel %vm2768, %v2771, %v2773
    %v2775 = vsel %vm2767, %v2754, %v2757
    %v2776 = vsel %vm2770, %v2763, 920167782
    %v2777 = vsel %vm2769, %v2760, %v2776
    %v2778 = vsel %vm2768, %v2775, %v2777
    %v2779 = vsel %vm2767, %v2757, %v2760
    %v2780 = vsel %vm2770, %v2766, 1326507024
    %v2781 = vsel %vm2769, %v2763, %v2780
    %v2782 = vsel %vm2768, %v2779, %v2781
    %v2783 = vshll.u32 %v2743, 8
    %v2784 = vmul.u32.u64.compose %v2783, %v2782
    %v2785 = vextract.low.u32 %v2784
    %v2786 = vextract.high.u32 %v2784
    %v2787 = vmul.u32.u64.compose %v2783, %v2778
    %v2788 = vextract.low.u32 %v2787
    %v2789 = vextract.high.u32 %v2787
    %v2790 = vmul.u32 %v2783, %v2774
    %v2791 = vadd.s32 %v2786, %v2788
    %vm2792 = vc.u32 %v2786, %v2788
    %v2793 = vadd.s32 %v2789, 1
    %v2794 = vsel %vm2792, %v2793, %v2789
    %v2795 = vadd.s32 %v2790, %v2794
    %v2796 = vadd.s32 %v2795, 536870912
    %v2797 = vshrl.u32 %v2796, 30
    %v2798 = vshll.u32 %v2797, 30
    %v2799 = vsub.s32 %v2795, %v2798
    %vm2800 = vcmp.lt.s32.totalorder %v2799, 0
    %v2801 = vsub.s32 0, %v2799
    %v2802 = vsel %vm2800, %v2801, %v2799
    %v2803 = vclz %v2802
    %v2804 = vsub.s32 %v2803, 2
    %vm2805 = vcmp.gt.s32.totalorder 0, %v2804
    %v2806 = vsel %vm2805, 0, %v2804
    %v2807 = vsub.s32 32, %v2806
    %v2808 = vshll.u32 %v2799, %v2806
    %v2809 = vshrl.u32 %v2791, %v2807
    %v2810 = vor.u32 %v2808, %v2809
    %v2811 = vsub.s32 4294967266, %v2806
    %v2812 = vadd.s32 %v2811, 127
    %v2813 = vshll.u32 %v2812, 23
    %v2814 = vor.u32 4788187, %v2813
    %v2815 = vand.u32 2147483647, %v2814
    %v2817 = vcvt.s32.f32 %v2810
    %v2818 = vmul.f32 %v2817, %v2815
    %v2819 = vxor.u32 %v2818, 2147483648
    %v2820 = vsel %vm2737, %v2819, %v2818
    %v2821 = vsub.s32 4, %v2797
    %v2822 = vsel %vm2737, %v2821, %v2797
    %v2823 = vsel %vm2736, %v1881, %v2820
    %v2824 = vsel %vm2736, 0, %v2822
    %v2825 = vcosq.f32.pop %v2823
    %v2826 = vsinq.f32.pop %v2823
    %vm2827 = vweird.f32 %v1881
    %v2828 = vadd.s32 %v2824, 3
    %v2829 = vand.u32 %v2828, 3
    %vm2830 = vcmp.lt.s32.totalorder %v2829, 2
    %vm2831 = vcmp.eq.s32.totalorder %v2829, 0
    %v2832 = vxor.u32 %v2826, 2147483648
    %v2833 = vsel %vm2831, %v2825, %v2832
    %vm2834 = vcmp.eq.s32.totalorder %v2829, 2
    %v2835 = vxor.u32 %v2825, 2147483648
    %v2836 = vsel %vm2834, %v2835, %v2826
    %v2837 = vsel %vm2830, %v2833, %v2836
    %v2838 = vsel %vm2827, nan, %v2837
    %v2839 = vand.u32 2147483647, %v1883
    %vm2840 = vcmp.le.f32.partialorder %v2839, 0.7853982
    %vm2841 = vcmp.lt.s32.totalorder %v1883, 0
    %v2842 = vand.u32 %v1883, 2139095040
    %v2843 = vshrl.u32 %v2842, 23
    %v2844 = vsub.s32 %v2843, 127
    %v2845 = vand.u32 2147483647, %v1883
    %v2846 = vand.u32 %v2845, 8388607
    %v2847 = vor.u32 %v2846, 8388608
    %v2848 = vsub.s32 0, %v2847
    %v2849 = vadd.s32 %v2844, 1
    %vm2850 = vcmp.gt.s32.totalorder %v2849, 0
    %v2851 = vsel %vm2850, %v2849, 0
    %v2852 = vshrl.u32 %v2851, 5
    %v2853 = vand.u32 %v2851, 31
    %v2854 = vsub.s32 32, %v2853
    %v2855 = vshrl.u32 683565275, %v2854
    %v2856 = vshll.u32 683565275, %v2853
    %v2857 = vshrl.u32 2475754826, %v2854
    %v2858 = vor.u32 %v2856, %v2857
    %v2859 = vshll.u32 2475754826, %v2853
    %v2860 = vshrl.u32 2131351028, %v2854
    %v2861 = vor.u32 %v2859, %v2860
    %v2862 = vshll.u32 2131351028, %v2853
    %v2863 = vshrl.u32 2102212464, %v2854
    %v2864 = vor.u32 %v2862, %v2863
    %v2865 = vshll.u32 2102212464, %v2853
    %v2866 = vshrl.u32 920167782, %v2854
    %v2867 = vor.u32 %v2865, %v2866
    %v2868 = vshll.u32 920167782, %v2853
    %v2869 = vshrl.u32 1326507024, %v2854
    %v2870 = vor.u32 %v2868, %v2869
    %vm2871 = vcmp.lt.s32.totalorder %v2852, 1
    %vm2872 = vcmp.lt.s32.totalorder %v2852, 2
    %vm2873 = vcmp.lt.s32.totalorder %v2852, 3
    %vm2874 = vcmp.lt.s32.totalorder %v2852, 4
    %v2875 = vsel %vm2871, %v2855, %v2858
    %v2876 = vsel %vm2874, %v2864, 2102212464
    %v2877 = vsel %vm2873, %v2861, %v2876
    %v2878 = vsel %vm2872, %v2875, %v2877
    %v2879 = vsel %vm2871, %v2858, %v2861
    %v2880 = vsel %vm2874, %v2867, 920167782
    %v2881 = vsel %vm2873, %v2864, %v2880
    %v2882 = vsel %vm2872, %v2879, %v2881
    %v2883 = vsel %vm2871, %v2861, %v2864
    %v2884 = vsel %vm2874, %v2870, 1326507024
    %v2885 = vsel %vm2873, %v2867, %v2884
    %v2886 = vsel %vm2872, %v2883, %v2885
    %v2887 = vshll.u32 %v2847, 8
    %v2888 = vmul.u32.u64.compose %v2887, %v2886
    %v2889 = vextract.low.u32 %v2888
    %v2890 = vextract.high.u32 %v2888
    %v2891 = vmul.u32.u64.compose %v2887, %v2882
    %v2892 = vextract.low.u32 %v2891
    %v2893 = vextract.high.u32 %v2891
    %v2894 = vmul.u32 %v2887, %v2878
    %v2895 = vadd.s32 %v2890, %v2892
    %vm2896 = vc.u32 %v2890, %v2892
    %v2897 = vadd.s32 %v2893, 1
    %v2898 = vsel %vm2896, %v2897, %v2893
    %v2899 = vadd.s32 %v2894, %v2898
    %v2900 = vadd.s32 %v2899, 536870912
    %v2901 = vshrl.u32 %v2900, 30
    %v2902 = vshll.u32 %v2901, 30
    %v2903 = vsub.s32 %v2899, %v2902
    %vm2904 = vcmp.lt.s32.totalorder %v2903, 0
    %v2905 = vsub.s32 0, %v2903
    %v2906 = vsel %vm2904, %v2905, %v2903
    %v2907 = vclz %v2906
    %v2908 = vsub.s32 %v2907, 2
    %vm2909 = vcmp.gt.s32.totalorder 0, %v2908
    %v2910 = vsel %vm2909, 0, %v2908
    %v2911 = vsub.s32 32, %v2910
    %v2912 = vshll.u32 %v2903, %v2910
    %v2913 = vshrl.u32 %v2895, %v2911
    %v2914 = vor.u32 %v2912, %v2913
    %v2915 = vsub.s32 4294967266, %v2910
    %v2916 = vadd.s32 %v2915, 127
    %v2917 = vshll.u32 %v2916, 23
    %v2918 = vor.u32 4788187, %v2917
    %v2919 = vand.u32 2147483647, %v2918
    %v2921 = vcvt.s32.f32 %v2914
    %v2922 = vmul.f32 %v2921, %v2919
    %v2923 = vxor.u32 %v2922, 2147483648
    %v2924 = vsel %vm2841, %v2923, %v2922
    %v2925 = vsub.s32 4, %v2901
    %v2926 = vsel %vm2841, %v2925, %v2901
    %v2927 = vsel %vm2840, %v1883, %v2924
    %v2928 = vsel %vm2840, 0, %v2926
    %v2929 = vcosq.f32.pop %v2927
    %v2930 = vsinq.f32.pop %v2927
    %vm2931 = vweird.f32 %v1883
    %v2932 = vadd.s32 %v2928, 3
    %v2933 = vand.u32 %v2932, 3
    %vm2934 = vcmp.lt.s32.totalorder %v2933, 2
    %vm2935 = vcmp.eq.s32.totalorder %v2933, 0
    %v2936 = vxor.u32 %v2930, 2147483648
    %v2937 = vsel %vm2935, %v2929, %v2936
    %vm2938 = vcmp.eq.s32.totalorder %v2933, 2
    %v2939 = vxor.u32 %v2929, 2147483648
    %v2940 = vsel %vm2938, %v2939, %v2930
    %v2941 = vsel %vm2934, %v2937, %v2940
    %v2942 = vsel %vm2931, nan, %v2941
    %v2943 = vand.u32 2147483647, %v1887
    %vm2944 = vcmp.le.f32.partialorder %v2943, 0.7853982
    %vm2945 = vcmp.lt.s32.totalorder %v1887, 0
    %v2946 = vand.u32 %v1887, 2139095040
    %v2947 = vshrl.u32 %v2946, 23
    %v2948 = vsub.s32 %v2947, 127
    %v2949 = vand.u32 2147483647, %v1887
    %v2950 = vand.u32 %v2949, 8388607
    %v2951 = vor.u32 %v2950, 8388608
    %v2952 = vsub.s32 0, %v2951
    %v2953 = vadd.s32 %v2948, 1
    %vm2954 = vcmp.gt.s32.totalorder %v2953, 0
    %v2955 = vsel %vm2954, %v2953, 0
    %v2956 = vshrl.u32 %v2955, 5
    %v2957 = vand.u32 %v2955, 31
    %v2958 = vsub.s32 32, %v2957
    %v2959 = vshrl.u32 683565275, %v2958
    %v2960 = vshll.u32 683565275, %v2957
    %v2961 = vshrl.u32 2475754826, %v2958
    %v2962 = vor.u32 %v2960, %v2961
    %v2963 = vshll.u32 2475754826, %v2957
    %v2964 = vshrl.u32 2131351028, %v2958
    %v2965 = vor.u32 %v2963, %v2964
    %v2966 = vshll.u32 2131351028, %v2957
    %v2967 = vshrl.u32 2102212464, %v2958
    %v2968 = vor.u32 %v2966, %v2967
    %v2969 = vshll.u32 2102212464, %v2957
    %v2970 = vshrl.u32 920167782, %v2958
    %v2971 = vor.u32 %v2969, %v2970
    %v2972 = vshll.u32 920167782, %v2957
    %v2973 = vshrl.u32 1326507024, %v2958
    %v2974 = vor.u32 %v2972, %v2973
    %vm2975 = vcmp.lt.s32.totalorder %v2956, 1
    %vm2976 = vcmp.lt.s32.totalorder %v2956, 2
    %vm2977 = vcmp.lt.s32.totalorder %v2956, 3
    %vm2978 = vcmp.lt.s32.totalorder %v2956, 4
    %v2979 = vsel %vm2975, %v2959, %v2962
    %v2980 = vsel %vm2978, %v2968, 2102212464
    %v2981 = vsel %vm2977, %v2965, %v2980
    %v2982 = vsel %vm2976, %v2979, %v2981
    %v2983 = vsel %vm2975, %v2962, %v2965
    %v2984 = vsel %vm2978, %v2971, 920167782
    %v2985 = vsel %vm2977, %v2968, %v2984
    %v2986 = vsel %vm2976, %v2983, %v2985
    %v2987 = vsel %vm2975, %v2965, %v2968
    %v2988 = vsel %vm2978, %v2974, 1326507024
    %v2989 = vsel %vm2977, %v2971, %v2988
    %v2990 = vsel %vm2976, %v2987, %v2989
    %v2991 = vshll.u32 %v2951, 8
    %v2992 = vmul.u32.u64.compose %v2991, %v2990
    %v2993 = vextract.low.u32 %v2992
    %v2994 = vextract.high.u32 %v2992
    %v2995 = vmul.u32.u64.compose %v2991, %v2986
    %v2996 = vextract.low.u32 %v2995
    %v2997 = vextract.high.u32 %v2995
    %v2998 = vmul.u32 %v2991, %v2982
    %v2999 = vadd.s32 %v2994, %v2996
    %vm3000 = vc.u32 %v2994, %v2996
    %v3001 = vadd.s32 %v2997, 1
    %v3002 = vsel %vm3000, %v3001, %v2997
    %v3003 = vadd.s32 %v2998, %v3002
    %v3004 = vadd.s32 %v3003, 536870912
    %v3005 = vshrl.u32 %v3004, 30
    %v3006 = vshll.u32 %v3005, 30
    %v3007 = vsub.s32 %v3003, %v3006
    %vm3008 = vcmp.lt.s32.totalorder %v3007, 0
    %v3009 = vsub.s32 0, %v3007
    %v3010 = vsel %vm3008, %v3009, %v3007
    %v3011 = vclz %v3010
    %v3012 = vsub.s32 %v3011, 2
    %vm3013 = vcmp.gt.s32.totalorder 0, %v3012
    %v3014 = vsel %vm3013, 0, %v3012
    %v3015 = vsub.s32 32, %v3014
    %v3016 = vshll.u32 %v3007, %v3014
    %v3017 = vshrl.u32 %v2999, %v3015
    %v3018 = vor.u32 %v3016, %v3017
    %v3019 = vsub.s32 4294967266, %v3014
    %v3020 = vadd.s32 %v3019, 127
    %v3021 = vshll.u32 %v3020, 23
    %v3022 = vor.u32 4788187, %v3021
    %v3023 = vand.u32 2147483647, %v3022
    %v3025 = vcvt.s32.f32 %v3018
    %v3026 = vmul.f32 %v3025, %v3023
    %v3027 = vxor.u32 %v3026, 2147483648
    %v3028 = vsel %vm2945, %v3027, %v3026
    %v3029 = vsub.s32 4, %v3005
    %v3030 = vsel %vm2945, %v3029, %v3005
    %v3031 = vsel %vm2944, %v1887, %v3028
    %v3032 = vsel %vm2944, 0, %v3030
    %v3033 = vcosq.f32.pop %v3031
    %v3034 = vsinq.f32.pop %v3031
    %vm3035 = vweird.f32 %v1887
    %v3036 = vadd.s32 %v3032, 3
    %v3037 = vand.u32 %v3036, 3
    %vm3038 = vcmp.lt.s32.totalorder %v3037, 2
    %vm3039 = vcmp.eq.s32.totalorder %v3037, 0
    %v3040 = vxor.u32 %v3034, 2147483648
    %v3041 = vsel %vm3039, %v3033, %v3040
    %vm3042 = vcmp.eq.s32.totalorder %v3037, 2
    %v3043 = vxor.u32 %v3033, 2147483648
    %v3044 = vsel %vm3042, %v3043, %v3034
    %v3045 = vsel %vm3038, %v3041, %v3044
    %v3046 = vsel %vm3035, nan, %v3045
    %v3047 = vand.u32 2147483647, %v1889
    %vm3048 = vcmp.le.f32.partialorder %v3047, 0.7853982
    %vm3049 = vcmp.lt.s32.totalorder %v1889, 0
    %v3050 = vand.u32 %v1889, 2139095040
    %v3051 = vshrl.u32 %v3050, 23
    %v3052 = vsub.s32 %v3051, 127
    %v3053 = vand.u32 2147483647, %v1889
    %v3054 = vand.u32 %v3053, 8388607
    %v3055 = vor.u32 %v3054, 8388608
    %v3056 = vsub.s32 0, %v3055
    %v3057 = vadd.s32 %v3052, 1
    %vm3058 = vcmp.gt.s32.totalorder %v3057, 0
    %v3059 = vsel %vm3058, %v3057, 0
    %v3060 = vshrl.u32 %v3059, 5
    %v3061 = vand.u32 %v3059, 31
    %v3062 = vsub.s32 32, %v3061
    %v3063 = vshrl.u32 683565275, %v3062
    %v3064 = vshll.u32 683565275, %v3061
    %v3065 = vshrl.u32 2475754826, %v3062
    %v3066 = vor.u32 %v3064, %v3065
    %v3067 = vshll.u32 2475754826, %v3061
    %v3068 = vshrl.u32 2131351028, %v3062
    %v3069 = vor.u32 %v3067, %v3068
    %v3070 = vshll.u32 2131351028, %v3061
    %v3071 = vshrl.u32 2102212464, %v3062
    %v3072 = vor.u32 %v3070, %v3071
    %v3073 = vshll.u32 2102212464, %v3061
    %v3074 = vshrl.u32 920167782, %v3062
    %v3075 = vor.u32 %v3073, %v3074
    %v3076 = vshll.u32 920167782, %v3061
    %v3077 = vshrl.u32 1326507024, %v3062
    %v3078 = vor.u32 %v3076, %v3077
    %vm3079 = vcmp.lt.s32.totalorder %v3060, 1
    %vm3080 = vcmp.lt.s32.totalorder %v3060, 2
    %vm3081 = vcmp.lt.s32.totalorder %v3060, 3
    %vm3082 = vcmp.lt.s32.totalorder %v3060, 4
    %v3083 = vsel %vm3079, %v3063, %v3066
    %v3084 = vsel %vm3082, %v3072, 2102212464
    %v3085 = vsel %vm3081, %v3069, %v3084
    %v3086 = vsel %vm3080, %v3083, %v3085
    %v3087 = vsel %vm3079, %v3066, %v3069
    %v3088 = vsel %vm3082, %v3075, 920167782
    %v3089 = vsel %vm3081, %v3072, %v3088
    %v3090 = vsel %vm3080, %v3087, %v3089
    %v3091 = vsel %vm3079, %v3069, %v3072
    %v3092 = vsel %vm3082, %v3078, 1326507024
    %v3093 = vsel %vm3081, %v3075, %v3092
    %v3094 = vsel %vm3080, %v3091, %v3093
    %v3095 = vshll.u32 %v3055, 8
    %v3096 = vmul.u32.u64.compose %v3095, %v3094
    %v3097 = vextract.low.u32 %v3096
    %v3098 = vextract.high.u32 %v3096
    %v3099 = vmul.u32.u64.compose %v3095, %v3090
    %v3100 = vextract.low.u32 %v3099
    %v3101 = vextract.high.u32 %v3099
    %v3102 = vmul.u32 %v3095, %v3086
    %v3103 = vadd.s32 %v3098, %v3100
    %vm3104 = vc.u32 %v3098, %v3100
    %v3105 = vadd.s32 %v3101, 1
    %v3106 = vsel %vm3104, %v3105, %v3101
    %v3107 = vadd.s32 %v3102, %v3106
    %v3108 = vadd.s32 %v3107, 536870912
    %v3109 = vshrl.u32 %v3108, 30
    %v3110 = vshll.u32 %v3109, 30
    %v3111 = vsub.s32 %v3107, %v3110
    %vm3112 = vcmp.lt.s32.totalorder %v3111, 0
    %v3113 = vsub.s32 0, %v3111
    %v3114 = vsel %vm3112, %v3113, %v3111
    %v3115 = vclz %v3114
    %v3116 = vsub.s32 %v3115, 2
    %vm3117 = vcmp.gt.s32.totalorder 0, %v3116
    %v3118 = vsel %vm3117, 0, %v3116
    %v3119 = vsub.s32 32, %v3118
    %v3120 = vshll.u32 %v3111, %v3118
    %v3121 = vshrl.u32 %v3103, %v3119
    %v3122 = vor.u32 %v3120, %v3121
    %v3123 = vsub.s32 4294967266, %v3118
    %v3124 = vadd.s32 %v3123, 127
    %v3125 = vshll.u32 %v3124, 23
    %v3126 = vor.u32 4788187, %v3125
    %v3127 = vand.u32 2147483647, %v3126
    %v3129 = vcvt.s32.f32 %v3122
    %v3130 = vmul.f32 %v3129, %v3127
    %v3131 = vxor.u32 %v3130, 2147483648
    %v3132 = vsel %vm3049, %v3131, %v3130
    %v3133 = vsub.s32 4, %v3109
    %v3134 = vsel %vm3049, %v3133, %v3109
    %v3135 = vsel %vm3048, %v1889, %v3132
    %v3136 = vsel %vm3048, 0, %v3134
    %v3137 = vcosq.f32.pop %v3135
    %v3138 = vsinq.f32.pop %v3135
    %vm3139 = vweird.f32 %v1889
    %v3140 = vadd.s32 %v3136, 3
    %v3141 = vand.u32 %v3140, 3
    %vm3142 = vcmp.lt.s32.totalorder %v3141, 2
    %vm3143 = vcmp.eq.s32.totalorder %v3141, 0
    %v3144 = vxor.u32 %v3138, 2147483648
    %v3145 = vsel %vm3143, %v3137, %v3144
    %vm3146 = vcmp.eq.s32.totalorder %v3141, 2
    %v3147 = vxor.u32 %v3137, 2147483648
    %v3148 = vsel %vm3146, %v3147, %v3138
    %v3149 = vsel %vm3142, %v3145, %v3148
    %v3150 = vsel %vm3139, nan, %v3149
    %v3151 = vand.u32 2147483647, %v1893
    %vm3152 = vcmp.le.f32.partialorder %v3151, 0.7853982
    %vm3153 = vcmp.lt.s32.totalorder %v1893, 0
    %v3154 = vand.u32 %v1893, 2139095040
    %v3155 = vshrl.u32 %v3154, 23
    %v3156 = vsub.s32 %v3155, 127
    %v3157 = vand.u32 2147483647, %v1893
    %v3158 = vand.u32 %v3157, 8388607
    %v3159 = vor.u32 %v3158, 8388608
    %v3160 = vsub.s32 0, %v3159
    %v3161 = vadd.s32 %v3156, 1
    %vm3162 = vcmp.gt.s32.totalorder %v3161, 0
    %v3163 = vsel %vm3162, %v3161, 0
    %v3164 = vshrl.u32 %v3163, 5
    %v3165 = vand.u32 %v3163, 31
    %v3166 = vsub.s32 32, %v3165
    %v3167 = vshrl.u32 683565275, %v3166
    %v3168 = vshll.u32 683565275, %v3165
    %v3169 = vshrl.u32 2475754826, %v3166
    %v3170 = vor.u32 %v3168, %v3169
    %v3171 = vshll.u32 2475754826, %v3165
    %v3172 = vshrl.u32 2131351028, %v3166
    %v3173 = vor.u32 %v3171, %v3172
    %v3174 = vshll.u32 2131351028, %v3165
    %v3175 = vshrl.u32 2102212464, %v3166
    %v3176 = vor.u32 %v3174, %v3175
    %v3177 = vshll.u32 2102212464, %v3165
    %v3178 = vshrl.u32 920167782, %v3166
    %v3179 = vor.u32 %v3177, %v3178
    %v3180 = vshll.u32 920167782, %v3165
    %v3181 = vshrl.u32 1326507024, %v3166
    %v3182 = vor.u32 %v3180, %v3181
    %vm3183 = vcmp.lt.s32.totalorder %v3164, 1
    %vm3184 = vcmp.lt.s32.totalorder %v3164, 2
    %vm3185 = vcmp.lt.s32.totalorder %v3164, 3
    %vm3186 = vcmp.lt.s32.totalorder %v3164, 4
    %v3187 = vsel %vm3183, %v3167, %v3170
    %v3188 = vsel %vm3186, %v3176, 2102212464
    %v3189 = vsel %vm3185, %v3173, %v3188
    %v3190 = vsel %vm3184, %v3187, %v3189
    %v3191 = vsel %vm3183, %v3170, %v3173
    %v3192 = vsel %vm3186, %v3179, 920167782
    %v3193 = vsel %vm3185, %v3176, %v3192
    %v3194 = vsel %vm3184, %v3191, %v3193
    %v3195 = vsel %vm3183, %v3173, %v3176
    %v3196 = vsel %vm3186, %v3182, 1326507024
    %v3197 = vsel %vm3185, %v3179, %v3196
    %v3198 = vsel %vm3184, %v3195, %v3197
    %v3199 = vshll.u32 %v3159, 8
    %v3200 = vmul.u32.u64.compose %v3199, %v3198
    %v3201 = vextract.low.u32 %v3200
    %v3202 = vextract.high.u32 %v3200
    %v3203 = vmul.u32.u64.compose %v3199, %v3194
    %v3204 = vextract.low.u32 %v3203
    %v3205 = vextract.high.u32 %v3203
    %v3206 = vmul.u32 %v3199, %v3190
    %v3207 = vadd.s32 %v3202, %v3204
    %vm3208 = vc.u32 %v3202, %v3204
    %v3209 = vadd.s32 %v3205, 1
    %v3210 = vsel %vm3208, %v3209, %v3205
    %v3211 = vadd.s32 %v3206, %v3210
    %v3212 = vadd.s32 %v3211, 536870912
    %v3213 = vshrl.u32 %v3212, 30
    %v3214 = vshll.u32 %v3213, 30
    %v3215 = vsub.s32 %v3211, %v3214
    %vm3216 = vcmp.lt.s32.totalorder %v3215, 0
    %v3217 = vsub.s32 0, %v3215
    %v3218 = vsel %vm3216, %v3217, %v3215
    %v3219 = vclz %v3218
    %v3220 = vsub.s32 %v3219, 2
    %vm3221 = vcmp.gt.s32.totalorder 0, %v3220
    %v3222 = vsel %vm3221, 0, %v3220
    %v3223 = vsub.s32 32, %v3222
    %v3224 = vshll.u32 %v3215, %v3222
    %v3225 = vshrl.u32 %v3207, %v3223
    %v3226 = vor.u32 %v3224, %v3225
    %v3227 = vsub.s32 4294967266, %v3222
    %v3228 = vadd.s32 %v3227, 127
    %v3229 = vshll.u32 %v3228, 23
    %v3230 = vor.u32 4788187, %v3229
    %v3231 = vand.u32 2147483647, %v3230
    %v3233 = vcvt.s32.f32 %v3226
    %v3234 = vmul.f32 %v3233, %v3231
    %v3235 = vxor.u32 %v3234, 2147483648
    %v3236 = vsel %vm3153, %v3235, %v3234
    %v3237 = vsub.s32 4, %v3213
    %v3238 = vsel %vm3153, %v3237, %v3213
    %v3239 = vsel %vm3152, %v1893, %v3236
    %v3240 = vsel %vm3152, 0, %v3238
    %v3241 = vcosq.f32.pop %v3239
    %v3242 = vsinq.f32.pop %v3239
    %vm3243 = vweird.f32 %v1893
    %v3244 = vadd.s32 %v3240, 3
    %v3245 = vand.u32 %v3244, 3
    %vm3246 = vcmp.lt.s32.totalorder %v3245, 2
    %vm3247 = vcmp.eq.s32.totalorder %v3245, 0
    %v3248 = vxor.u32 %v3242, 2147483648
    %v3249 = vsel %vm3247, %v3241, %v3248
    %vm3250 = vcmp.eq.s32.totalorder %v3245, 2
    %v3251 = vxor.u32 %v3241, 2147483648
    %v3252 = vsel %vm3250, %v3251, %v3242
    %v3253 = vsel %vm3246, %v3249, %v3252
    %v3254 = vsel %vm3243, nan, %v3253
    %v3255 = vand.u32 2147483647, %v1895
    %vm3256 = vcmp.le.f32.partialorder %v3255, 0.7853982
    %vm3257 = vcmp.lt.s32.totalorder %v1895, 0
    %v3258 = vand.u32 %v1895, 2139095040
    %v3259 = vshrl.u32 %v3258, 23
    %v3260 = vsub.s32 %v3259, 127
    %v3261 = vand.u32 2147483647, %v1895
    %v3262 = vand.u32 %v3261, 8388607
    %v3263 = vor.u32 %v3262, 8388608
    %v3264 = vsub.s32 0, %v3263
    %v3265 = vadd.s32 %v3260, 1
    %vm3266 = vcmp.gt.s32.totalorder %v3265, 0
    %v3267 = vsel %vm3266, %v3265, 0
    %v3268 = vshrl.u32 %v3267, 5
    %v3269 = vand.u32 %v3267, 31
    %v3270 = vsub.s32 32, %v3269
    %v3271 = vshrl.u32 683565275, %v3270
    %v3272 = vshll.u32 683565275, %v3269
    %v3273 = vshrl.u32 2475754826, %v3270
    %v3274 = vor.u32 %v3272, %v3273
    %v3275 = vshll.u32 2475754826, %v3269
    %v3276 = vshrl.u32 2131351028, %v3270
    %v3277 = vor.u32 %v3275, %v3276
    %v3278 = vshll.u32 2131351028, %v3269
    %v3279 = vshrl.u32 2102212464, %v3270
    %v3280 = vor.u32 %v3278, %v3279
    %v3281 = vshll.u32 2102212464, %v3269
    %v3282 = vshrl.u32 920167782, %v3270
    %v3283 = vor.u32 %v3281, %v3282
    %v3284 = vshll.u32 920167782, %v3269
    %v3285 = vshrl.u32 1326507024, %v3270
    %v3286 = vor.u32 %v3284, %v3285
    %vm3287 = vcmp.lt.s32.totalorder %v3268, 1
    %vm3288 = vcmp.lt.s32.totalorder %v3268, 2
    %vm3289 = vcmp.lt.s32.totalorder %v3268, 3
    %vm3290 = vcmp.lt.s32.totalorder %v3268, 4
    %v3291 = vsel %vm3287, %v3271, %v3274
    %v3292 = vsel %vm3290, %v3280, 2102212464
    %v3293 = vsel %vm3289, %v3277, %v3292
    %v3294 = vsel %vm3288, %v3291, %v3293
    %v3295 = vsel %vm3287, %v3274, %v3277
    %v3296 = vsel %vm3290, %v3283, 920167782
    %v3297 = vsel %vm3289, %v3280, %v3296
    %v3298 = vsel %vm3288, %v3295, %v3297
    %v3299 = vsel %vm3287, %v3277, %v3280
    %v3300 = vsel %vm3290, %v3286, 1326507024
    %v3301 = vsel %vm3289, %v3283, %v3300
    %v3302 = vsel %vm3288, %v3299, %v3301
    %v3303 = vshll.u32 %v3263, 8
    %v3304 = vmul.u32.u64.compose %v3303, %v3302
    %v3305 = vextract.low.u32 %v3304
    %v3306 = vextract.high.u32 %v3304
    %v3307 = vmul.u32.u64.compose %v3303, %v3298
    %v3308 = vextract.low.u32 %v3307
    %v3309 = vextract.high.u32 %v3307
    %v3310 = vmul.u32 %v3303, %v3294
    %v3311 = vadd.s32 %v3306, %v3308
    %vm3312 = vc.u32 %v3306, %v3308
    %v3313 = vadd.s32 %v3309, 1
    %v3314 = vsel %vm3312, %v3313, %v3309
    %v3315 = vadd.s32 %v3310, %v3314
    %v3316 = vadd.s32 %v3315, 536870912
    %v3317 = vshrl.u32 %v3316, 30
    %v3318 = vshll.u32 %v3317, 30
    %v3319 = vsub.s32 %v3315, %v3318
    %vm3320 = vcmp.lt.s32.totalorder %v3319, 0
    %v3321 = vsub.s32 0, %v3319
    %v3322 = vsel %vm3320, %v3321, %v3319
    %v3323 = vclz %v3322
    %v3324 = vsub.s32 %v3323, 2
    %vm3325 = vcmp.gt.s32.totalorder 0, %v3324
    %v3326 = vsel %vm3325, 0, %v3324
    %v3327 = vsub.s32 32, %v3326
    %v3328 = vshll.u32 %v3319, %v3326
    %v3329 = vshrl.u32 %v3311, %v3327
    %v3330 = vor.u32 %v3328, %v3329
    %v3331 = vsub.s32 4294967266, %v3326
    %v3332 = vadd.s32 %v3331, 127
    %v3333 = vshll.u32 %v3332, 23
    %v3334 = vor.u32 4788187, %v3333
    %v3335 = vand.u32 2147483647, %v3334
    %v3337 = vcvt.s32.f32 %v3330
    %v3338 = vmul.f32 %v3337, %v3335
    %v3339 = vxor.u32 %v3338, 2147483648
    %v3340 = vsel %vm3257, %v3339, %v3338
    %v3341 = vsub.s32 4, %v3317
    %v3342 = vsel %vm3257, %v3341, %v3317
    %v3343 = vsel %vm3256, %v1895, %v3340
    %v3344 = vsel %vm3256, 0, %v3342
    %v3345 = vcosq.f32.pop %v3343
    %v3346 = vsinq.f32.pop %v3343
    %vm3347 = vweird.f32 %v1895
    %v3348 = vadd.s32 %v3344, 3
    %v3349 = vand.u32 %v3348, 3
    %vm3350 = vcmp.lt.s32.totalorder %v3349, 2
    %vm3351 = vcmp.eq.s32.totalorder %v3349, 0
    %v3352 = vxor.u32 %v3346, 2147483648
    %v3353 = vsel %vm3351, %v3345, %v3352
    %vm3354 = vcmp.eq.s32.totalorder %v3349, 2
    %v3355 = vxor.u32 %v3345, 2147483648
    %v3356 = vsel %vm3354, %v3355, %v3346
    %v3357 = vsel %vm3350, %v3353, %v3356
    %v3358 = vsel %vm3347, nan, %v3357
    %v3359 = vand.u32 2147483647, %v1899
    %vm3360 = vcmp.le.f32.partialorder %v3359, 0.7853982
    %vm3361 = vcmp.lt.s32.totalorder %v1899, 0
    %v3362 = vand.u32 %v1899, 2139095040
    %v3363 = vshrl.u32 %v3362, 23
    %v3364 = vsub.s32 %v3363, 127
    %v3365 = vand.u32 2147483647, %v1899
    %v3366 = vand.u32 %v3365, 8388607
    %v3367 = vor.u32 %v3366, 8388608
    %v3368 = vsub.s32 0, %v3367
    %v3369 = vadd.s32 %v3364, 1
    %vm3370 = vcmp.gt.s32.totalorder %v3369, 0
    %v3371 = vsel %vm3370, %v3369, 0
    %v3372 = vshrl.u32 %v3371, 5
    %v3373 = vand.u32 %v3371, 31
    %v3374 = vsub.s32 32, %v3373
    %v3375 = vshrl.u32 683565275, %v3374
    %v3376 = vshll.u32 683565275, %v3373
    %v3377 = vshrl.u32 2475754826, %v3374
    %v3378 = vor.u32 %v3376, %v3377
    %v3379 = vshll.u32 2475754826, %v3373
    %v3380 = vshrl.u32 2131351028, %v3374
    %v3381 = vor.u32 %v3379, %v3380
    %v3382 = vshll.u32 2131351028, %v3373
    %v3383 = vshrl.u32 2102212464, %v3374
    %v3384 = vor.u32 %v3382, %v3383
    %v3385 = vshll.u32 2102212464, %v3373
    %v3386 = vshrl.u32 920167782, %v3374
    %v3387 = vor.u32 %v3385, %v3386
    %v3388 = vshll.u32 920167782, %v3373
    %v3389 = vshrl.u32 1326507024, %v3374
    %v3390 = vor.u32 %v3388, %v3389
    %vm3391 = vcmp.lt.s32.totalorder %v3372, 1
    %vm3392 = vcmp.lt.s32.totalorder %v3372, 2
    %vm3393 = vcmp.lt.s32.totalorder %v3372, 3
    %vm3394 = vcmp.lt.s32.totalorder %v3372, 4
    %v3395 = vsel %vm3391, %v3375, %v3378
    %v3396 = vsel %vm3394, %v3384, 2102212464
    %v3397 = vsel %vm3393, %v3381, %v3396
    %v3398 = vsel %vm3392, %v3395, %v3397
    %v3399 = vsel %vm3391, %v3378, %v3381
    %v3400 = vsel %vm3394, %v3387, 920167782
    %v3401 = vsel %vm3393, %v3384, %v3400
    %v3402 = vsel %vm3392, %v3399, %v3401
    %v3403 = vsel %vm3391, %v3381, %v3384
    %v3404 = vsel %vm3394, %v3390, 1326507024
    %v3405 = vsel %vm3393, %v3387, %v3404
    %v3406 = vsel %vm3392, %v3403, %v3405
    %v3407 = vshll.u32 %v3367, 8
    %v3408 = vmul.u32.u64.compose %v3407, %v3406
    %v3409 = vextract.low.u32 %v3408
    %v3410 = vextract.high.u32 %v3408
    %v3411 = vmul.u32.u64.compose %v3407, %v3402
    %v3412 = vextract.low.u32 %v3411
    %v3413 = vextract.high.u32 %v3411
    %v3414 = vmul.u32 %v3407, %v3398
    %v3415 = vadd.s32 %v3410, %v3412
    %vm3416 = vc.u32 %v3410, %v3412
    %v3417 = vadd.s32 %v3413, 1
    %v3418 = vsel %vm3416, %v3417, %v3413
    %v3419 = vadd.s32 %v3414, %v3418
    %v3420 = vadd.s32 %v3419, 536870912
    %v3421 = vshrl.u32 %v3420, 30
    %v3422 = vshll.u32 %v3421, 30
    %v3423 = vsub.s32 %v3419, %v3422
    %vm3424 = vcmp.lt.s32.totalorder %v3423, 0
    %v3425 = vsub.s32 0, %v3423
    %v3426 = vsel %vm3424, %v3425, %v3423
    %v3427 = vclz %v3426
    %v3428 = vsub.s32 %v3427, 2
    %vm3429 = vcmp.gt.s32.totalorder 0, %v3428
    %v3430 = vsel %vm3429, 0, %v3428
    %v3431 = vsub.s32 32, %v3430
    %v3432 = vshll.u32 %v3423, %v3430
    %v3433 = vshrl.u32 %v3415, %v3431
    %v3434 = vor.u32 %v3432, %v3433
    %v3435 = vsub.s32 4294967266, %v3430
    %v3436 = vadd.s32 %v3435, 127
    %v3437 = vshll.u32 %v3436, 23
    %v3438 = vor.u32 4788187, %v3437
    %v3439 = vand.u32 2147483647, %v3438
    %v3441 = vcvt.s32.f32 %v3434
    %v3442 = vmul.f32 %v3441, %v3439
    %v3443 = vxor.u32 %v3442, 2147483648
    %v3444 = vsel %vm3361, %v3443, %v3442
    %v3445 = vsub.s32 4, %v3421
    %v3446 = vsel %vm3361, %v3445, %v3421
    %v3447 = vsel %vm3360, %v1899, %v3444
    %v3448 = vsel %vm3360, 0, %v3446
    %v3449 = vcosq.f32.pop %v3447
    %v3450 = vsinq.f32.pop %v3447
    %vm3451 = vweird.f32 %v1899
    %v3452 = vadd.s32 %v3448, 3
    %v3453 = vand.u32 %v3452, 3
    %vm3454 = vcmp.lt.s32.totalorder %v3453, 2
    %vm3455 = vcmp.eq.s32.totalorder %v3453, 0
    %v3456 = vxor.u32 %v3450, 2147483648
    %v3457 = vsel %vm3455, %v3449, %v3456
    %vm3458 = vcmp.eq.s32.totalorder %v3453, 2
    %v3459 = vxor.u32 %v3449, 2147483648
    %v3460 = vsel %vm3458, %v3459, %v3450
    %v3461 = vsel %vm3454, %v3457, %v3460
    %v3462 = vsel %vm3451, nan, %v3461
    %v3463 = vand.u32 2147483647, %v1901
    %vm3464 = vcmp.le.f32.partialorder %v3463, 0.7853982
    %vm3465 = vcmp.lt.s32.totalorder %v1901, 0
    %v3466 = vand.u32 %v1901, 2139095040
    %v3467 = vshrl.u32 %v3466, 23
    %v3468 = vsub.s32 %v3467, 127
    %v3469 = vand.u32 2147483647, %v1901
    %v3470 = vand.u32 %v3469, 8388607
    %v3471 = vor.u32 %v3470, 8388608
    %v3472 = vsub.s32 0, %v3471
    %v3473 = vadd.s32 %v3468, 1
    %vm3474 = vcmp.gt.s32.totalorder %v3473, 0
    %v3475 = vsel %vm3474, %v3473, 0
    %v3476 = vshrl.u32 %v3475, 5
    %v3477 = vand.u32 %v3475, 31
    %v3478 = vsub.s32 32, %v3477
    %v3479 = vshrl.u32 683565275, %v3478
    %v3480 = vshll.u32 683565275, %v3477
    %v3481 = vshrl.u32 2475754826, %v3478
    %v3482 = vor.u32 %v3480, %v3481
    %v3483 = vshll.u32 2475754826, %v3477
    %v3484 = vshrl.u32 2131351028, %v3478
    %v3485 = vor.u32 %v3483, %v3484
    %v3486 = vshll.u32 2131351028, %v3477
    %v3487 = vshrl.u32 2102212464, %v3478
    %v3488 = vor.u32 %v3486, %v3487
    %v3489 = vshll.u32 2102212464, %v3477
    %v3490 = vshrl.u32 920167782, %v3478
    %v3491 = vor.u32 %v3489, %v3490
    %v3492 = vshll.u32 920167782, %v3477
    %v3493 = vshrl.u32 1326507024, %v3478
    %v3494 = vor.u32 %v3492, %v3493
    %vm3495 = vcmp.lt.s32.totalorder %v3476, 1
    %vm3496 = vcmp.lt.s32.totalorder %v3476, 2
    %vm3497 = vcmp.lt.s32.totalorder %v3476, 3
    %vm3498 = vcmp.lt.s32.totalorder %v3476, 4
    %v3499 = vsel %vm3495, %v3479, %v3482
    %v3500 = vsel %vm3498, %v3488, 2102212464
    %v3501 = vsel %vm3497, %v3485, %v3500
    %v3502 = vsel %vm3496, %v3499, %v3501
    %v3503 = vsel %vm3495, %v3482, %v3485
    %v3504 = vsel %vm3498, %v3491, 920167782
    %v3505 = vsel %vm3497, %v3488, %v3504
    %v3506 = vsel %vm3496, %v3503, %v3505
    %v3507 = vsel %vm3495, %v3485, %v3488
    %v3508 = vsel %vm3498, %v3494, 1326507024
    %v3509 = vsel %vm3497, %v3491, %v3508
    %v3510 = vsel %vm3496, %v3507, %v3509
    %v3511 = vshll.u32 %v3471, 8
    %v3512 = vmul.u32.u64.compose %v3511, %v3510
    %v3513 = vextract.low.u32 %v3512
    %v3514 = vextract.high.u32 %v3512
    %v3515 = vmul.u32.u64.compose %v3511, %v3506
    %v3516 = vextract.low.u32 %v3515
    %v3517 = vextract.high.u32 %v3515
    %v3518 = vmul.u32 %v3511, %v3502
    %v3519 = vadd.s32 %v3514, %v3516
    %vm3520 = vc.u32 %v3514, %v3516
    %v3521 = vadd.s32 %v3517, 1
    %v3522 = vsel %vm3520, %v3521, %v3517
    %v3523 = vadd.s32 %v3518, %v3522
    %v3524 = vadd.s32 %v3523, 536870912
    %v3525 = vshrl.u32 %v3524, 30
    %v3526 = vshll.u32 %v3525, 30
    %v3527 = vsub.s32 %v3523, %v3526
    %vm3528 = vcmp.lt.s32.totalorder %v3527, 0
    %v3529 = vsub.s32 0, %v3527
    %v3530 = vsel %vm3528, %v3529, %v3527
    %v3531 = vclz %v3530
    %v3532 = vsub.s32 %v3531, 2
    %vm3533 = vcmp.gt.s32.totalorder 0, %v3532
    %v3534 = vsel %vm3533, 0, %v3532
    %v3535 = vsub.s32 32, %v3534
    %v3536 = vshll.u32 %v3527, %v3534
    %v3537 = vshrl.u32 %v3519, %v3535
    %v3538 = vor.u32 %v3536, %v3537
    %v3539 = vsub.s32 4294967266, %v3534
    %v3540 = vadd.s32 %v3539, 127
    %v3541 = vshll.u32 %v3540, 23
    %v3542 = vor.u32 4788187, %v3541
    %v3543 = vand.u32 2147483647, %v3542
    %v3545 = vcvt.s32.f32 %v3538
    %v3546 = vmul.f32 %v3545, %v3543
    %v3547 = vxor.u32 %v3546, 2147483648
    %v3548 = vsel %vm3465, %v3547, %v3546
    %v3549 = vsub.s32 4, %v3525
    %v3550 = vsel %vm3465, %v3549, %v3525
    %v3551 = vsel %vm3464, %v1901, %v3548
    %v3552 = vsel %vm3464, 0, %v3550
    %v3553 = vcosq.f32.pop %v3551
    %v3554 = vsinq.f32.pop %v3551
    %vm3555 = vweird.f32 %v1901
    %v3556 = vadd.s32 %v3552, 3
    %v3557 = vand.u32 %v3556, 3
    %vm3558 = vcmp.lt.s32.totalorder %v3557, 2
    %vm3559 = vcmp.eq.s32.totalorder %v3557, 0
    %v3560 = vxor.u32 %v3554, 2147483648
    %v3561 = vsel %vm3559, %v3553, %v3560
    %vm3562 = vcmp.eq.s32.totalorder %v3557, 2
    %v3563 = vxor.u32 %v3553, 2147483648
    %v3564 = vsel %vm3562, %v3563, %v3554
    %v3565 = vsel %vm3558, %v3561, %v3564
    %v3566 = vsel %vm3555, nan, %v3565
    %s3567 = scalar_lea.vmem %s1, 64
    %v3568 = vld [vmem:[%s3567] sm:$0xff]
    %v3569 = vld [vmem:[%s3567 + $0x8] sm:$0xff]
    %v3570 = vld [vmem:[%s3567 + $0x10] sm:$0xff]
    %v3571 = vld [vmem:[%s3567 + $0x18] sm:$0xff]
    %v3572 = vld [vmem:[%s3567 + $0x20] sm:$0xff]
    %v3573 = vld [vmem:[%s3567 + $0x28] sm:$0xff]
    %v3574 = vld [vmem:[%s3567 + $0x30] sm:$0xff]
    %v3575 = vld [vmem:[%s3567 + $0x38] sm:$0xff]
    %s3576 = scalar_lea.vmem %s2, 64
    %v3577 = vld [vmem:[%s3576] sm:$0xff]
    %v3578 = vld [vmem:[%s3576 + $0x8] sm:$0xff]
    %v3579 = vld [vmem:[%s3576 + $0x10] sm:$0xff]
    %v3580 = vld [vmem:[%s3576 + $0x18] sm:$0xff]
    %v3581 = vld [vmem:[%s3576 + $0x20] sm:$0xff]
    %v3582 = vld [vmem:[%s3576 + $0x28] sm:$0xff]
    %v3583 = vld [vmem:[%s3576 + $0x30] sm:$0xff]
    %v3584 = vld [vmem:[%s3576 + $0x38] sm:$0xff]
    %3586 = vset.pattern.permute.xlu0 0
    %3587 = vperm.xlu0 %3586, %v3577
    %v3588 = vpop.permute.xlu0 %3587
    %3591 = vset.pattern.permute.xlu0 0
    %3592 = vperm.xlu0 %3591, %v3578
    %v3593 = vpop.permute.xlu0 %3592
    %3596 = vset.pattern.permute.xlu0 0
    %3597 = vperm.xlu0 %3596, %v3579
    %v3598 = vpop.permute.xlu0 %3597
    %3601 = vset.pattern.permute.xlu0 0
    %3602 = vperm.xlu0 %3601, %v3580
    %v3603 = vpop.permute.xlu0 %3602
    %3606 = vset.pattern.permute.xlu0 0
    %3607 = vperm.xlu0 %3606, %v3581
    %v3608 = vpop.permute.xlu0 %3607
    %3611 = vset.pattern.permute.xlu0 0
    %3612 = vperm.xlu0 %3611, %v3582
    %v3613 = vpop.permute.xlu0 %3612
    %3616 = vset.pattern.permute.xlu0 0
    %3617 = vperm.xlu0 %3616, %v3583
    %v3618 = vpop.permute.xlu0 %3617
    %3621 = vset.pattern.permute.xlu0 0
    %3622 = vperm.xlu0 %3621, %v3584
    %v3623 = vpop.permute.xlu0 %3622
    %v3626 = vsel %vm1765, %v3568, 0
    %v3629 = vsel %vm1765, %v3569, 0
    %v3632 = vsel %vm1765, %v3570, 0
    %v3635 = vsel %vm1765, %v3571, 0
    %v3638 = vsel %vm1765, %v3572, 0
    %v3641 = vsel %vm1765, %v3573, 0
    %v3644 = vsel %vm1765, %v3574, 0
    %v3647 = vsel %vm1765, %v3575, 0
    %3649 = vmatprep.subr.mxu0 %v2110
    %3650 = vmatpush1.msra.mxu0 %v2006
    %3651 = vmatprep.subr.mxu0 %v2318
    %3652 = vmatpush1.msra.mxu0 %v2214
    %3653 = vmatprep.subr.mxu0 %v2526
    %3654 = vmatpush1.msra.mxu0 %v2422
    %3655 = vmatprep.subr.mxu0 %v2734
    %3656 = vmatpush1.msra.mxu0 %v2630
    %3657 = vmatprep.subr.mxu0 %v2942
    %3658 = vmatpush1.msra.mxu0 %v2838
    %3659 = vmatprep.subr.mxu0 %v3150
    %3660 = vmatpush1.msra.mxu0 %v3046
    %3661 = vmatprep.subr.mxu0 %v3358
    %3662 = vmatpush1.msra.mxu0 %v3254
    %3663 = vmatprep.subr.mxu0 %v3566
    %3664 = vmatpush1.msra.mxu0 %v3462
    %3665 = vmatprep.subr.mxu0 0.0
    %3666 = vmatpush1.msra.mxu0 0.0
    %3667 = vmatprep.subr.mxu0 0.0
    %3668 = vmatpush1.msra.mxu0 0.0
    %3669 = vmatprep.subr.mxu0 0.0
    %3670 = vmatpush1.msra.mxu0 0.0
    %3671 = vmatprep.subr.mxu0 0.0
    %3672 = vmatpush1.msra.mxu0 0.0
    %3673 = vmatprep.subr.mxu0 0.0
    %3674 = vmatpush1.msra.mxu0 0.0
    %3675 = vmatprep.subr.mxu0 0.0
    %3676 = vmatpush1.msra.mxu0 0.0
    %3677 = vmatprep.subr.mxu0 0.0
    %3678 = vmatpush1.msra.mxu0 0.0
    %3679 = vmatprep.subr.mxu0 0.0
    %3680 = vmatpush1.msra.mxu0 0.0
    %3681 = vmatprep.subr.mxu0 0.0
    %3682 = vmatpush1.msra.mxu0 0.0
    %3683 = vmatprep.subr.mxu0 0.0
    %3684 = vmatpush1.msra.mxu0 0.0
    %3685 = vmatprep.subr.mxu0 0.0
    %3686 = vmatpush1.msra.mxu0 0.0
    %3687 = vmatprep.subr.mxu0 0.0
    %3688 = vmatpush1.msra.mxu0 0.0
    %3689 = vmatprep.subr.mxu0 0.0
    %3690 = vmatpush1.msra.mxu0 0.0
    %3691 = vmatprep.subr.mxu0 0.0
    %3692 = vmatpush1.msra.mxu0 0.0
    %3693 = vmatprep.subr.mxu0 0.0
    %3694 = vmatpush1.msra.mxu0 0.0
    %3695 = vmatprep.subr.mxu0 0.0
    %3696 = vmatpush1.msra.mxu0 0.0
    %3697 = vmatprep.subr.mxu0 0.0
    %3698 = vmatpush1.msra.mxu0 0.0
    %3699 = vmatprep.subr.mxu0 0.0
    %3700 = vmatpush1.msra.mxu0 0.0
    %3701 = vmatprep.subr.mxu0 0.0
    %3702 = vmatpush1.msra.mxu0 0.0
    %3703 = vmatprep.subr.mxu0 0.0
    %3704 = vmatpush1.msra.mxu0 0.0
    %3705 = vmatprep.subr.mxu0 0.0
    %3706 = vmatpush1.msra.mxu0 0.0
    %3707 = vmatprep.subr.mxu0 0.0
    %3708 = vmatpush1.msra.mxu0 0.0
    %3709 = vmatprep.subr.mxu0 0.0
    %3710 = vmatpush1.msra.mxu0 0.0
    %3711 = vmatprep.subr.mxu0 0.0
    %3712 = vmatpush1.msra.mxu0 0.0
    %3713 = vmatprep.mubr.f32.mxu0 0.0
    %3714 = vmatmul.mubr.f32.gmra.mrb[0].mxu0 %v3626
    %v3715 = vpop.f32.mrb[0].mxu0
    %v3716 = vadd.f32 %v3588, %v3715
    %v3717 = vpop.f32.mrb[0].mxu0
    %v3718 = vadd.f32 %v3588, %v3717
    %3719 = vmatprep.mubr.f32.mxu0 0.0
    %3720 = vmatmul.mubr.f32.gmra.mrb[0].mxu0 %v3629
    %v3721 = vpop.f32.mrb[0].mxu0
    %v3722 = vadd.f32 %v3593, %v3721
    %v3723 = vpop.f32.mrb[0].mxu0
    %v3724 = vadd.f32 %v3593, %v3723
    %3725 = vmatprep.mubr.f32.mxu0 0.0
    %3726 = vmatmul.mubr.f32.gmra.mrb[0].mxu0 %v3632
    %v3727 = vpop.f32.mrb[0].mxu0
    %v3728 = vadd.f32 %v3598, %v3727
    %v3729 = vpop.f32.mrb[0].mxu0
    %v3730 = vadd.f32 %v3598, %v3729
    %3731 = vmatprep.mubr.f32.mxu0 0.0
    %3732 = vmatmul.mubr.f32.gmra.mrb[0].mxu0 %v3635
    %v3733 = vpop.f32.mrb[0].mxu0
    %v3734 = vadd.f32 %v3603, %v3733
    %v3735 = vpop.f32.mrb[0].mxu0
    %v3736 = vadd.f32 %v3603, %v3735
    %3737 = vmatprep.mubr.f32.mxu0 0.0
    %3738 = vmatmul.mubr.f32.gmra.mrb[0].mxu0 %v3638
    %v3739 = vpop.f32.mrb[0].mxu0
    %v3740 = vadd.f32 %v3608, %v3739
    %v3741 = vpop.f32.mrb[0].mxu0
    %v3742 = vadd.f32 %v3608, %v3741
    %3743 = vmatprep.mubr.f32.mxu0 0.0
    %3744 = vmatmul.mubr.f32.gmra.mrb[0].mxu0 %v3641
    %v3745 = vpop.f32.mrb[0].mxu0
    %v3746 = vadd.f32 %v3613, %v3745
    %v3747 = vpop.f32.mrb[0].mxu0
    %v3748 = vadd.f32 %v3613, %v3747
    %3749 = vmatprep.mubr.f32.mxu0 0.0
    %3750 = vmatmul.mubr.f32.gmra.mrb[0].mxu0 %v3644
    %v3751 = vpop.f32.mrb[0].mxu0
    %v3752 = vadd.f32 %v3618, %v3751
    %v3753 = vpop.f32.mrb[0].mxu0
    %v3754 = vadd.f32 %v3618, %v3753
    %3755 = vmatprep.mubr.f32.mxu0 0.0
    %3756 = vmatmul.mubr.f32.gmra.mrb[0].mxu0 %v3647
    %v3757 = vpop.f32.mrb[0].mxu0
    %v3758 = vadd.f32 %v3623, %v3757
    %v3759 = vpop.f32.mrb[0].mxu0
    %v3760 = vadd.f32 %v3623, %v3759
    %3761 = vdwg.mxu0
    %v3762 = vand.u32 2147483647, %v3716
    %vm3763 = vcmp.le.f32.partialorder %v3762, 0.7853982
    %vm3764 = vcmp.lt.s32.totalorder %v3716, 0
    %v3765 = vand.u32 %v3716, 2139095040
    %v3766 = vshrl.u32 %v3765, 23
    %v3767 = vsub.s32 %v3766, 127
    %v3768 = vand.u32 2147483647, %v3716
    %v3769 = vand.u32 %v3768, 8388607
    %v3770 = vor.u32 %v3769, 8388608
    %v3771 = vsub.s32 0, %v3770
    %v3772 = vadd.s32 %v3767, 1
    %vm3773 = vcmp.gt.s32.totalorder %v3772, 0
    %v3774 = vsel %vm3773, %v3772, 0
    %v3775 = vshrl.u32 %v3774, 5
    %v3776 = vand.u32 %v3774, 31
    %v3777 = vsub.s32 32, %v3776
    %v3778 = vshrl.u32 683565275, %v3777
    %v3779 = vshll.u32 683565275, %v3776
    %v3780 = vshrl.u32 2475754826, %v3777
    %v3781 = vor.u32 %v3779, %v3780
    %v3782 = vshll.u32 2475754826, %v3776
    %v3783 = vshrl.u32 2131351028, %v3777
    %v3784 = vor.u32 %v3782, %v3783
    %v3785 = vshll.u32 2131351028, %v3776
    %v3786 = vshrl.u32 2102212464, %v3777
    %v3787 = vor.u32 %v3785, %v3786
    %v3788 = vshll.u32 2102212464, %v3776
    %v3789 = vshrl.u32 920167782, %v3777
    %v3790 = vor.u32 %v3788, %v3789
    %v3791 = vshll.u32 920167782, %v3776
    %v3792 = vshrl.u32 1326507024, %v3777
    %v3793 = vor.u32 %v3791, %v3792
    %vm3794 = vcmp.lt.s32.totalorder %v3775, 1
    %vm3795 = vcmp.lt.s32.totalorder %v3775, 2
    %vm3796 = vcmp.lt.s32.totalorder %v3775, 3
    %vm3797 = vcmp.lt.s32.totalorder %v3775, 4
    %v3798 = vsel %vm3794, %v3778, %v3781
    %v3799 = vsel %vm3797, %v3787, 2102212464
    %v3800 = vsel %vm3796, %v3784, %v3799
    %v3801 = vsel %vm3795, %v3798, %v3800
    %v3802 = vsel %vm3794, %v3781, %v3784
    %v3803 = vsel %vm3797, %v3790, 920167782
    %v3804 = vsel %vm3796, %v3787, %v3803
    %v3805 = vsel %vm3795, %v3802, %v3804
    %v3806 = vsel %vm3794, %v3784, %v3787
    %v3807 = vsel %vm3797, %v3793, 1326507024
    %v3808 = vsel %vm3796, %v3790, %v3807
    %v3809 = vsel %vm3795, %v3806, %v3808
    %v3810 = vshll.u32 %v3770, 8
    %v3811 = vmul.u32.u64.compose %v3810, %v3809
    %v3812 = vextract.low.u32 %v3811
    %v3813 = vextract.high.u32 %v3811
    %v3814 = vmul.u32.u64.compose %v3810, %v3805
    %v3815 = vextract.low.u32 %v3814
    %v3816 = vextract.high.u32 %v3814
    %v3817 = vmul.u32 %v3810, %v3801
    %v3818 = vadd.s32 %v3813, %v3815
    %vm3819 = vc.u32 %v3813, %v3815
    %v3820 = vadd.s32 %v3816, 1
    %v3821 = vsel %vm3819, %v3820, %v3816
    %v3822 = vadd.s32 %v3817, %v3821
    %v3823 = vadd.s32 %v3822, 536870912
    %v3824 = vshrl.u32 %v3823, 30
    %v3825 = vshll.u32 %v3824, 30
    %v3826 = vsub.s32 %v3822, %v3825
    %vm3827 = vcmp.lt.s32.totalorder %v3826, 0
    %v3828 = vsub.s32 0, %v3826
    %v3829 = vsel %vm3827, %v3828, %v3826
    %v3830 = vclz %v3829
    %v3831 = vsub.s32 %v3830, 2
    %vm3832 = vcmp.gt.s32.totalorder 0, %v3831
    %v3833 = vsel %vm3832, 0, %v3831
    %v3834 = vsub.s32 32, %v3833
    %v3835 = vshll.u32 %v3826, %v3833
    %v3836 = vshrl.u32 %v3818, %v3834
    %v3837 = vor.u32 %v3835, %v3836
    %v3838 = vsub.s32 4294967266, %v3833
    %v3839 = vadd.s32 %v3838, 127
    %v3840 = vshll.u32 %v3839, 23
    %v3841 = vor.u32 4788187, %v3840
    %v3842 = vand.u32 2147483647, %v3841
    %v3844 = vcvt.s32.f32 %v3837
    %v3845 = vmul.f32 %v3844, %v3842
    %v3846 = vxor.u32 %v3845, 2147483648
    %v3847 = vsel %vm3764, %v3846, %v3845
    %v3848 = vsub.s32 4, %v3824
    %v3849 = vsel %vm3764, %v3848, %v3824
    %v3850 = vsel %vm3763, %v3716, %v3847
    %v3851 = vsel %vm3763, 0, %v3849
    %v3852 = vcosq.f32.pop %v3850
    %v3853 = vsinq.f32.pop %v3850
    %vm3854 = vweird.f32 %v3716
    %v3855 = vadd.s32 %v3851, 3
    %v3856 = vand.u32 %v3855, 3
    %vm3857 = vcmp.lt.s32.totalorder %v3856, 2
    %vm3858 = vcmp.eq.s32.totalorder %v3856, 0
    %v3859 = vxor.u32 %v3853, 2147483648
    %v3860 = vsel %vm3858, %v3852, %v3859
    %vm3861 = vcmp.eq.s32.totalorder %v3856, 2
    %v3862 = vxor.u32 %v3852, 2147483648
    %v3863 = vsel %vm3861, %v3862, %v3853
    %v3864 = vsel %vm3857, %v3860, %v3863
    %v3865 = vsel %vm3854, nan, %v3864
    %v3866 = vand.u32 2147483647, %v3718
    %vm3867 = vcmp.le.f32.partialorder %v3866, 0.7853982
    %vm3868 = vcmp.lt.s32.totalorder %v3718, 0
    %v3869 = vand.u32 %v3718, 2139095040
    %v3870 = vshrl.u32 %v3869, 23
    %v3871 = vsub.s32 %v3870, 127
    %v3872 = vand.u32 2147483647, %v3718
    %v3873 = vand.u32 %v3872, 8388607
    %v3874 = vor.u32 %v3873, 8388608
    %v3875 = vsub.s32 0, %v3874
    %v3876 = vadd.s32 %v3871, 1
    %vm3877 = vcmp.gt.s32.totalorder %v3876, 0
    %v3878 = vsel %vm3877, %v3876, 0
    %v3879 = vshrl.u32 %v3878, 5
    %v3880 = vand.u32 %v3878, 31
    %v3881 = vsub.s32 32, %v3880
    %v3882 = vshrl.u32 683565275, %v3881
    %v3883 = vshll.u32 683565275, %v3880
    %v3884 = vshrl.u32 2475754826, %v3881
    %v3885 = vor.u32 %v3883, %v3884
    %v3886 = vshll.u32 2475754826, %v3880
    %v3887 = vshrl.u32 2131351028, %v3881
    %v3888 = vor.u32 %v3886, %v3887
    %v3889 = vshll.u32 2131351028, %v3880
    %v3890 = vshrl.u32 2102212464, %v3881
    %v3891 = vor.u32 %v3889, %v3890
    %v3892 = vshll.u32 2102212464, %v3880
    %v3893 = vshrl.u32 920167782, %v3881
    %v3894 = vor.u32 %v3892, %v3893
    %v3895 = vshll.u32 920167782, %v3880
    %v3896 = vshrl.u32 1326507024, %v3881
    %v3897 = vor.u32 %v3895, %v3896
    %vm3898 = vcmp.lt.s32.totalorder %v3879, 1
    %vm3899 = vcmp.lt.s32.totalorder %v3879, 2
    %vm3900 = vcmp.lt.s32.totalorder %v3879, 3
    %vm3901 = vcmp.lt.s32.totalorder %v3879, 4
    %v3902 = vsel %vm3898, %v3882, %v3885
    %v3903 = vsel %vm3901, %v3891, 2102212464
    %v3904 = vsel %vm3900, %v3888, %v3903
    %v3905 = vsel %vm3899, %v3902, %v3904
    %v3906 = vsel %vm3898, %v3885, %v3888
    %v3907 = vsel %vm3901, %v3894, 920167782
    %v3908 = vsel %vm3900, %v3891, %v3907
    %v3909 = vsel %vm3899, %v3906, %v3908
    %v3910 = vsel %vm3898, %v3888, %v3891
    %v3911 = vsel %vm3901, %v3897, 1326507024
    %v3912 = vsel %vm3900, %v3894, %v3911
    %v3913 = vsel %vm3899, %v3910, %v3912
    %v3914 = vshll.u32 %v3874, 8
    %v3915 = vmul.u32.u64.compose %v3914, %v3913
    %v3916 = vextract.low.u32 %v3915
    %v3917 = vextract.high.u32 %v3915
    %v3918 = vmul.u32.u64.compose %v3914, %v3909
    %v3919 = vextract.low.u32 %v3918
    %v3920 = vextract.high.u32 %v3918
    %v3921 = vmul.u32 %v3914, %v3905
    %v3922 = vadd.s32 %v3917, %v3919
    %vm3923 = vc.u32 %v3917, %v3919
    %v3924 = vadd.s32 %v3920, 1
    %v3925 = vsel %vm3923, %v3924, %v3920
    %v3926 = vadd.s32 %v3921, %v3925
    %v3927 = vadd.s32 %v3926, 536870912
    %v3928 = vshrl.u32 %v3927, 30
    %v3929 = vshll.u32 %v3928, 30
    %v3930 = vsub.s32 %v3926, %v3929
    %vm3931 = vcmp.lt.s32.totalorder %v3930, 0
    %v3932 = vsub.s32 0, %v3930
    %v3933 = vsel %vm3931, %v3932, %v3930
    %v3934 = vclz %v3933
    %v3935 = vsub.s32 %v3934, 2
    %vm3936 = vcmp.gt.s32.totalorder 0, %v3935
    %v3937 = vsel %vm3936, 0, %v3935
    %v3938 = vsub.s32 32, %v3937
    %v3939 = vshll.u32 %v3930, %v3937
    %v3940 = vshrl.u32 %v3922, %v3938
    %v3941 = vor.u32 %v3939, %v3940
    %v3942 = vsub.s32 4294967266, %v3937
    %v3943 = vadd.s32 %v3942, 127
    %v3944 = vshll.u32 %v3943, 23
    %v3945 = vor.u32 4788187, %v3944
    %v3946 = vand.u32 2147483647, %v3945
    %v3948 = vcvt.s32.f32 %v3941
    %v3949 = vmul.f32 %v3948, %v3946
    %v3950 = vxor.u32 %v3949, 2147483648
    %v3951 = vsel %vm3868, %v3950, %v3949
    %v3952 = vsub.s32 4, %v3928
    %v3953 = vsel %vm3868, %v3952, %v3928
    %v3954 = vsel %vm3867, %v3718, %v3951
    %v3955 = vsel %vm3867, 0, %v3953
    %v3956 = vcosq.f32.pop %v3954
    %v3957 = vsinq.f32.pop %v3954
    %vm3958 = vweird.f32 %v3718
    %v3959 = vadd.s32 %v3955, 3
    %v3960 = vand.u32 %v3959, 3
    %vm3961 = vcmp.lt.s32.totalorder %v3960, 2
    %vm3962 = vcmp.eq.s32.totalorder %v3960, 0
    %v3963 = vxor.u32 %v3957, 2147483648
    %v3964 = vsel %vm3962, %v3956, %v3963
    %vm3965 = vcmp.eq.s32.totalorder %v3960, 2
    %v3966 = vxor.u32 %v3956, 2147483648
    %v3967 = vsel %vm3965, %v3966, %v3957
    %v3968 = vsel %vm3961, %v3964, %v3967
    %v3969 = vsel %vm3958, nan, %v3968
    %v3970 = vand.u32 2147483647, %v3722
    %vm3971 = vcmp.le.f32.partialorder %v3970, 0.7853982
    %vm3972 = vcmp.lt.s32.totalorder %v3722, 0
    %v3973 = vand.u32 %v3722, 2139095040
    %v3974 = vshrl.u32 %v3973, 23
    %v3975 = vsub.s32 %v3974, 127
    %v3976 = vand.u32 2147483647, %v3722
    %v3977 = vand.u32 %v3976, 8388607
    %v3978 = vor.u32 %v3977, 8388608
    %v3979 = vsub.s32 0, %v3978
    %v3980 = vadd.s32 %v3975, 1
    %vm3981 = vcmp.gt.s32.totalorder %v3980, 0
    %v3982 = vsel %vm3981, %v3980, 0
    %v3983 = vshrl.u32 %v3982, 5
    %v3984 = vand.u32 %v3982, 31
    %v3985 = vsub.s32 32, %v3984
    %v3986 = vshrl.u32 683565275, %v3985
    %v3987 = vshll.u32 683565275, %v3984
    %v3988 = vshrl.u32 2475754826, %v3985
    %v3989 = vor.u32 %v3987, %v3988
    %v3990 = vshll.u32 2475754826, %v3984
    %v3991 = vshrl.u32 2131351028, %v3985
    %v3992 = vor.u32 %v3990, %v3991
    %v3993 = vshll.u32 2131351028, %v3984
    %v3994 = vshrl.u32 2102212464, %v3985
    %v3995 = vor.u32 %v3993, %v3994
    %v3996 = vshll.u32 2102212464, %v3984
    %v3997 = vshrl.u32 920167782, %v3985
    %v3998 = vor.u32 %v3996, %v3997
    %v3999 = vshll.u32 920167782, %v3984
    %v4000 = vshrl.u32 1326507024, %v3985
    %v4001 = vor.u32 %v3999, %v4000
    %vm4002 = vcmp.lt.s32.totalorder %v3983, 1
    %vm4003 = vcmp.lt.s32.totalorder %v3983, 2
    %vm4004 = vcmp.lt.s32.totalorder %v3983, 3
    %vm4005 = vcmp.lt.s32.totalorder %v3983, 4
    %v4006 = vsel %vm4002, %v3986, %v3989
    %v4007 = vsel %vm4005, %v3995, 2102212464
    %v4008 = vsel %vm4004, %v3992, %v4007
    %v4009 = vsel %vm4003, %v4006, %v4008
    %v4010 = vsel %vm4002, %v3989, %v3992
    %v4011 = vsel %vm4005, %v3998, 920167782
    %v4012 = vsel %vm4004, %v3995, %v4011
    %v4013 = vsel %vm4003, %v4010, %v4012
    %v4014 = vsel %vm4002, %v3992, %v3995
    %v4015 = vsel %vm4005, %v4001, 1326507024
    %v4016 = vsel %vm4004, %v3998, %v4015
    %v4017 = vsel %vm4003, %v4014, %v4016
    %v4018 = vshll.u32 %v3978, 8
    %v4019 = vmul.u32.u64.compose %v4018, %v4017
    %v4020 = vextract.low.u32 %v4019
    %v4021 = vextract.high.u32 %v4019
    %v4022 = vmul.u32.u64.compose %v4018, %v4013
    %v4023 = vextract.low.u32 %v4022
    %v4024 = vextract.high.u32 %v4022
    %v4025 = vmul.u32 %v4018, %v4009
    %v4026 = vadd.s32 %v4021, %v4023
    %vm4027 = vc.u32 %v4021, %v4023
    %v4028 = vadd.s32 %v4024, 1
    %v4029 = vsel %vm4027, %v4028, %v4024
    %v4030 = vadd.s32 %v4025, %v4029
    %v4031 = vadd.s32 %v4030, 536870912
    %v4032 = vshrl.u32 %v4031, 30
    %v4033 = vshll.u32 %v4032, 30
    %v4034 = vsub.s32 %v4030, %v4033
    %vm4035 = vcmp.lt.s32.totalorder %v4034, 0
    %v4036 = vsub.s32 0, %v4034
    %v4037 = vsel %vm4035, %v4036, %v4034
    %v4038 = vclz %v4037
    %v4039 = vsub.s32 %v4038, 2
    %vm4040 = vcmp.gt.s32.totalorder 0, %v4039
    %v4041 = vsel %vm4040, 0, %v4039
    %v4042 = vsub.s32 32, %v4041
    %v4043 = vshll.u32 %v4034, %v4041
    %v4044 = vshrl.u32 %v4026, %v4042
    %v4045 = vor.u32 %v4043, %v4044
    %v4046 = vsub.s32 4294967266, %v4041
    %v4047 = vadd.s32 %v4046, 127
    %v4048 = vshll.u32 %v4047, 23
    %v4049 = vor.u32 4788187, %v4048
    %v4050 = vand.u32 2147483647, %v4049
    %v4052 = vcvt.s32.f32 %v4045
    %v4053 = vmul.f32 %v4052, %v4050
    %v4054 = vxor.u32 %v4053, 2147483648
    %v4055 = vsel %vm3972, %v4054, %v4053
    %v4056 = vsub.s32 4, %v4032
    %v4057 = vsel %vm3972, %v4056, %v4032
    %v4058 = vsel %vm3971, %v3722, %v4055
    %v4059 = vsel %vm3971, 0, %v4057
    %v4060 = vcosq.f32.pop %v4058
    %v4061 = vsinq.f32.pop %v4058
    %vm4062 = vweird.f32 %v3722
    %v4063 = vadd.s32 %v4059, 3
    %v4064 = vand.u32 %v4063, 3
    %vm4065 = vcmp.lt.s32.totalorder %v4064, 2
    %vm4066 = vcmp.eq.s32.totalorder %v4064, 0
    %v4067 = vxor.u32 %v4061, 2147483648
    %v4068 = vsel %vm4066, %v4060, %v4067
    %vm4069 = vcmp.eq.s32.totalorder %v4064, 2
    %v4070 = vxor.u32 %v4060, 2147483648
    %v4071 = vsel %vm4069, %v4070, %v4061
    %v4072 = vsel %vm4065, %v4068, %v4071
    %v4073 = vsel %vm4062, nan, %v4072
    %v4074 = vand.u32 2147483647, %v3724
    %vm4075 = vcmp.le.f32.partialorder %v4074, 0.7853982
    %vm4076 = vcmp.lt.s32.totalorder %v3724, 0
    %v4077 = vand.u32 %v3724, 2139095040
    %v4078 = vshrl.u32 %v4077, 23
    %v4079 = vsub.s32 %v4078, 127
    %v4080 = vand.u32 2147483647, %v3724
    %v4081 = vand.u32 %v4080, 8388607
    %v4082 = vor.u32 %v4081, 8388608
    %v4083 = vsub.s32 0, %v4082
    %v4084 = vadd.s32 %v4079, 1
    %vm4085 = vcmp.gt.s32.totalorder %v4084, 0
    %v4086 = vsel %vm4085, %v4084, 0
    %v4087 = vshrl.u32 %v4086, 5
    %v4088 = vand.u32 %v4086, 31
    %v4089 = vsub.s32 32, %v4088
    %v4090 = vshrl.u32 683565275, %v4089
    %v4091 = vshll.u32 683565275, %v4088
    %v4092 = vshrl.u32 2475754826, %v4089
    %v4093 = vor.u32 %v4091, %v4092
    %v4094 = vshll.u32 2475754826, %v4088
    %v4095 = vshrl.u32 2131351028, %v4089
    %v4096 = vor.u32 %v4094, %v4095
    %v4097 = vshll.u32 2131351028, %v4088
    %v4098 = vshrl.u32 2102212464, %v4089
    %v4099 = vor.u32 %v4097, %v4098
    %v4100 = vshll.u32 2102212464, %v4088
    %v4101 = vshrl.u32 920167782, %v4089
    %v4102 = vor.u32 %v4100, %v4101
    %v4103 = vshll.u32 920167782, %v4088
    %v4104 = vshrl.u32 1326507024, %v4089
    %v4105 = vor.u32 %v4103, %v4104
    %vm4106 = vcmp.lt.s32.totalorder %v4087, 1
    %vm4107 = vcmp.lt.s32.totalorder %v4087, 2
    %vm4108 = vcmp.lt.s32.totalorder %v4087, 3
    %vm4109 = vcmp.lt.s32.totalorder %v4087, 4
    %v4110 = vsel %vm4106, %v4090, %v4093
    %v4111 = vsel %vm4109, %v4099, 2102212464
    %v4112 = vsel %vm4108, %v4096, %v4111
    %v4113 = vsel %vm4107, %v4110, %v4112
    %v4114 = vsel %vm4106, %v4093, %v4096
    %v4115 = vsel %vm4109, %v4102, 920167782
    %v4116 = vsel %vm4108, %v4099, %v4115
    %v4117 = vsel %vm4107, %v4114, %v4116
    %v4118 = vsel %vm4106, %v4096, %v4099
    %v4119 = vsel %vm4109, %v4105, 1326507024
    %v4120 = vsel %vm4108, %v4102, %v4119
    %v4121 = vsel %vm4107, %v4118, %v4120
    %v4122 = vshll.u32 %v4082, 8
    %v4123 = vmul.u32.u64.compose %v4122, %v4121
    %v4124 = vextract.low.u32 %v4123
    %v4125 = vextract.high.u32 %v4123
    %v4126 = vmul.u32.u64.compose %v4122, %v4117
    %v4127 = vextract.low.u32 %v4126
    %v4128 = vextract.high.u32 %v4126
    %v4129 = vmul.u32 %v4122, %v4113
    %v4130 = vadd.s32 %v4125, %v4127
    %vm4131 = vc.u32 %v4125, %v4127
    %v4132 = vadd.s32 %v4128, 1
    %v4133 = vsel %vm4131, %v4132, %v4128
    %v4134 = vadd.s32 %v4129, %v4133
    %v4135 = vadd.s32 %v4134, 536870912
    %v4136 = vshrl.u32 %v4135, 30
    %v4137 = vshll.u32 %v4136, 30
    %v4138 = vsub.s32 %v4134, %v4137
    %vm4139 = vcmp.lt.s32.totalorder %v4138, 0
    %v4140 = vsub.s32 0, %v4138
    %v4141 = vsel %vm4139, %v4140, %v4138
    %v4142 = vclz %v4141
    %v4143 = vsub.s32 %v4142, 2
    %vm4144 = vcmp.gt.s32.totalorder 0, %v4143
    %v4145 = vsel %vm4144, 0, %v4143
    %v4146 = vsub.s32 32, %v4145
    %v4147 = vshll.u32 %v4138, %v4145
    %v4148 = vshrl.u32 %v4130, %v4146
    %v4149 = vor.u32 %v4147, %v4148
    %v4150 = vsub.s32 4294967266, %v4145
    %v4151 = vadd.s32 %v4150, 127
    %v4152 = vshll.u32 %v4151, 23
    %v4153 = vor.u32 4788187, %v4152
    %v4154 = vand.u32 2147483647, %v4153
    %v4156 = vcvt.s32.f32 %v4149
    %v4157 = vmul.f32 %v4156, %v4154
    %v4158 = vxor.u32 %v4157, 2147483648
    %v4159 = vsel %vm4076, %v4158, %v4157
    %v4160 = vsub.s32 4, %v4136
    %v4161 = vsel %vm4076, %v4160, %v4136
    %v4162 = vsel %vm4075, %v3724, %v4159
    %v4163 = vsel %vm4075, 0, %v4161
    %v4164 = vcosq.f32.pop %v4162
    %v4165 = vsinq.f32.pop %v4162
    %vm4166 = vweird.f32 %v3724
    %v4167 = vadd.s32 %v4163, 3
    %v4168 = vand.u32 %v4167, 3
    %vm4169 = vcmp.lt.s32.totalorder %v4168, 2
    %vm4170 = vcmp.eq.s32.totalorder %v4168, 0
    %v4171 = vxor.u32 %v4165, 2147483648
    %v4172 = vsel %vm4170, %v4164, %v4171
    %vm4173 = vcmp.eq.s32.totalorder %v4168, 2
    %v4174 = vxor.u32 %v4164, 2147483648
    %v4175 = vsel %vm4173, %v4174, %v4165
    %v4176 = vsel %vm4169, %v4172, %v4175
    %v4177 = vsel %vm4166, nan, %v4176
    %v4178 = vand.u32 2147483647, %v3728
    %vm4179 = vcmp.le.f32.partialorder %v4178, 0.7853982
    %vm4180 = vcmp.lt.s32.totalorder %v3728, 0
    %v4181 = vand.u32 %v3728, 2139095040
    %v4182 = vshrl.u32 %v4181, 23
    %v4183 = vsub.s32 %v4182, 127
    %v4184 = vand.u32 2147483647, %v3728
    %v4185 = vand.u32 %v4184, 8388607
    %v4186 = vor.u32 %v4185, 8388608
    %v4187 = vsub.s32 0, %v4186
    %v4188 = vadd.s32 %v4183, 1
    %vm4189 = vcmp.gt.s32.totalorder %v4188, 0
    %v4190 = vsel %vm4189, %v4188, 0
    %v4191 = vshrl.u32 %v4190, 5
    %v4192 = vand.u32 %v4190, 31
    %v4193 = vsub.s32 32, %v4192
    %v4194 = vshrl.u32 683565275, %v4193
    %v4195 = vshll.u32 683565275, %v4192
    %v4196 = vshrl.u32 2475754826, %v4193
    %v4197 = vor.u32 %v4195, %v4196
    %v4198 = vshll.u32 2475754826, %v4192
    %v4199 = vshrl.u32 2131351028, %v4193
    %v4200 = vor.u32 %v4198, %v4199
    %v4201 = vshll.u32 2131351028, %v4192
    %v4202 = vshrl.u32 2102212464, %v4193
    %v4203 = vor.u32 %v4201, %v4202
    %v4204 = vshll.u32 2102212464, %v4192
    %v4205 = vshrl.u32 920167782, %v4193
    %v4206 = vor.u32 %v4204, %v4205
    %v4207 = vshll.u32 920167782, %v4192
    %v4208 = vshrl.u32 1326507024, %v4193
    %v4209 = vor.u32 %v4207, %v4208
    %vm4210 = vcmp.lt.s32.totalorder %v4191, 1
    %vm4211 = vcmp.lt.s32.totalorder %v4191, 2
    %vm4212 = vcmp.lt.s32.totalorder %v4191, 3
    %vm4213 = vcmp.lt.s32.totalorder %v4191, 4
    %v4214 = vsel %vm4210, %v4194, %v4197
    %v4215 = vsel %vm4213, %v4203, 2102212464
    %v4216 = vsel %vm4212, %v4200, %v4215
    %v4217 = vsel %vm4211, %v4214, %v4216
    %v4218 = vsel %vm4210, %v4197, %v4200
    %v4219 = vsel %vm4213, %v4206, 920167782
    %v4220 = vsel %vm4212, %v4203, %v4219
    %v4221 = vsel %vm4211, %v4218, %v4220
    %v4222 = vsel %vm4210, %v4200, %v4203
    %v4223 = vsel %vm4213, %v4209, 1326507024
    %v4224 = vsel %vm4212, %v4206, %v4223
    %v4225 = vsel %vm4211, %v4222, %v4224
    %v4226 = vshll.u32 %v4186, 8
    %v4227 = vmul.u32.u64.compose %v4226, %v4225
    %v4228 = vextract.low.u32 %v4227
    %v4229 = vextract.high.u32 %v4227
    %v4230 = vmul.u32.u64.compose %v4226, %v4221
    %v4231 = vextract.low.u32 %v4230
    %v4232 = vextract.high.u32 %v4230
    %v4233 = vmul.u32 %v4226, %v4217
    %v4234 = vadd.s32 %v4229, %v4231
    %vm4235 = vc.u32 %v4229, %v4231
    %v4236 = vadd.s32 %v4232, 1
    %v4237 = vsel %vm4235, %v4236, %v4232
    %v4238 = vadd.s32 %v4233, %v4237
    %v4239 = vadd.s32 %v4238, 536870912
    %v4240 = vshrl.u32 %v4239, 30
    %v4241 = vshll.u32 %v4240, 30
    %v4242 = vsub.s32 %v4238, %v4241
    %vm4243 = vcmp.lt.s32.totalorder %v4242, 0
    %v4244 = vsub.s32 0, %v4242
    %v4245 = vsel %vm4243, %v4244, %v4242
    %v4246 = vclz %v4245
    %v4247 = vsub.s32 %v4246, 2
    %vm4248 = vcmp.gt.s32.totalorder 0, %v4247
    %v4249 = vsel %vm4248, 0, %v4247
    %v4250 = vsub.s32 32, %v4249
    %v4251 = vshll.u32 %v4242, %v4249
    %v4252 = vshrl.u32 %v4234, %v4250
    %v4253 = vor.u32 %v4251, %v4252
    %v4254 = vsub.s32 4294967266, %v4249
    %v4255 = vadd.s32 %v4254, 127
    %v4256 = vshll.u32 %v4255, 23
    %v4257 = vor.u32 4788187, %v4256
    %v4258 = vand.u32 2147483647, %v4257
    %v4260 = vcvt.s32.f32 %v4253
    %v4261 = vmul.f32 %v4260, %v4258
    %v4262 = vxor.u32 %v4261, 2147483648
    %v4263 = vsel %vm4180, %v4262, %v4261
    %v4264 = vsub.s32 4, %v4240
    %v4265 = vsel %vm4180, %v4264, %v4240
    %v4266 = vsel %vm4179, %v3728, %v4263
    %v4267 = vsel %vm4179, 0, %v4265
    %v4268 = vcosq.f32.pop %v4266
    %v4269 = vsinq.f32.pop %v4266
    %vm4270 = vweird.f32 %v3728
    %v4271 = vadd.s32 %v4267, 3
    %v4272 = vand.u32 %v4271, 3
    %vm4273 = vcmp.lt.s32.totalorder %v4272, 2
    %vm4274 = vcmp.eq.s32.totalorder %v4272, 0
    %v4275 = vxor.u32 %v4269, 2147483648
    %v4276 = vsel %vm4274, %v4268, %v4275
    %vm4277 = vcmp.eq.s32.totalorder %v4272, 2
    %v4278 = vxor.u32 %v4268, 2147483648
    %v4279 = vsel %vm4277, %v4278, %v4269
    %v4280 = vsel %vm4273, %v4276, %v4279
    %v4281 = vsel %vm4270, nan, %v4280
    %v4282 = vand.u32 2147483647, %v3730
    %vm4283 = vcmp.le.f32.partialorder %v4282, 0.7853982
    %vm4284 = vcmp.lt.s32.totalorder %v3730, 0
    %v4285 = vand.u32 %v3730, 2139095040
    %v4286 = vshrl.u32 %v4285, 23
    %v4287 = vsub.s32 %v4286, 127
    %v4288 = vand.u32 2147483647, %v3730
    %v4289 = vand.u32 %v4288, 8388607
    %v4290 = vor.u32 %v4289, 8388608
    %v4291 = vsub.s32 0, %v4290
    %v4292 = vadd.s32 %v4287, 1
    %vm4293 = vcmp.gt.s32.totalorder %v4292, 0
    %v4294 = vsel %vm4293, %v4292, 0
    %v4295 = vshrl.u32 %v4294, 5
    %v4296 = vand.u32 %v4294, 31
    %v4297 = vsub.s32 32, %v4296
    %v4298 = vshrl.u32 683565275, %v4297
    %v4299 = vshll.u32 683565275, %v4296
    %v4300 = vshrl.u32 2475754826, %v4297
    %v4301 = vor.u32 %v4299, %v4300
    %v4302 = vshll.u32 2475754826, %v4296
    %v4303 = vshrl.u32 2131351028, %v4297
    %v4304 = vor.u32 %v4302, %v4303
    %v4305 = vshll.u32 2131351028, %v4296
    %v4306 = vshrl.u32 2102212464, %v4297
    %v4307 = vor.u32 %v4305, %v4306
    %v4308 = vshll.u32 2102212464, %v4296
    %v4309 = vshrl.u32 920167782, %v4297
    %v4310 = vor.u32 %v4308, %v4309
    %v4311 = vshll.u32 920167782, %v4296
    %v4312 = vshrl.u32 1326507024, %v4297
    %v4313 = vor.u32 %v4311, %v4312
    %vm4314 = vcmp.lt.s32.totalorder %v4295, 1
    %vm4315 = vcmp.lt.s32.totalorder %v4295, 2
    %vm4316 = vcmp.lt.s32.totalorder %v4295, 3
    %vm4317 = vcmp.lt.s32.totalorder %v4295, 4
    %v4318 = vsel %vm4314, %v4298, %v4301
    %v4319 = vsel %vm4317, %v4307, 2102212464
    %v4320 = vsel %vm4316, %v4304, %v4319
    %v4321 = vsel %vm4315, %v4318, %v4320
    %v4322 = vsel %vm4314, %v4301, %v4304
    %v4323 = vsel %vm4317, %v4310, 920167782
    %v4324 = vsel %vm4316, %v4307, %v4323
    %v4325 = vsel %vm4315, %v4322, %v4324
    %v4326 = vsel %vm4314, %v4304, %v4307
    %v4327 = vsel %vm4317, %v4313, 1326507024
    %v4328 = vsel %vm4316, %v4310, %v4327
    %v4329 = vsel %vm4315, %v4326, %v4328
    %v4330 = vshll.u32 %v4290, 8
    %v4331 = vmul.u32.u64.compose %v4330, %v4329
    %v4332 = vextract.low.u32 %v4331
    %v4333 = vextract.high.u32 %v4331
    %v4334 = vmul.u32.u64.compose %v4330, %v4325
    %v4335 = vextract.low.u32 %v4334
    %v4336 = vextract.high.u32 %v4334
    %v4337 = vmul.u32 %v4330, %v4321
    %v4338 = vadd.s32 %v4333, %v4335
    %vm4339 = vc.u32 %v4333, %v4335
    %v4340 = vadd.s32 %v4336, 1
    %v4341 = vsel %vm4339, %v4340, %v4336
    %v4342 = vadd.s32 %v4337, %v4341
    %v4343 = vadd.s32 %v4342, 536870912
    %v4344 = vshrl.u32 %v4343, 30
    %v4345 = vshll.u32 %v4344, 30
    %v4346 = vsub.s32 %v4342, %v4345
    %vm4347 = vcmp.lt.s32.totalorder %v4346, 0
    %v4348 = vsub.s32 0, %v4346
    %v4349 = vsel %vm4347, %v4348, %v4346
    %v4350 = vclz %v4349
    %v4351 = vsub.s32 %v4350, 2
    %vm4352 = vcmp.gt.s32.totalorder 0, %v4351
    %v4353 = vsel %vm4352, 0, %v4351
    %v4354 = vsub.s32 32, %v4353
    %v4355 = vshll.u32 %v4346, %v4353
    %v4356 = vshrl.u32 %v4338, %v4354
    %v4357 = vor.u32 %v4355, %v4356
    %v4358 = vsub.s32 4294967266, %v4353
    %v4359 = vadd.s32 %v4358, 127
    %v4360 = vshll.u32 %v4359, 23
    %v4361 = vor.u32 4788187, %v4360
    %v4362 = vand.u32 2147483647, %v4361
    %v4364 = vcvt.s32.f32 %v4357
    %v4365 = vmul.f32 %v4364, %v4362
    %v4366 = vxor.u32 %v4365, 2147483648
    %v4367 = vsel %vm4284, %v4366, %v4365
    %v4368 = vsub.s32 4, %v4344
    %v4369 = vsel %vm4284, %v4368, %v4344
    %v4370 = vsel %vm4283, %v3730, %v4367
    %v4371 = vsel %vm4283, 0, %v4369
    %v4372 = vcosq.f32.pop %v4370
    %v4373 = vsinq.f32.pop %v4370
    %vm4374 = vweird.f32 %v3730
    %v4375 = vadd.s32 %v4371, 3
    %v4376 = vand.u32 %v4375, 3
    %vm4377 = vcmp.lt.s32.totalorder %v4376, 2
    %vm4378 = vcmp.eq.s32.totalorder %v4376, 0
    %v4379 = vxor.u32 %v4373, 2147483648
    %v4380 = vsel %vm4378, %v4372, %v4379
    %vm4381 = vcmp.eq.s32.totalorder %v4376, 2
    %v4382 = vxor.u32 %v4372, 2147483648
    %v4383 = vsel %vm4381, %v4382, %v4373
    %v4384 = vsel %vm4377, %v4380, %v4383
    %v4385 = vsel %vm4374, nan, %v4384
    %v4386 = vand.u32 2147483647, %v3734
    %vm4387 = vcmp.le.f32.partialorder %v4386, 0.7853982
    %vm4388 = vcmp.lt.s32.totalorder %v3734, 0
    %v4389 = vand.u32 %v3734, 2139095040
    %v4390 = vshrl.u32 %v4389, 23
    %v4391 = vsub.s32 %v4390, 127
    %v4392 = vand.u32 2147483647, %v3734
    %v4393 = vand.u32 %v4392, 8388607
    %v4394 = vor.u32 %v4393, 8388608
    %v4395 = vsub.s32 0, %v4394
    %v4396 = vadd.s32 %v4391, 1
    %vm4397 = vcmp.gt.s32.totalorder %v4396, 0
    %v4398 = vsel %vm4397, %v4396, 0
    %v4399 = vshrl.u32 %v4398, 5
    %v4400 = vand.u32 %v4398, 31
    %v4401 = vsub.s32 32, %v4400
    %v4402 = vshrl.u32 683565275, %v4401
    %v4403 = vshll.u32 683565275, %v4400
    %v4404 = vshrl.u32 2475754826, %v4401
    %v4405 = vor.u32 %v4403, %v4404
    %v4406 = vshll.u32 2475754826, %v4400
    %v4407 = vshrl.u32 2131351028, %v4401
    %v4408 = vor.u32 %v4406, %v4407
    %v4409 = vshll.u32 2131351028, %v4400
    %v4410 = vshrl.u32 2102212464, %v4401
    %v4411 = vor.u32 %v4409, %v4410
    %v4412 = vshll.u32 2102212464, %v4400
    %v4413 = vshrl.u32 920167782, %v4401
    %v4414 = vor.u32 %v4412, %v4413
    %v4415 = vshll.u32 920167782, %v4400
    %v4416 = vshrl.u32 1326507024, %v4401
    %v4417 = vor.u32 %v4415, %v4416
    %vm4418 = vcmp.lt.s32.totalorder %v4399, 1
    %vm4419 = vcmp.lt.s32.totalorder %v4399, 2
    %vm4420 = vcmp.lt.s32.totalorder %v4399, 3
    %vm4421 = vcmp.lt.s32.totalorder %v4399, 4
    %v4422 = vsel %vm4418, %v4402, %v4405
    %v4423 = vsel %vm4421, %v4411, 2102212464
    %v4424 = vsel %vm4420, %v4408, %v4423
    %v4425 = vsel %vm4419, %v4422, %v4424
    %v4426 = vsel %vm4418, %v4405, %v4408
    %v4427 = vsel %vm4421, %v4414, 920167782
    %v4428 = vsel %vm4420, %v4411, %v4427
    %v4429 = vsel %vm4419, %v4426, %v4428
    %v4430 = vsel %vm4418, %v4408, %v4411
    %v4431 = vsel %vm4421, %v4417, 1326507024
    %v4432 = vsel %vm4420, %v4414, %v4431
    %v4433 = vsel %vm4419, %v4430, %v4432
    %v4434 = vshll.u32 %v4394, 8
    %v4435 = vmul.u32.u64.compose %v4434, %v4433
    %v4436 = vextract.low.u32 %v4435
    %v4437 = vextract.high.u32 %v4435
    %v4438 = vmul.u32.u64.compose %v4434, %v4429
    %v4439 = vextract.low.u32 %v4438
    %v4440 = vextract.high.u32 %v4438
    %v4441 = vmul.u32 %v4434, %v4425
    %v4442 = vadd.s32 %v4437, %v4439
    %vm4443 = vc.u32 %v4437, %v4439
    %v4444 = vadd.s32 %v4440, 1
    %v4445 = vsel %vm4443, %v4444, %v4440
    %v4446 = vadd.s32 %v4441, %v4445
    %v4447 = vadd.s32 %v4446, 536870912
    %v4448 = vshrl.u32 %v4447, 30
    %v4449 = vshll.u32 %v4448, 30
    %v4450 = vsub.s32 %v4446, %v4449
    %vm4451 = vcmp.lt.s32.totalorder %v4450, 0
    %v4452 = vsub.s32 0, %v4450
    %v4453 = vsel %vm4451, %v4452, %v4450
    %v4454 = vclz %v4453
    %v4455 = vsub.s32 %v4454, 2
    %vm4456 = vcmp.gt.s32.totalorder 0, %v4455
    %v4457 = vsel %vm4456, 0, %v4455
    %v4458 = vsub.s32 32, %v4457
    %v4459 = vshll.u32 %v4450, %v4457
    %v4460 = vshrl.u32 %v4442, %v4458
    %v4461 = vor.u32 %v4459, %v4460
    %v4462 = vsub.s32 4294967266, %v4457
    %v4463 = vadd.s32 %v4462, 127
    %v4464 = vshll.u32 %v4463, 23
    %v4465 = vor.u32 4788187, %v4464
    %v4466 = vand.u32 2147483647, %v4465
    %v4468 = vcvt.s32.f32 %v4461
    %v4469 = vmul.f32 %v4468, %v4466
    %v4470 = vxor.u32 %v4469, 2147483648
    %v4471 = vsel %vm4388, %v4470, %v4469
    %v4472 = vsub.s32 4, %v4448
    %v4473 = vsel %vm4388, %v4472, %v4448
    %v4474 = vsel %vm4387, %v3734, %v4471
    %v4475 = vsel %vm4387, 0, %v4473
    %v4476 = vcosq.f32.pop %v4474
    %v4477 = vsinq.f32.pop %v4474
    %vm4478 = vweird.f32 %v3734
    %v4479 = vadd.s32 %v4475, 3
    %v4480 = vand.u32 %v4479, 3
    %vm4481 = vcmp.lt.s32.totalorder %v4480, 2
    %vm4482 = vcmp.eq.s32.totalorder %v4480, 0
    %v4483 = vxor.u32 %v4477, 2147483648
    %v4484 = vsel %vm4482, %v4476, %v4483
    %vm4485 = vcmp.eq.s32.totalorder %v4480, 2
    %v4486 = vxor.u32 %v4476, 2147483648
    %v4487 = vsel %vm4485, %v4486, %v4477
    %v4488 = vsel %vm4481, %v4484, %v4487
    %v4489 = vsel %vm4478, nan, %v4488
    %v4490 = vand.u32 2147483647, %v3736
    %vm4491 = vcmp.le.f32.partialorder %v4490, 0.7853982
    %vm4492 = vcmp.lt.s32.totalorder %v3736, 0
    %v4493 = vand.u32 %v3736, 2139095040
    %v4494 = vshrl.u32 %v4493, 23
    %v4495 = vsub.s32 %v4494, 127
    %v4496 = vand.u32 2147483647, %v3736
    %v4497 = vand.u32 %v4496, 8388607
    %v4498 = vor.u32 %v4497, 8388608
    %v4499 = vsub.s32 0, %v4498
    %v4500 = vadd.s32 %v4495, 1
    %vm4501 = vcmp.gt.s32.totalorder %v4500, 0
    %v4502 = vsel %vm4501, %v4500, 0
    %v4503 = vshrl.u32 %v4502, 5
    %v4504 = vand.u32 %v4502, 31
    %v4505 = vsub.s32 32, %v4504
    %v4506 = vshrl.u32 683565275, %v4505
    %v4507 = vshll.u32 683565275, %v4504
    %v4508 = vshrl.u32 2475754826, %v4505
    %v4509 = vor.u32 %v4507, %v4508
    %v4510 = vshll.u32 2475754826, %v4504
    %v4511 = vshrl.u32 2131351028, %v4505
    %v4512 = vor.u32 %v4510, %v4511
    %v4513 = vshll.u32 2131351028, %v4504
    %v4514 = vshrl.u32 2102212464, %v4505
    %v4515 = vor.u32 %v4513, %v4514
    %v4516 = vshll.u32 2102212464, %v4504
    %v4517 = vshrl.u32 920167782, %v4505
    %v4518 = vor.u32 %v4516, %v4517
    %v4519 = vshll.u32 920167782, %v4504
    %v4520 = vshrl.u32 1326507024, %v4505
    %v4521 = vor.u32 %v4519, %v4520
    %vm4522 = vcmp.lt.s32.totalorder %v4503, 1
    %vm4523 = vcmp.lt.s32.totalorder %v4503, 2
    %vm4524 = vcmp.lt.s32.totalorder %v4503, 3
    %vm4525 = vcmp.lt.s32.totalorder %v4503, 4
    %v4526 = vsel %vm4522, %v4506, %v4509
    %v4527 = vsel %vm4525, %v4515, 2102212464
    %v4528 = vsel %vm4524, %v4512, %v4527
    %v4529 = vsel %vm4523, %v4526, %v4528
    %v4530 = vsel %vm4522, %v4509, %v4512
    %v4531 = vsel %vm4525, %v4518, 920167782
    %v4532 = vsel %vm4524, %v4515, %v4531
    %v4533 = vsel %vm4523, %v4530, %v4532
    %v4534 = vsel %vm4522, %v4512, %v4515
    %v4535 = vsel %vm4525, %v4521, 1326507024
    %v4536 = vsel %vm4524, %v4518, %v4535
    %v4537 = vsel %vm4523, %v4534, %v4536
    %v4538 = vshll.u32 %v4498, 8
    %v4539 = vmul.u32.u64.compose %v4538, %v4537
    %v4540 = vextract.low.u32 %v4539
    %v4541 = vextract.high.u32 %v4539
    %v4542 = vmul.u32.u64.compose %v4538, %v4533
    %v4543 = vextract.low.u32 %v4542
    %v4544 = vextract.high.u32 %v4542
    %v4545 = vmul.u32 %v4538, %v4529
    %v4546 = vadd.s32 %v4541, %v4543
    %vm4547 = vc.u32 %v4541, %v4543
    %v4548 = vadd.s32 %v4544, 1
    %v4549 = vsel %vm4547, %v4548, %v4544
    %v4550 = vadd.s32 %v4545, %v4549
    %v4551 = vadd.s32 %v4550, 536870912
    %v4552 = vshrl.u32 %v4551, 30
    %v4553 = vshll.u32 %v4552, 30
    %v4554 = vsub.s32 %v4550, %v4553
    %vm4555 = vcmp.lt.s32.totalorder %v4554, 0
    %v4556 = vsub.s32 0, %v4554
    %v4557 = vsel %vm4555, %v4556, %v4554
    %v4558 = vclz %v4557
    %v4559 = vsub.s32 %v4558, 2
    %vm4560 = vcmp.gt.s32.totalorder 0, %v4559
    %v4561 = vsel %vm4560, 0, %v4559
    %v4562 = vsub.s32 32, %v4561
    %v4563 = vshll.u32 %v4554, %v4561
    %v4564 = vshrl.u32 %v4546, %v4562
    %v4565 = vor.u32 %v4563, %v4564
    %v4566 = vsub.s32 4294967266, %v4561
    %v4567 = vadd.s32 %v4566, 127
    %v4568 = vshll.u32 %v4567, 23
    %v4569 = vor.u32 4788187, %v4568
    %v4570 = vand.u32 2147483647, %v4569
    %v4572 = vcvt.s32.f32 %v4565
    %v4573 = vmul.f32 %v4572, %v4570
    %v4574 = vxor.u32 %v4573, 2147483648
    %v4575 = vsel %vm4492, %v4574, %v4573
    %v4576 = vsub.s32 4, %v4552
    %v4577 = vsel %vm4492, %v4576, %v4552
    %v4578 = vsel %vm4491, %v3736, %v4575
    %v4579 = vsel %vm4491, 0, %v4577
    %v4580 = vcosq.f32.pop %v4578
    %v4581 = vsinq.f32.pop %v4578
    %vm4582 = vweird.f32 %v3736
    %v4583 = vadd.s32 %v4579, 3
    %v4584 = vand.u32 %v4583, 3
    %vm4585 = vcmp.lt.s32.totalorder %v4584, 2
    %vm4586 = vcmp.eq.s32.totalorder %v4584, 0
    %v4587 = vxor.u32 %v4581, 2147483648
    %v4588 = vsel %vm4586, %v4580, %v4587
    %vm4589 = vcmp.eq.s32.totalorder %v4584, 2
    %v4590 = vxor.u32 %v4580, 2147483648
    %v4591 = vsel %vm4589, %v4590, %v4581
    %v4592 = vsel %vm4585, %v4588, %v4591
    %v4593 = vsel %vm4582, nan, %v4592
    %v4594 = vand.u32 2147483647, %v3740
    %vm4595 = vcmp.le.f32.partialorder %v4594, 0.7853982
    %vm4596 = vcmp.lt.s32.totalorder %v3740, 0
    %v4597 = vand.u32 %v3740, 2139095040
    %v4598 = vshrl.u32 %v4597, 23
    %v4599 = vsub.s32 %v4598, 127
    %v4600 = vand.u32 2147483647, %v3740
    %v4601 = vand.u32 %v4600, 8388607
    %v4602 = vor.u32 %v4601, 8388608
    %v4603 = vsub.s32 0, %v4602
    %v4604 = vadd.s32 %v4599, 1
    %vm4605 = vcmp.gt.s32.totalorder %v4604, 0
    %v4606 = vsel %vm4605, %v4604, 0
    %v4607 = vshrl.u32 %v4606, 5
    %v4608 = vand.u32 %v4606, 31
    %v4609 = vsub.s32 32, %v4608
    %v4610 = vshrl.u32 683565275, %v4609
    %v4611 = vshll.u32 683565275, %v4608
    %v4612 = vshrl.u32 2475754826, %v4609
    %v4613 = vor.u32 %v4611, %v4612
    %v4614 = vshll.u32 2475754826, %v4608
    %v4615 = vshrl.u32 2131351028, %v4609
    %v4616 = vor.u32 %v4614, %v4615
    %v4617 = vshll.u32 2131351028, %v4608
    %v4618 = vshrl.u32 2102212464, %v4609
    %v4619 = vor.u32 %v4617, %v4618
    %v4620 = vshll.u32 2102212464, %v4608
    %v4621 = vshrl.u32 920167782, %v4609
    %v4622 = vor.u32 %v4620, %v4621
    %v4623 = vshll.u32 920167782, %v4608
    %v4624 = vshrl.u32 1326507024, %v4609
    %v4625 = vor.u32 %v4623, %v4624
    %vm4626 = vcmp.lt.s32.totalorder %v4607, 1
    %vm4627 = vcmp.lt.s32.totalorder %v4607, 2
    %vm4628 = vcmp.lt.s32.totalorder %v4607, 3
    %vm4629 = vcmp.lt.s32.totalorder %v4607, 4
    %v4630 = vsel %vm4626, %v4610, %v4613
    %v4631 = vsel %vm4629, %v4619, 2102212464
    %v4632 = vsel %vm4628, %v4616, %v4631
    %v4633 = vsel %vm4627, %v4630, %v4632
    %v4634 = vsel %vm4626, %v4613, %v4616
    %v4635 = vsel %vm4629, %v4622, 920167782
    %v4636 = vsel %vm4628, %v4619, %v4635
    %v4637 = vsel %vm4627, %v4634, %v4636
    %v4638 = vsel %vm4626, %v4616, %v4619
    %v4639 = vsel %vm4629, %v4625, 1326507024
    %v4640 = vsel %vm4628, %v4622, %v4639
    %v4641 = vsel %vm4627, %v4638, %v4640
    %v4642 = vshll.u32 %v4602, 8
    %v4643 = vmul.u32.u64.compose %v4642, %v4641
    %v4644 = vextract.low.u32 %v4643
    %v4645 = vextract.high.u32 %v4643
    %v4646 = vmul.u32.u64.compose %v4642, %v4637
    %v4647 = vextract.low.u32 %v4646
    %v4648 = vextract.high.u32 %v4646
    %v4649 = vmul.u32 %v4642, %v4633
    %v4650 = vadd.s32 %v4645, %v4647
    %vm4651 = vc.u32 %v4645, %v4647
    %v4652 = vadd.s32 %v4648, 1
    %v4653 = vsel %vm4651, %v4652, %v4648
    %v4654 = vadd.s32 %v4649, %v4653
    %v4655 = vadd.s32 %v4654, 536870912
    %v4656 = vshrl.u32 %v4655, 30
    %v4657 = vshll.u32 %v4656, 30
    %v4658 = vsub.s32 %v4654, %v4657
    %vm4659 = vcmp.lt.s32.totalorder %v4658, 0
    %v4660 = vsub.s32 0, %v4658
    %v4661 = vsel %vm4659, %v4660, %v4658
    %v4662 = vclz %v4661
    %v4663 = vsub.s32 %v4662, 2
    %vm4664 = vcmp.gt.s32.totalorder 0, %v4663
    %v4665 = vsel %vm4664, 0, %v4663
    %v4666 = vsub.s32 32, %v4665
    %v4667 = vshll.u32 %v4658, %v4665
    %v4668 = vshrl.u32 %v4650, %v4666
    %v4669 = vor.u32 %v4667, %v4668
    %v4670 = vsub.s32 4294967266, %v4665
    %v4671 = vadd.s32 %v4670, 127
    %v4672 = vshll.u32 %v4671, 23
    %v4673 = vor.u32 4788187, %v4672
    %v4674 = vand.u32 2147483647, %v4673
    %v4676 = vcvt.s32.f32 %v4669
    %v4677 = vmul.f32 %v4676, %v4674
    %v4678 = vxor.u32 %v4677, 2147483648
    %v4679 = vsel %vm4596, %v4678, %v4677
    %v4680 = vsub.s32 4, %v4656
    %v4681 = vsel %vm4596, %v4680, %v4656
    %v4682 = vsel %vm4595, %v3740, %v4679
    %v4683 = vsel %vm4595, 0, %v4681
    %v4684 = vcosq.f32.pop %v4682
    %v4685 = vsinq.f32.pop %v4682
    %vm4686 = vweird.f32 %v3740
    %v4687 = vadd.s32 %v4683, 3
    %v4688 = vand.u32 %v4687, 3
    %vm4689 = vcmp.lt.s32.totalorder %v4688, 2
    %vm4690 = vcmp.eq.s32.totalorder %v4688, 0
    %v4691 = vxor.u32 %v4685, 2147483648
    %v4692 = vsel %vm4690, %v4684, %v4691
    %vm4693 = vcmp.eq.s32.totalorder %v4688, 2
    %v4694 = vxor.u32 %v4684, 2147483648
    %v4695 = vsel %vm4693, %v4694, %v4685
    %v4696 = vsel %vm4689, %v4692, %v4695
    %v4697 = vsel %vm4686, nan, %v4696
    %v4698 = vand.u32 2147483647, %v3742
    %vm4699 = vcmp.le.f32.partialorder %v4698, 0.7853982
    %vm4700 = vcmp.lt.s32.totalorder %v3742, 0
    %v4701 = vand.u32 %v3742, 2139095040
    %v4702 = vshrl.u32 %v4701, 23
    %v4703 = vsub.s32 %v4702, 127
    %v4704 = vand.u32 2147483647, %v3742
    %v4705 = vand.u32 %v4704, 8388607
    %v4706 = vor.u32 %v4705, 8388608
    %v4707 = vsub.s32 0, %v4706
    %v4708 = vadd.s32 %v4703, 1
    %vm4709 = vcmp.gt.s32.totalorder %v4708, 0
    %v4710 = vsel %vm4709, %v4708, 0
    %v4711 = vshrl.u32 %v4710, 5
    %v4712 = vand.u32 %v4710, 31
    %v4713 = vsub.s32 32, %v4712
    %v4714 = vshrl.u32 683565275, %v4713
    %v4715 = vshll.u32 683565275, %v4712
    %v4716 = vshrl.u32 2475754826, %v4713
    %v4717 = vor.u32 %v4715, %v4716
    %v4718 = vshll.u32 2475754826, %v4712
    %v4719 = vshrl.u32 2131351028, %v4713
    %v4720 = vor.u32 %v4718, %v4719
    %v4721 = vshll.u32 2131351028, %v4712
    %v4722 = vshrl.u32 2102212464, %v4713
    %v4723 = vor.u32 %v4721, %v4722
    %v4724 = vshll.u32 2102212464, %v4712
    %v4725 = vshrl.u32 920167782, %v4713
    %v4726 = vor.u32 %v4724, %v4725
    %v4727 = vshll.u32 920167782, %v4712
    %v4728 = vshrl.u32 1326507024, %v4713
    %v4729 = vor.u32 %v4727, %v4728
    %vm4730 = vcmp.lt.s32.totalorder %v4711, 1
    %vm4731 = vcmp.lt.s32.totalorder %v4711, 2
    %vm4732 = vcmp.lt.s32.totalorder %v4711, 3
    %vm4733 = vcmp.lt.s32.totalorder %v4711, 4
    %v4734 = vsel %vm4730, %v4714, %v4717
    %v4735 = vsel %vm4733, %v4723, 2102212464
    %v4736 = vsel %vm4732, %v4720, %v4735
    %v4737 = vsel %vm4731, %v4734, %v4736
    %v4738 = vsel %vm4730, %v4717, %v4720
    %v4739 = vsel %vm4733, %v4726, 920167782
    %v4740 = vsel %vm4732, %v4723, %v4739
    %v4741 = vsel %vm4731, %v4738, %v4740
    %v4742 = vsel %vm4730, %v4720, %v4723
    %v4743 = vsel %vm4733, %v4729, 1326507024
    %v4744 = vsel %vm4732, %v4726, %v4743
    %v4745 = vsel %vm4731, %v4742, %v4744
    %v4746 = vshll.u32 %v4706, 8
    %v4747 = vmul.u32.u64.compose %v4746, %v4745
    %v4748 = vextract.low.u32 %v4747
    %v4749 = vextract.high.u32 %v4747
    %v4750 = vmul.u32.u64.compose %v4746, %v4741
    %v4751 = vextract.low.u32 %v4750
    %v4752 = vextract.high.u32 %v4750
    %v4753 = vmul.u32 %v4746, %v4737
    %v4754 = vadd.s32 %v4749, %v4751
    %vm4755 = vc.u32 %v4749, %v4751
    %v4756 = vadd.s32 %v4752, 1
    %v4757 = vsel %vm4755, %v4756, %v4752
    %v4758 = vadd.s32 %v4753, %v4757
    %v4759 = vadd.s32 %v4758, 536870912
    %v4760 = vshrl.u32 %v4759, 30
    %v4761 = vshll.u32 %v4760, 30
    %v4762 = vsub.s32 %v4758, %v4761
    %vm4763 = vcmp.lt.s32.totalorder %v4762, 0
    %v4764 = vsub.s32 0, %v4762
    %v4765 = vsel %vm4763, %v4764, %v4762
    %v4766 = vclz %v4765
    %v4767 = vsub.s32 %v4766, 2
    %vm4768 = vcmp.gt.s32.totalorder 0, %v4767
    %v4769 = vsel %vm4768, 0, %v4767
    %v4770 = vsub.s32 32, %v4769
    %v4771 = vshll.u32 %v4762, %v4769
    %v4772 = vshrl.u32 %v4754, %v4770
    %v4773 = vor.u32 %v4771, %v4772
    %v4774 = vsub.s32 4294967266, %v4769
    %v4775 = vadd.s32 %v4774, 127
    %v4776 = vshll.u32 %v4775, 23
    %v4777 = vor.u32 4788187, %v4776
    %v4778 = vand.u32 2147483647, %v4777
    %v4780 = vcvt.s32.f32 %v4773
    %v4781 = vmul.f32 %v4780, %v4778
    %v4782 = vxor.u32 %v4781, 2147483648
    %v4783 = vsel %vm4700, %v4782, %v4781
    %v4784 = vsub.s32 4, %v4760
    %v4785 = vsel %vm4700, %v4784, %v4760
    %v4786 = vsel %vm4699, %v3742, %v4783
    %v4787 = vsel %vm4699, 0, %v4785
    %v4788 = vcosq.f32.pop %v4786
    %v4789 = vsinq.f32.pop %v4786
    %vm4790 = vweird.f32 %v3742
    %v4791 = vadd.s32 %v4787, 3
    %v4792 = vand.u32 %v4791, 3
    %vm4793 = vcmp.lt.s32.totalorder %v4792, 2
    %vm4794 = vcmp.eq.s32.totalorder %v4792, 0
    %v4795 = vxor.u32 %v4789, 2147483648
    %v4796 = vsel %vm4794, %v4788, %v4795
    %vm4797 = vcmp.eq.s32.totalorder %v4792, 2
    %v4798 = vxor.u32 %v4788, 2147483648
    %v4799 = vsel %vm4797, %v4798, %v4789
    %v4800 = vsel %vm4793, %v4796, %v4799
    %v4801 = vsel %vm4790, nan, %v4800
    %v4802 = vand.u32 2147483647, %v3746
    %vm4803 = vcmp.le.f32.partialorder %v4802, 0.7853982
    %vm4804 = vcmp.lt.s32.totalorder %v3746, 0
    %v4805 = vand.u32 %v3746, 2139095040
    %v4806 = vshrl.u32 %v4805, 23
    %v4807 = vsub.s32 %v4806, 127
    %v4808 = vand.u32 2147483647, %v3746
    %v4809 = vand.u32 %v4808, 8388607
    %v4810 = vor.u32 %v4809, 8388608
    %v4811 = vsub.s32 0, %v4810
    %v4812 = vadd.s32 %v4807, 1
    %vm4813 = vcmp.gt.s32.totalorder %v4812, 0
    %v4814 = vsel %vm4813, %v4812, 0
    %v4815 = vshrl.u32 %v4814, 5
    %v4816 = vand.u32 %v4814, 31
    %v4817 = vsub.s32 32, %v4816
    %v4818 = vshrl.u32 683565275, %v4817
    %v4819 = vshll.u32 683565275, %v4816
    %v4820 = vshrl.u32 2475754826, %v4817
    %v4821 = vor.u32 %v4819, %v4820
    %v4822 = vshll.u32 2475754826, %v4816
    %v4823 = vshrl.u32 2131351028, %v4817
    %v4824 = vor.u32 %v4822, %v4823
    %v4825 = vshll.u32 2131351028, %v4816
    %v4826 = vshrl.u32 2102212464, %v4817
    %v4827 = vor.u32 %v4825, %v4826
    %v4828 = vshll.u32 2102212464, %v4816
    %v4829 = vshrl.u32 920167782, %v4817
    %v4830 = vor.u32 %v4828, %v4829
    %v4831 = vshll.u32 920167782, %v4816
    %v4832 = vshrl.u32 1326507024, %v4817
    %v4833 = vor.u32 %v4831, %v4832
    %vm4834 = vcmp.lt.s32.totalorder %v4815, 1
    %vm4835 = vcmp.lt.s32.totalorder %v4815, 2
    %vm4836 = vcmp.lt.s32.totalorder %v4815, 3
    %vm4837 = vcmp.lt.s32.totalorder %v4815, 4
    %v4838 = vsel %vm4834, %v4818, %v4821
    %v4839 = vsel %vm4837, %v4827, 2102212464
    %v4840 = vsel %vm4836, %v4824, %v4839
    %v4841 = vsel %vm4835, %v4838, %v4840
    %v4842 = vsel %vm4834, %v4821, %v4824
    %v4843 = vsel %vm4837, %v4830, 920167782
    %v4844 = vsel %vm4836, %v4827, %v4843
    %v4845 = vsel %vm4835, %v4842, %v4844
    %v4846 = vsel %vm4834, %v4824, %v4827
    %v4847 = vsel %vm4837, %v4833, 1326507024
    %v4848 = vsel %vm4836, %v4830, %v4847
    %v4849 = vsel %vm4835, %v4846, %v4848
    %v4850 = vshll.u32 %v4810, 8
    %v4851 = vmul.u32.u64.compose %v4850, %v4849
    %v4852 = vextract.low.u32 %v4851
    %v4853 = vextract.high.u32 %v4851
    %v4854 = vmul.u32.u64.compose %v4850, %v4845
    %v4855 = vextract.low.u32 %v4854
    %v4856 = vextract.high.u32 %v4854
    %v4857 = vmul.u32 %v4850, %v4841
    %v4858 = vadd.s32 %v4853, %v4855
    %vm4859 = vc.u32 %v4853, %v4855
    %v4860 = vadd.s32 %v4856, 1
    %v4861 = vsel %vm4859, %v4860, %v4856
    %v4862 = vadd.s32 %v4857, %v4861
    %v4863 = vadd.s32 %v4862, 536870912
    %v4864 = vshrl.u32 %v4863, 30
    %v4865 = vshll.u32 %v4864, 30
    %v4866 = vsub.s32 %v4862, %v4865
    %vm4867 = vcmp.lt.s32.totalorder %v4866, 0
    %v4868 = vsub.s32 0, %v4866
    %v4869 = vsel %vm4867, %v4868, %v4866
    %v4870 = vclz %v4869
    %v4871 = vsub.s32 %v4870, 2
    %vm4872 = vcmp.gt.s32.totalorder 0, %v4871
    %v4873 = vsel %vm4872, 0, %v4871
    %v4874 = vsub.s32 32, %v4873
    %v4875 = vshll.u32 %v4866, %v4873
    %v4876 = vshrl.u32 %v4858, %v4874
    %v4877 = vor.u32 %v4875, %v4876
    %v4878 = vsub.s32 4294967266, %v4873
    %v4879 = vadd.s32 %v4878, 127
    %v4880 = vshll.u32 %v4879, 23
    %v4881 = vor.u32 4788187, %v4880
    %v4882 = vand.u32 2147483647, %v4881
    %v4884 = vcvt.s32.f32 %v4877
    %v4885 = vmul.f32 %v4884, %v4882
    %v4886 = vxor.u32 %v4885, 2147483648
    %v4887 = vsel %vm4804, %v4886, %v4885
    %v4888 = vsub.s32 4, %v4864
    %v4889 = vsel %vm4804, %v4888, %v4864
    %v4890 = vsel %vm4803, %v3746, %v4887
    %v4891 = vsel %vm4803, 0, %v4889
    %v4892 = vcosq.f32.pop %v4890
    %v4893 = vsinq.f32.pop %v4890
    %vm4894 = vweird.f32 %v3746
    %v4895 = vadd.s32 %v4891, 3
    %v4896 = vand.u32 %v4895, 3
    %vm4897 = vcmp.lt.s32.totalorder %v4896, 2
    %vm4898 = vcmp.eq.s32.totalorder %v4896, 0
    %v4899 = vxor.u32 %v4893, 2147483648
    %v4900 = vsel %vm4898, %v4892, %v4899
    %vm4901 = vcmp.eq.s32.totalorder %v4896, 2
    %v4902 = vxor.u32 %v4892, 2147483648
    %v4903 = vsel %vm4901, %v4902, %v4893
    %v4904 = vsel %vm4897, %v4900, %v4903
    %v4905 = vsel %vm4894, nan, %v4904
    %v4906 = vand.u32 2147483647, %v3748
    %vm4907 = vcmp.le.f32.partialorder %v4906, 0.7853982
    %vm4908 = vcmp.lt.s32.totalorder %v3748, 0
    %v4909 = vand.u32 %v3748, 2139095040
    %v4910 = vshrl.u32 %v4909, 23
    %v4911 = vsub.s32 %v4910, 127
    %v4912 = vand.u32 2147483647, %v3748
    %v4913 = vand.u32 %v4912, 8388607
    %v4914 = vor.u32 %v4913, 8388608
    %v4915 = vsub.s32 0, %v4914
    %v4916 = vadd.s32 %v4911, 1
    %vm4917 = vcmp.gt.s32.totalorder %v4916, 0
    %v4918 = vsel %vm4917, %v4916, 0
    %v4919 = vshrl.u32 %v4918, 5
    %v4920 = vand.u32 %v4918, 31
    %v4921 = vsub.s32 32, %v4920
    %v4922 = vshrl.u32 683565275, %v4921
    %v4923 = vshll.u32 683565275, %v4920
    %v4924 = vshrl.u32 2475754826, %v4921
    %v4925 = vor.u32 %v4923, %v4924
    %v4926 = vshll.u32 2475754826, %v4920
    %v4927 = vshrl.u32 2131351028, %v4921
    %v4928 = vor.u32 %v4926, %v4927
    %v4929 = vshll.u32 2131351028, %v4920
    %v4930 = vshrl.u32 2102212464, %v4921
    %v4931 = vor.u32 %v4929, %v4930
    %v4932 = vshll.u32 2102212464, %v4920
    %v4933 = vshrl.u32 920167782, %v4921
    %v4934 = vor.u32 %v4932, %v4933
    %v4935 = vshll.u32 920167782, %v4920
    %v4936 = vshrl.u32 1326507024, %v4921
    %v4937 = vor.u32 %v4935, %v4936
    %vm4938 = vcmp.lt.s32.totalorder %v4919, 1
    %vm4939 = vcmp.lt.s32.totalorder %v4919, 2
    %vm4940 = vcmp.lt.s32.totalorder %v4919, 3
    %vm4941 = vcmp.lt.s32.totalorder %v4919, 4
    %v4942 = vsel %vm4938, %v4922, %v4925
    %v4943 = vsel %vm4941, %v4931, 2102212464
    %v4944 = vsel %vm4940, %v4928, %v4943
    %v4945 = vsel %vm4939, %v4942, %v4944
    %v4946 = vsel %vm4938, %v4925, %v4928
    %v4947 = vsel %vm4941, %v4934, 920167782
    %v4948 = vsel %vm4940, %v4931, %v4947
    %v4949 = vsel %vm4939, %v4946, %v4948
    %v4950 = vsel %vm4938, %v4928, %v4931
    %v4951 = vsel %vm4941, %v4937, 1326507024
    %v4952 = vsel %vm4940, %v4934, %v4951
    %v4953 = vsel %vm4939, %v4950, %v4952
    %v4954 = vshll.u32 %v4914, 8
    %v4955 = vmul.u32.u64.compose %v4954, %v4953
    %v4956 = vextract.low.u32 %v4955
    %v4957 = vextract.high.u32 %v4955
    %v4958 = vmul.u32.u64.compose %v4954, %v4949
    %v4959 = vextract.low.u32 %v4958
    %v4960 = vextract.high.u32 %v4958
    %v4961 = vmul.u32 %v4954, %v4945
    %v4962 = vadd.s32 %v4957, %v4959
    %vm4963 = vc.u32 %v4957, %v4959
    %v4964 = vadd.s32 %v4960, 1
    %v4965 = vsel %vm4963, %v4964, %v4960
    %v4966 = vadd.s32 %v4961, %v4965
    %v4967 = vadd.s32 %v4966, 536870912
    %v4968 = vshrl.u32 %v4967, 30
    %v4969 = vshll.u32 %v4968, 30
    %v4970 = vsub.s32 %v4966, %v4969
    %vm4971 = vcmp.lt.s32.totalorder %v4970, 0
    %v4972 = vsub.s32 0, %v4970
    %v4973 = vsel %vm4971, %v4972, %v4970
    %v4974 = vclz %v4973
    %v4975 = vsub.s32 %v4974, 2
    %vm4976 = vcmp.gt.s32.totalorder 0, %v4975
    %v4977 = vsel %vm4976, 0, %v4975
    %v4978 = vsub.s32 32, %v4977
    %v4979 = vshll.u32 %v4970, %v4977
    %v4980 = vshrl.u32 %v4962, %v4978
    %v4981 = vor.u32 %v4979, %v4980
    %v4982 = vsub.s32 4294967266, %v4977
    %v4983 = vadd.s32 %v4982, 127
    %v4984 = vshll.u32 %v4983, 23
    %v4985 = vor.u32 4788187, %v4984
    %v4986 = vand.u32 2147483647, %v4985
    %v4988 = vcvt.s32.f32 %v4981
    %v4989 = vmul.f32 %v4988, %v4986
    %v4990 = vxor.u32 %v4989, 2147483648
    %v4991 = vsel %vm4908, %v4990, %v4989
    %v4992 = vsub.s32 4, %v4968
    %v4993 = vsel %vm4908, %v4992, %v4968
    %v4994 = vsel %vm4907, %v3748, %v4991
    %v4995 = vsel %vm4907, 0, %v4993
    %v4996 = vcosq.f32.pop %v4994
    %v4997 = vsinq.f32.pop %v4994
    %vm4998 = vweird.f32 %v3748
    %v4999 = vadd.s32 %v4995, 3
    %v5000 = vand.u32 %v4999, 3
    %vm5001 = vcmp.lt.s32.totalorder %v5000, 2
    %vm5002 = vcmp.eq.s32.totalorder %v5000, 0
    %v5003 = vxor.u32 %v4997, 2147483648
    %v5004 = vsel %vm5002, %v4996, %v5003
    %vm5005 = vcmp.eq.s32.totalorder %v5000, 2
    %v5006 = vxor.u32 %v4996, 2147483648
    %v5007 = vsel %vm5005, %v5006, %v4997
    %v5008 = vsel %vm5001, %v5004, %v5007
    %v5009 = vsel %vm4998, nan, %v5008
    %v5010 = vand.u32 2147483647, %v3752
    %vm5011 = vcmp.le.f32.partialorder %v5010, 0.7853982
    %vm5012 = vcmp.lt.s32.totalorder %v3752, 0
    %v5013 = vand.u32 %v3752, 2139095040
    %v5014 = vshrl.u32 %v5013, 23
    %v5015 = vsub.s32 %v5014, 127
    %v5016 = vand.u32 2147483647, %v3752
    %v5017 = vand.u32 %v5016, 8388607
    %v5018 = vor.u32 %v5017, 8388608
    %v5019 = vsub.s32 0, %v5018
    %v5020 = vadd.s32 %v5015, 1
    %vm5021 = vcmp.gt.s32.totalorder %v5020, 0
    %v5022 = vsel %vm5021, %v5020, 0
    %v5023 = vshrl.u32 %v5022, 5
    %v5024 = vand.u32 %v5022, 31
    %v5025 = vsub.s32 32, %v5024
    %v5026 = vshrl.u32 683565275, %v5025
    %v5027 = vshll.u32 683565275, %v5024
    %v5028 = vshrl.u32 2475754826, %v5025
    %v5029 = vor.u32 %v5027, %v5028
    %v5030 = vshll.u32 2475754826, %v5024
    %v5031 = vshrl.u32 2131351028, %v5025
    %v5032 = vor.u32 %v5030, %v5031
    %v5033 = vshll.u32 2131351028, %v5024
    %v5034 = vshrl.u32 2102212464, %v5025
    %v5035 = vor.u32 %v5033, %v5034
    %v5036 = vshll.u32 2102212464, %v5024
    %v5037 = vshrl.u32 920167782, %v5025
    %v5038 = vor.u32 %v5036, %v5037
    %v5039 = vshll.u32 920167782, %v5024
    %v5040 = vshrl.u32 1326507024, %v5025
    %v5041 = vor.u32 %v5039, %v5040
    %vm5042 = vcmp.lt.s32.totalorder %v5023, 1
    %vm5043 = vcmp.lt.s32.totalorder %v5023, 2
    %vm5044 = vcmp.lt.s32.totalorder %v5023, 3
    %vm5045 = vcmp.lt.s32.totalorder %v5023, 4
    %v5046 = vsel %vm5042, %v5026, %v5029
    %v5047 = vsel %vm5045, %v5035, 2102212464
    %v5048 = vsel %vm5044, %v5032, %v5047
    %v5049 = vsel %vm5043, %v5046, %v5048
    %v5050 = vsel %vm5042, %v5029, %v5032
    %v5051 = vsel %vm5045, %v5038, 920167782
    %v5052 = vsel %vm5044, %v5035, %v5051
    %v5053 = vsel %vm5043, %v5050, %v5052
    %v5054 = vsel %vm5042, %v5032, %v5035
    %v5055 = vsel %vm5045, %v5041, 1326507024
    %v5056 = vsel %vm5044, %v5038, %v5055
    %v5057 = vsel %vm5043, %v5054, %v5056
    %v5058 = vshll.u32 %v5018, 8
    %v5059 = vmul.u32.u64.compose %v5058, %v5057
    %v5060 = vextract.low.u32 %v5059
    %v5061 = vextract.high.u32 %v5059
    %v5062 = vmul.u32.u64.compose %v5058, %v5053
    %v5063 = vextract.low.u32 %v5062
    %v5064 = vextract.high.u32 %v5062
    %v5065 = vmul.u32 %v5058, %v5049
    %v5066 = vadd.s32 %v5061, %v5063
    %vm5067 = vc.u32 %v5061, %v5063
    %v5068 = vadd.s32 %v5064, 1
    %v5069 = vsel %vm5067, %v5068, %v5064
    %v5070 = vadd.s32 %v5065, %v5069
    %v5071 = vadd.s32 %v5070, 536870912
    %v5072 = vshrl.u32 %v5071, 30
    %v5073 = vshll.u32 %v5072, 30
    %v5074 = vsub.s32 %v5070, %v5073
    %vm5075 = vcmp.lt.s32.totalorder %v5074, 0
    %v5076 = vsub.s32 0, %v5074
    %v5077 = vsel %vm5075, %v5076, %v5074
    %v5078 = vclz %v5077
    %v5079 = vsub.s32 %v5078, 2
    %vm5080 = vcmp.gt.s32.totalorder 0, %v5079
    %v5081 = vsel %vm5080, 0, %v5079
    %v5082 = vsub.s32 32, %v5081
    %v5083 = vshll.u32 %v5074, %v5081
    %v5084 = vshrl.u32 %v5066, %v5082
    %v5085 = vor.u32 %v5083, %v5084
    %v5086 = vsub.s32 4294967266, %v5081
    %v5087 = vadd.s32 %v5086, 127
    %v5088 = vshll.u32 %v5087, 23
    %v5089 = vor.u32 4788187, %v5088
    %v5090 = vand.u32 2147483647, %v5089
    %v5092 = vcvt.s32.f32 %v5085
    %v5093 = vmul.f32 %v5092, %v5090
    %v5094 = vxor.u32 %v5093, 2147483648
    %v5095 = vsel %vm5012, %v5094, %v5093
    %v5096 = vsub.s32 4, %v5072
    %v5097 = vsel %vm5012, %v5096, %v5072
    %v5098 = vsel %vm5011, %v3752, %v5095
    %v5099 = vsel %vm5011, 0, %v5097
    %v5100 = vcosq.f32.pop %v5098
    %v5101 = vsinq.f32.pop %v5098
    %vm5102 = vweird.f32 %v3752
    %v5103 = vadd.s32 %v5099, 3
    %v5104 = vand.u32 %v5103, 3
    %vm5105 = vcmp.lt.s32.totalorder %v5104, 2
    %vm5106 = vcmp.eq.s32.totalorder %v5104, 0
    %v5107 = vxor.u32 %v5101, 2147483648
    %v5108 = vsel %vm5106, %v5100, %v5107
    %vm5109 = vcmp.eq.s32.totalorder %v5104, 2
    %v5110 = vxor.u32 %v5100, 2147483648
    %v5111 = vsel %vm5109, %v5110, %v5101
    %v5112 = vsel %vm5105, %v5108, %v5111
    %v5113 = vsel %vm5102, nan, %v5112
    %v5114 = vand.u32 2147483647, %v3754
    %vm5115 = vcmp.le.f32.partialorder %v5114, 0.7853982
    %vm5116 = vcmp.lt.s32.totalorder %v3754, 0
    %v5117 = vand.u32 %v3754, 2139095040
    %v5118 = vshrl.u32 %v5117, 23
    %v5119 = vsub.s32 %v5118, 127
    %v5120 = vand.u32 2147483647, %v3754
    %v5121 = vand.u32 %v5120, 8388607
    %v5122 = vor.u32 %v5121, 8388608
    %v5123 = vsub.s32 0, %v5122
    %v5124 = vadd.s32 %v5119, 1
    %vm5125 = vcmp.gt.s32.totalorder %v5124, 0
    %v5126 = vsel %vm5125, %v5124, 0
    %v5127 = vshrl.u32 %v5126, 5
    %v5128 = vand.u32 %v5126, 31
    %v5129 = vsub.s32 32, %v5128
    %v5130 = vshrl.u32 683565275, %v5129
    %v5131 = vshll.u32 683565275, %v5128
    %v5132 = vshrl.u32 2475754826, %v5129
    %v5133 = vor.u32 %v5131, %v5132
    %v5134 = vshll.u32 2475754826, %v5128
    %v5135 = vshrl.u32 2131351028, %v5129
    %v5136 = vor.u32 %v5134, %v5135
    %v5137 = vshll.u32 2131351028, %v5128
    %v5138 = vshrl.u32 2102212464, %v5129
    %v5139 = vor.u32 %v5137, %v5138
    %v5140 = vshll.u32 2102212464, %v5128
    %v5141 = vshrl.u32 920167782, %v5129
    %v5142 = vor.u32 %v5140, %v5141
    %v5143 = vshll.u32 920167782, %v5128
    %v5144 = vshrl.u32 1326507024, %v5129
    %v5145 = vor.u32 %v5143, %v5144
    %vm5146 = vcmp.lt.s32.totalorder %v5127, 1
    %vm5147 = vcmp.lt.s32.totalorder %v5127, 2
    %vm5148 = vcmp.lt.s32.totalorder %v5127, 3
    %vm5149 = vcmp.lt.s32.totalorder %v5127, 4
    %v5150 = vsel %vm5146, %v5130, %v5133
    %v5151 = vsel %vm5149, %v5139, 2102212464
    %v5152 = vsel %vm5148, %v5136, %v5151
    %v5153 = vsel %vm5147, %v5150, %v5152
    %v5154 = vsel %vm5146, %v5133, %v5136
    %v5155 = vsel %vm5149, %v5142, 920167782
    %v5156 = vsel %vm5148, %v5139, %v5155
    %v5157 = vsel %vm5147, %v5154, %v5156
    %v5158 = vsel %vm5146, %v5136, %v5139
    %v5159 = vsel %vm5149, %v5145, 1326507024
    %v5160 = vsel %vm5148, %v5142, %v5159
    %v5161 = vsel %vm5147, %v5158, %v5160
    %v5162 = vshll.u32 %v5122, 8
    %v5163 = vmul.u32.u64.compose %v5162, %v5161
    %v5164 = vextract.low.u32 %v5163
    %v5165 = vextract.high.u32 %v5163
    %v5166 = vmul.u32.u64.compose %v5162, %v5157
    %v5167 = vextract.low.u32 %v5166
    %v5168 = vextract.high.u32 %v5166
    %v5169 = vmul.u32 %v5162, %v5153
    %v5170 = vadd.s32 %v5165, %v5167
    %vm5171 = vc.u32 %v5165, %v5167
    %v5172 = vadd.s32 %v5168, 1
    %v5173 = vsel %vm5171, %v5172, %v5168
    %v5174 = vadd.s32 %v5169, %v5173
    %v5175 = vadd.s32 %v5174, 536870912
    %v5176 = vshrl.u32 %v5175, 30
    %v5177 = vshll.u32 %v5176, 30
    %v5178 = vsub.s32 %v5174, %v5177
    %vm5179 = vcmp.lt.s32.totalorder %v5178, 0
    %v5180 = vsub.s32 0, %v5178
    %v5181 = vsel %vm5179, %v5180, %v5178
    %v5182 = vclz %v5181
    %v5183 = vsub.s32 %v5182, 2
    %vm5184 = vcmp.gt.s32.totalorder 0, %v5183
    %v5185 = vsel %vm5184, 0, %v5183
    %v5186 = vsub.s32 32, %v5185
    %v5187 = vshll.u32 %v5178, %v5185
    %v5188 = vshrl.u32 %v5170, %v5186
    %v5189 = vor.u32 %v5187, %v5188
    %v5190 = vsub.s32 4294967266, %v5185
    %v5191 = vadd.s32 %v5190, 127
    %v5192 = vshll.u32 %v5191, 23
    %v5193 = vor.u32 4788187, %v5192
    %v5194 = vand.u32 2147483647, %v5193
    %v5196 = vcvt.s32.f32 %v5189
    %v5197 = vmul.f32 %v5196, %v5194
    %v5198 = vxor.u32 %v5197, 2147483648
    %v5199 = vsel %vm5116, %v5198, %v5197
    %v5200 = vsub.s32 4, %v5176
    %v5201 = vsel %vm5116, %v5200, %v5176
    %v5202 = vsel %vm5115, %v3754, %v5199
    %v5203 = vsel %vm5115, 0, %v5201
    %v5204 = vcosq.f32.pop %v5202
    %v5205 = vsinq.f32.pop %v5202
    %vm5206 = vweird.f32 %v3754
    %v5207 = vadd.s32 %v5203, 3
    %v5208 = vand.u32 %v5207, 3
    %vm5209 = vcmp.lt.s32.totalorder %v5208, 2
    %vm5210 = vcmp.eq.s32.totalorder %v5208, 0
    %v5211 = vxor.u32 %v5205, 2147483648
    %v5212 = vsel %vm5210, %v5204, %v5211
    %vm5213 = vcmp.eq.s32.totalorder %v5208, 2
    %v5214 = vxor.u32 %v5204, 2147483648
    %v5215 = vsel %vm5213, %v5214, %v5205
    %v5216 = vsel %vm5209, %v5212, %v5215
    %v5217 = vsel %vm5206, nan, %v5216
    %v5218 = vand.u32 2147483647, %v3758
    %vm5219 = vcmp.le.f32.partialorder %v5218, 0.7853982
    %vm5220 = vcmp.lt.s32.totalorder %v3758, 0
    %v5221 = vand.u32 %v3758, 2139095040
    %v5222 = vshrl.u32 %v5221, 23
    %v5223 = vsub.s32 %v5222, 127
    %v5224 = vand.u32 2147483647, %v3758
    %v5225 = vand.u32 %v5224, 8388607
    %v5226 = vor.u32 %v5225, 8388608
    %v5227 = vsub.s32 0, %v5226
    %v5228 = vadd.s32 %v5223, 1
    %vm5229 = vcmp.gt.s32.totalorder %v5228, 0
    %v5230 = vsel %vm5229, %v5228, 0
    %v5231 = vshrl.u32 %v5230, 5
    %v5232 = vand.u32 %v5230, 31
    %v5233 = vsub.s32 32, %v5232
    %v5234 = vshrl.u32 683565275, %v5233
    %v5235 = vshll.u32 683565275, %v5232
    %v5236 = vshrl.u32 2475754826, %v5233
    %v5237 = vor.u32 %v5235, %v5236
    %v5238 = vshll.u32 2475754826, %v5232
    %v5239 = vshrl.u32 2131351028, %v5233
    %v5240 = vor.u32 %v5238, %v5239
    %v5241 = vshll.u32 2131351028, %v5232
    %v5242 = vshrl.u32 2102212464, %v5233
    %v5243 = vor.u32 %v5241, %v5242
    %v5244 = vshll.u32 2102212464, %v5232
    %v5245 = vshrl.u32 920167782, %v5233
    %v5246 = vor.u32 %v5244, %v5245
    %v5247 = vshll.u32 920167782, %v5232
    %v5248 = vshrl.u32 1326507024, %v5233
    %v5249 = vor.u32 %v5247, %v5248
    %vm5250 = vcmp.lt.s32.totalorder %v5231, 1
    %vm5251 = vcmp.lt.s32.totalorder %v5231, 2
    %vm5252 = vcmp.lt.s32.totalorder %v5231, 3
    %vm5253 = vcmp.lt.s32.totalorder %v5231, 4
    %v5254 = vsel %vm5250, %v5234, %v5237
    %v5255 = vsel %vm5253, %v5243, 2102212464
    %v5256 = vsel %vm5252, %v5240, %v5255
    %v5257 = vsel %vm5251, %v5254, %v5256
    %v5258 = vsel %vm5250, %v5237, %v5240
    %v5259 = vsel %vm5253, %v5246, 920167782
    %v5260 = vsel %vm5252, %v5243, %v5259
    %v5261 = vsel %vm5251, %v5258, %v5260
    %v5262 = vsel %vm5250, %v5240, %v5243
    %v5263 = vsel %vm5253, %v5249, 1326507024
    %v5264 = vsel %vm5252, %v5246, %v5263
    %v5265 = vsel %vm5251, %v5262, %v5264
    %v5266 = vshll.u32 %v5226, 8
    %v5267 = vmul.u32.u64.compose %v5266, %v5265
    %v5268 = vextract.low.u32 %v5267
    %v5269 = vextract.high.u32 %v5267
    %v5270 = vmul.u32.u64.compose %v5266, %v5261
    %v5271 = vextract.low.u32 %v5270
    %v5272 = vextract.high.u32 %v5270
    %v5273 = vmul.u32 %v5266, %v5257
    %v5274 = vadd.s32 %v5269, %v5271
    %vm5275 = vc.u32 %v5269, %v5271
    %v5276 = vadd.s32 %v5272, 1
    %v5277 = vsel %vm5275, %v5276, %v5272
    %v5278 = vadd.s32 %v5273, %v5277
    %v5279 = vadd.s32 %v5278, 536870912
    %v5280 = vshrl.u32 %v5279, 30
    %v5281 = vshll.u32 %v5280, 30
    %v5282 = vsub.s32 %v5278, %v5281
    %vm5283 = vcmp.lt.s32.totalorder %v5282, 0
    %v5284 = vsub.s32 0, %v5282
    %v5285 = vsel %vm5283, %v5284, %v5282
    %v5286 = vclz %v5285
    %v5287 = vsub.s32 %v5286, 2
    %vm5288 = vcmp.gt.s32.totalorder 0, %v5287
    %v5289 = vsel %vm5288, 0, %v5287
    %v5290 = vsub.s32 32, %v5289
    %v5291 = vshll.u32 %v5282, %v5289
    %v5292 = vshrl.u32 %v5274, %v5290
    %v5293 = vor.u32 %v5291, %v5292
    %v5294 = vsub.s32 4294967266, %v5289
    %v5295 = vadd.s32 %v5294, 127
    %v5296 = vshll.u32 %v5295, 23
    %v5297 = vor.u32 4788187, %v5296
    %v5298 = vand.u32 2147483647, %v5297
    %v5300 = vcvt.s32.f32 %v5293
    %v5301 = vmul.f32 %v5300, %v5298
    %v5302 = vxor.u32 %v5301, 2147483648
    %v5303 = vsel %vm5220, %v5302, %v5301
    %v5304 = vsub.s32 4, %v5280
    %v5305 = vsel %vm5220, %v5304, %v5280
    %v5306 = vsel %vm5219, %v3758, %v5303
    %v5307 = vsel %vm5219, 0, %v5305
    %v5308 = vcosq.f32.pop %v5306
    %v5309 = vsinq.f32.pop %v5306
    %vm5310 = vweird.f32 %v3758
    %v5311 = vadd.s32 %v5307, 3
    %v5312 = vand.u32 %v5311, 3
    %vm5313 = vcmp.lt.s32.totalorder %v5312, 2
    %vm5314 = vcmp.eq.s32.totalorder %v5312, 0
    %v5315 = vxor.u32 %v5309, 2147483648
    %v5316 = vsel %vm5314, %v5308, %v5315
    %vm5317 = vcmp.eq.s32.totalorder %v5312, 2
    %v5318 = vxor.u32 %v5308, 2147483648
    %v5319 = vsel %vm5317, %v5318, %v5309
    %v5320 = vsel %vm5313, %v5316, %v5319
    %v5321 = vsel %vm5310, nan, %v5320
    %v5322 = vand.u32 2147483647, %v3760
    %vm5323 = vcmp.le.f32.partialorder %v5322, 0.7853982
    %vm5324 = vcmp.lt.s32.totalorder %v3760, 0
    %v5325 = vand.u32 %v3760, 2139095040
    %v5326 = vshrl.u32 %v5325, 23
    %v5327 = vsub.s32 %v5326, 127
    %v5328 = vand.u32 2147483647, %v3760
    %v5329 = vand.u32 %v5328, 8388607
    %v5330 = vor.u32 %v5329, 8388608
    %v5331 = vsub.s32 0, %v5330
    %v5332 = vadd.s32 %v5327, 1
    %vm5333 = vcmp.gt.s32.totalorder %v5332, 0
    %v5334 = vsel %vm5333, %v5332, 0
    %v5335 = vshrl.u32 %v5334, 5
    %v5336 = vand.u32 %v5334, 31
    %v5337 = vsub.s32 32, %v5336
    %v5338 = vshrl.u32 683565275, %v5337
    %v5339 = vshll.u32 683565275, %v5336
    %v5340 = vshrl.u32 2475754826, %v5337
    %v5341 = vor.u32 %v5339, %v5340
    %v5342 = vshll.u32 2475754826, %v5336
    %v5343 = vshrl.u32 2131351028, %v5337
    %v5344 = vor.u32 %v5342, %v5343
    %v5345 = vshll.u32 2131351028, %v5336
    %v5346 = vshrl.u32 2102212464, %v5337
    %v5347 = vor.u32 %v5345, %v5346
    %v5348 = vshll.u32 2102212464, %v5336
    %v5349 = vshrl.u32 920167782, %v5337
    %v5350 = vor.u32 %v5348, %v5349
    %v5351 = vshll.u32 920167782, %v5336
    %v5352 = vshrl.u32 1326507024, %v5337
    %v5353 = vor.u32 %v5351, %v5352
    %vm5354 = vcmp.lt.s32.totalorder %v5335, 1
    %vm5355 = vcmp.lt.s32.totalorder %v5335, 2
    %vm5356 = vcmp.lt.s32.totalorder %v5335, 3
    %vm5357 = vcmp.lt.s32.totalorder %v5335, 4
    %v5358 = vsel %vm5354, %v5338, %v5341
    %v5359 = vsel %vm5357, %v5347, 2102212464
    %v5360 = vsel %vm5356, %v5344, %v5359
    %v5361 = vsel %vm5355, %v5358, %v5360
    %v5362 = vsel %vm5354, %v5341, %v5344
    %v5363 = vsel %vm5357, %v5350, 920167782
    %v5364 = vsel %vm5356, %v5347, %v5363
    %v5365 = vsel %vm5355, %v5362, %v5364
    %v5366 = vsel %vm5354, %v5344, %v5347
    %v5367 = vsel %vm5357, %v5353, 1326507024
    %v5368 = vsel %vm5356, %v5350, %v5367
    %v5369 = vsel %vm5355, %v5366, %v5368
    %v5370 = vshll.u32 %v5330, 8
    %v5371 = vmul.u32.u64.compose %v5370, %v5369
    %v5372 = vextract.low.u32 %v5371
    %v5373 = vextract.high.u32 %v5371
    %v5374 = vmul.u32.u64.compose %v5370, %v5365
    %v5375 = vextract.low.u32 %v5374
    %v5376 = vextract.high.u32 %v5374
    %v5377 = vmul.u32 %v5370, %v5361
    %v5378 = vadd.s32 %v5373, %v5375
    %vm5379 = vc.u32 %v5373, %v5375
    %v5380 = vadd.s32 %v5376, 1
    %v5381 = vsel %vm5379, %v5380, %v5376
    %v5382 = vadd.s32 %v5377, %v5381
    %v5383 = vadd.s32 %v5382, 536870912
    %v5384 = vshrl.u32 %v5383, 30
    %v5385 = vshll.u32 %v5384, 30
    %v5386 = vsub.s32 %v5382, %v5385
    %vm5387 = vcmp.lt.s32.totalorder %v5386, 0
    %v5388 = vsub.s32 0, %v5386
    %v5389 = vsel %vm5387, %v5388, %v5386
    %v5390 = vclz %v5389
    %v5391 = vsub.s32 %v5390, 2
    %vm5392 = vcmp.gt.s32.totalorder 0, %v5391
    %v5393 = vsel %vm5392, 0, %v5391
    %v5394 = vsub.s32 32, %v5393
    %v5395 = vshll.u32 %v5386, %v5393
    %v5396 = vshrl.u32 %v5378, %v5394
    %v5397 = vor.u32 %v5395, %v5396
    %v5398 = vsub.s32 4294967266, %v5393
    %v5399 = vadd.s32 %v5398, 127
    %v5400 = vshll.u32 %v5399, 23
    %v5401 = vor.u32 4788187, %v5400
    %v5402 = vand.u32 2147483647, %v5401
    %v5404 = vcvt.s32.f32 %v5397
    %v5405 = vmul.f32 %v5404, %v5402
    %v5406 = vxor.u32 %v5405, 2147483648
    %v5407 = vsel %vm5324, %v5406, %v5405
    %v5408 = vsub.s32 4, %v5384
    %v5409 = vsel %vm5324, %v5408, %v5384
    %v5410 = vsel %vm5323, %v3760, %v5407
    %v5411 = vsel %vm5323, 0, %v5409
    %v5412 = vcosq.f32.pop %v5410
    %v5413 = vsinq.f32.pop %v5410
    %vm5414 = vweird.f32 %v3760
    %v5415 = vadd.s32 %v5411, 3
    %v5416 = vand.u32 %v5415, 3
    %vm5417 = vcmp.lt.s32.totalorder %v5416, 2
    %vm5418 = vcmp.eq.s32.totalorder %v5416, 0
    %v5419 = vxor.u32 %v5413, 2147483648
    %v5420 = vsel %vm5418, %v5412, %v5419
    %vm5421 = vcmp.eq.s32.totalorder %v5416, 2
    %v5422 = vxor.u32 %v5412, 2147483648
    %v5423 = vsel %vm5421, %v5422, %v5413
    %v5424 = vsel %vm5417, %v5420, %v5423
    %v5425 = vsel %vm5414, nan, %v5424
    %s5426 = scalar_lea.vmem %s1, 128
    %v5427 = vld [vmem:[%s5426] sm:$0xff]
    %s5428 = scalar_lea.vmem %s2, 128
    %v5429 = vld [vmem:[%s5428] sm:$0xff]
    %5431 = vset.pattern.permute.xlu0 0
    %5432 = vperm.xlu0 %5431, %v5429
    %v5433 = vpop.permute.xlu0 %5432
    %v5436 = vsel %vm1765, %v5427, 0
    %5438 = vmatprep.subr.mxu0 %v3969
    %5439 = vmatpush1.msra.mxu0 %v3865
    %5440 = vmatprep.subr.mxu0 %v4177
    %5441 = vmatpush1.msra.mxu0 %v4073
    %5442 = vmatprep.subr.mxu0 %v4385
    %5443 = vmatpush1.msra.mxu0 %v4281
    %5444 = vmatprep.subr.mxu0 %v4593
    %5445 = vmatpush1.msra.mxu0 %v4489
    %5446 = vmatprep.subr.mxu0 %v4801
    %5447 = vmatpush1.msra.mxu0 %v4697
    %5448 = vmatprep.subr.mxu0 %v5009
    %5449 = vmatpush1.msra.mxu0 %v4905
    %5450 = vmatprep.subr.mxu0 %v5217
    %5451 = vmatpush1.msra.mxu0 %v5113
    %5452 = vmatprep.subr.mxu0 %v5425
    %5453 = vmatpush1.msra.mxu0 %v5321
    %5454 = vmatprep.subr.mxu0 0.0
    %5455 = vmatpush1.msra.mxu0 0.0
    %5456 = vmatprep.subr.mxu0 0.0
    %5457 = vmatpush1.msra.mxu0 0.0
    %5458 = vmatprep.subr.mxu0 0.0
    %5459 = vmatpush1.msra.mxu0 0.0
    %5460 = vmatprep.subr.mxu0 0.0
    %5461 = vmatpush1.msra.mxu0 0.0
    %5462 = vmatprep.subr.mxu0 0.0
    %5463 = vmatpush1.msra.mxu0 0.0
    %5464 = vmatprep.subr.mxu0 0.0
    %5465 = vmatpush1.msra.mxu0 0.0
    %5466 = vmatprep.subr.mxu0 0.0
    %5467 = vmatpush1.msra.mxu0 0.0
    %5468 = vmatprep.subr.mxu0 0.0
    %5469 = vmatpush1.msra.mxu0 0.0
    %5470 = vmatprep.subr.mxu0 0.0
    %5471 = vmatpush1.msra.mxu0 0.0
    %5472 = vmatprep.subr.mxu0 0.0
    %5473 = vmatpush1.msra.mxu0 0.0
    %5474 = vmatprep.subr.mxu0 0.0
    %5475 = vmatpush1.msra.mxu0 0.0
    %5476 = vmatprep.subr.mxu0 0.0
    %5477 = vmatpush1.msra.mxu0 0.0
    %5478 = vmatprep.subr.mxu0 0.0
    %5479 = vmatpush1.msra.mxu0 0.0
    %5480 = vmatprep.subr.mxu0 0.0
    %5481 = vmatpush1.msra.mxu0 0.0
    %5482 = vmatprep.subr.mxu0 0.0
    %5483 = vmatpush1.msra.mxu0 0.0
    %5484 = vmatprep.subr.mxu0 0.0
    %5485 = vmatpush1.msra.mxu0 0.0
    %5486 = vmatprep.subr.mxu0 0.0
    %5487 = vmatpush1.msra.mxu0 0.0
    %5488 = vmatprep.subr.mxu0 0.0
    %5489 = vmatpush1.msra.mxu0 0.0
    %5490 = vmatprep.subr.mxu0 0.0
    %5491 = vmatpush1.msra.mxu0 0.0
    %5492 = vmatprep.subr.mxu0 0.0
    %5493 = vmatpush1.msra.mxu0 0.0
    %5494 = vmatprep.subr.mxu0 0.0
    %5495 = vmatpush1.msra.mxu0 0.0
    %5496 = vmatprep.subr.mxu0 0.0
    %5497 = vmatpush1.msra.mxu0 0.0
    %5498 = vmatprep.subr.mxu0 0.0
    %5499 = vmatpush1.msra.mxu0 0.0
    %5500 = vmatprep.subr.mxu0 0.0
    %5501 = vmatpush1.msra.mxu0 0.0
    %5502 = vmatprep.mubr.f32.mxu0 0.0
    %5503 = vmatmul.mubr.f32.gmra.mrb[0].mxu0 %v5436
    %v5504 = vpop.f32.mrb[0].mxu0
    %v5505 = vadd.f32 %v5433, %v5504
    %v5506 = vpop.f32.mrb[0].mxu0
    %v5507 = vadd.f32 %v5433, %v5506
    %5508 = vdwg.mxu0
    %5509 = vst [vmem:[#allocation5] sm:$0xff] %v5505
    %5510 = vst [vmem:[#allocation5 + $0x8] sm:$0xff] %v5507
    // Predicated region
    $region18: #{tpu_custom_call.1} parent=1 // pred_check
      _
    $region19: #{tpu_custom_call.1} parent=1 // pred_check_branch
      %5512 = sbr.rel (0) target = $region21
    $region20: #{tpu_custom_call.1} parent=1 // pred_region
      %s5514 = ssub.s32 256, 256
      %5515 = vsyncadd [#allocation4], %s5514
      %s5517 = sshll.u32 [#allocation5], 4
      %s5518 = int_to_ptr.vmem [resolvable:$true] %s5517
      %5520 = dma.vmem_to_hbm [thread:$0]  %s5518, 256, %s3, [#allocation4]
    $region21: #{tpu_custom_call.1} parent=1 // pred_fallthru
      _
    // Predicated region
    $region22: #{tpu_custom_call.1} parent=1 // pred_check
      _
    $region23: #{tpu_custom_call.1} parent=1 // pred_check_branch
      %5522 = sbr.rel (0) target = $region25
    $region24: #{tpu_custom_call.1} parent=1 // pred_region
      %5523 = dma.done [#allocation4], 256
    $region25: #{tpu_custom_call.1} parent=1 // pred_fallthru
      _
    %5524 = vsyncpa [#allocation3], 1
    %5525 = vsyncpa [#allocation4], 1

</llo_original>
